<compile_context>
chip_gen: v5e
topology: v5e:2x2
jax: 0.10.0
libtpu: 0.0.40
codegen_flags: <defaults>
</compile_context>

<pallas_src>
import jax
import jax.numpy as jnp
from jax.experimental import pallas as pl
from jax.experimental.pallas import tpu as pltpu


# --------------------------------------------------------------------------
# Pallas kernel: embedding gather + all LSTM layers, single gridless call.
# --------------------------------------------------------------------------
def _encoder_kernel(tok_ref, embw_ref, whh0_ref, b0_ref, wcat_ref, br_ref,
                    y_ref, h_out_ref, c_out_ref):
    """Fused embedding + multi-layer LSTM with a layer/time wavefront.

    tok_ref  : (Bp, T)  int32 token ids, batch padded to a sublane group
    embw_ref : (Vp, 4H) precomputed emb @ W_ih0 (gate cols [i|f|o|g], V padded)
    whh0_ref : (H, 4H)  layer-0 recurrent weights
    b0_ref   : (1, 4H)  layer-0 folded bias
    wcat_ref : (L-1, 2H, 4H) layers 1..L-1: [[W_ih];[W_hh]] pre-concatenated
    br_ref   : (L-1, 1, 4H)  layers 1..L-1 folded biases
    y_ref    : (B, T*H)  final-layer hidden sequence (lane-dense slab)
    h_out/c_out : (L, B, H) clamped final states
    """
    n_layers, B, H = h_out_ref.shape
    Bp, T = tok_ref.shape

    # ---- fused embedding gather + layer-0 input projection -----------------
    # one-hot(token) @ (emb @ W_ih0) == embedding lookup followed by x @ W_ih.
    # No recurrence dependency: all T matmuls are independent of the wavefront
    # and get hoisted/overlapped by the scheduler.
    embw = embw_ref[...]                                        # (Vp, 4H)
    b0 = b0_ref[...]                                            # (1, 4H)
    Vp = embw.shape[0]
    lane_iota = jax.lax.broadcasted_iota(jnp.int32, (Bp, Vp), 1)  # hoisted once
    g0_pre = []
    for t in range(T):
        onehot = (lane_iota == tok_ref[:, t:t + 1]).astype(jnp.float32)
        g0_pre.append(
            jnp.dot(onehot, embw, preferred_element_type=jnp.float32) + b0)

    whh0 = whh0_ref[...]                                        # (H, 4H)
    b_rest = [br_ref[l] for l in range(n_layers - 1)]           # (1, 4H) each

    def lstm_cell(g, c_prev):
        # gate cols [i|f|o|g]: one sigmoid over 3H contiguous lanes, one tanh.
        sig = jax.nn.sigmoid(g[:, :3 * H])
        cand = jnp.tanh(g[:, 3 * H:])
        c_new = sig[:, H:2 * H] * c_prev + sig[:, :H] * cand
        h_new = sig[:, 2 * H:] * jnp.tanh(c_new)
        return h_new, c_new

    zero = jnp.zeros((Bp, H), jnp.float32)
    h = [zero] * n_layers
    c = [zero] * n_layers

    # ---- wavefront over (layer, time): step s handles {(l, t = s - l)} -----
    # Descending l inside a step so layer l reads h[l-1] (time t, produced at
    # step s-1) BEFORE layer l-1 overwrites it with time t+1 this step.
    for s in range(T + n_layers - 1):
        for l in range(min(n_layers - 1, s), -1, -1):
            t = s - l
            if t < 0 or t >= T:
                continue
            if l == 0:
                # input projection already hoisted into g0_pre; only h @ W_hh
                # remains on the recurrent path.
                g = g0_pre[t] + jnp.dot(h[0], whh0,
                                        preferred_element_type=jnp.float32)
            else:
                # ONE fused MXU push per (layer, t): [x_t | h_{t-1}] @ W_cat.
                xin = jnp.concatenate([h[l - 1], h[l]], axis=1)   # (Bp, 2H)
                g = jnp.dot(xin, wcat_ref[l - 1],
                            preferred_element_type=jnp.float32) + b_rest[l - 1]
            h[l], c[l] = lstm_cell(g, c[l])

            if l == n_layers - 1:
                # static lane-offset store into the lane-dense (B, T*H) slab
                y_ref[:, t * H:(t + 1) * H] = h[l][:B, :]
            if t == T - 1:
                # layer l finishes: write its clamped final states immediately
                h_out_ref[l] = jnp.clip(h[l], -50.0, 50.0)[:B, :]
                c_out_ref[l] = jnp.clip(c[l], -50.0, 50.0)[:B, :]


def _encoder_lstm_pallas(tok_padded, params, *, T, B, H, n_layers):
    vmem = pl.BlockSpec(memory_space=pltpu.MemorySpace.VMEM)
    return pl.pallas_call(
        _encoder_kernel,
        out_shape=(
            jax.ShapeDtypeStruct((B, T * H), jnp.float32),
            jax.ShapeDtypeStruct((n_layers, B, H), jnp.float32),
            jax.ShapeDtypeStruct((n_layers, B, H), jnp.float32),
        ),
        in_specs=[vmem] * 6,
        out_specs=(vmem, vmem, vmem),
    )(tok_padded, params["emb_wih0"], params["w_hh0"], params["b0"],
      params["w_cat_rest"], params["b_rest"])


# --------------------------------------------------------------------------
# Parameter construction / layout conversion
# --------------------------------------------------------------------------
def _reorder_gate_rows(w):
    """PyTorch row blocks [i; f; g; o] -> kernel order [i; f; o; g]."""
    i, f, g, o = jnp.split(w, 4, axis=0)
    return jnp.concatenate([i, f, o, g], axis=0)


def _convert_lstm_layer(w_ih, w_hh, b_ih, b_hh, H):
    """PyTorch ((4H, Din), rows [i;f;g;o]) -> ((Din, 4H), cols [i|f|o|g]);
    biases folded (b_ih + b_hh)."""
    w_ih_k = _reorder_gate_rows(w_ih).T                         # (Din, 4H)
    w_hh_k = _reorder_gate_rows(w_hh).T                         # (H,  4H)
    b_k = _reorder_gate_rows((b_ih + b_hh).reshape(4, H)).reshape(1, 4 * H)
    return w_ih_k, w_hh_k, b_k


def init_encoder_params(key, src_vocab_size, embedding_size, hidden_size,
                        n_layers=4, padding_idx=2):
    """Mirrors Encoder.initialization(): uniform(-0.1, 0.1) weights, zero
    biases, zeroed padding row."""
    assert n_layers >= 2
    H = hidden_size
    keys = jax.random.split(key, 1 + 2 * n_layers)
    emb = jax.random.uniform(keys[0], (src_vocab_size, embedding_size),
                             jnp.float32, -0.1, 0.1)
    emb = emb.at[padding_idx].set(0.0)

    def make_layer(k_ih, k_hh, d_in):
        w_ih = jax.random.uniform(k_ih, (4 * H, d_in), jnp.float32, -0.1, 0.1)
        w_hh = jax.random.uniform(k_hh, (4 * H, H), jnp.float32, -0.1, 0.1)
        zb = jnp.zeros((4 * H,), jnp.float32)
        return _convert_lstm_layer(w_ih, w_hh, zb, zb, H)

    w0, wh0, b0 = make_layer(keys[1], keys[2], embedding_size)
    rest = [make_layer(keys[1 + 2 * l], keys[2 + 2 * l], H)
            for l in range(1, n_layers)]

    # Fused gather table: one-hot(token) @ emb_wih0 == embedding + x @ W_ih0.
    # Vocab padded to a sublane multiple so the kernel's K dim is 8-aligned;
    # padded rows are zero (tokens never reference them).
    Vp = ((src_vocab_size + 7) // 8) * 8
    emb_wih0 = jnp.zeros((Vp, 4 * H), jnp.float32).at[:src_vocab_size].set(
        emb @ w0)

    # Layers 1..L-1: pre-concatenate [[W_ih];[W_hh]] for the fused per-step
    # [x_t | h_{t-1}] matmul.
    w_cat_rest = jnp.stack(
        [jnp.concatenate([r[0], r[1]], axis=0) for r in rest])  # (L-1, 2H, 4H)
    b_rest = jnp.stack([r[2] for r in rest])                    # (L-1, 1, 4H)

    return {
        "embedding": emb,                       # (V, E)    — reference path
        "w_ih0": w0,                            # (E, 4H)   — reference path
        "w_hh0": wh0,                           # (H, 4H)
        "b0": b0,                               # (1, 4H)
        "emb_wih0": emb_wih0,                   # (Vp, 4H)  — kernel-only table
        "w_cat_rest": w_cat_rest,               # (L-1, 2H, 4H)
        "b_rest": b_rest,                       # (L-1, 1, 4H)
    }


# --------------------------------------------------------------------------
# Forward pass (PyTorch-shaped in/out)
# --------------------------------------------------------------------------
@jax.jit
def encoder_forward(params, x_tokens):
    """x_tokens: (B, T) int32 token ids -> (outputs, hidden, cell)."""
    B, T = x_tokens.shape
    H = params["w_hh0"].shape[0]
    n_layers = params["w_cat_rest"].shape[0] + 1

    # Only wrapper op: pad the (tiny, int32) token batch to a full sublane
    # group.  Padded rows get a zero embedding and never leave the kernel.
    Bp = ((B + 7) // 8) * 8
    tok = x_tokens.astype(jnp.int32)
    if Bp != B:
        tok = jnp.pad(tok, ((0, Bp - B), (0, 0)))

    y_flat, hidden, cell = _encoder_lstm_pallas(
        tok, params, T=T, B=B, H=H, n_layers=n_layers)

    # Trailing-dim split: metadata-only reshape, no data movement.
    return y_flat.reshape(B, T, H), hidden, cell


# --------------------------------------------------------------------------
# Pure-JAX reference (uses the non-fused weights) for correctness checking
# --------------------------------------------------------------------------
@jax.jit
def _encoder_forward_ref(params, x_tokens):
    emb = params["embedding"]
    H = params["w_hh0"].shape[0]
    n_layers = params["w_cat_rest"].shape[0] + 1
    embed_x = jnp.take(emb, x_tokens, axis=0)          # (B, T, E)
    B, T, _ = embed_x.shape

    def layer(x_bt, w_ih, w_hh, b):
        h = jnp.zeros((B, H), jnp.float32)
        c = jnp.zeros((B, H), jnp.float32)
        ys = []
        for t in range(T):
            g = x_bt[:, t, :] @ w_ih + h @ w_hh + b
            i = jax.nn.sigmoid(g[:, :H])
            f = jax.nn.sigmoid(g[:, H:2 * H])
            o = jax.nn.sigmoid(g[:, 2 * H:3 * H])
            cand = jnp.tanh(g[:, 3 * H:])
            c = f * c + i * cand
            h = o * jnp.tanh(c)
            ys.append(h)
        return jnp.stack(ys, axis=1), h, c

    hs, cs = [], []
    x, h, c = layer(embed_x, params["w_ih0"], params["w_hh0"], params["b0"])
    hs.append(h); cs.append(c)
    for l in range(n_layers - 1):
        w_cat = params["w_cat_rest"][l]
        x, h, c = layer(x, w_cat[:H], w_cat[H:], params["b_rest"][l])
        hs.append(h); cs.append(c)
    hidden = jnp.clip(jnp.stack(hs, 0), -50.0, 50.0)
    cell = jnp.clip(jnp.stack(cs, 0), -50.0, 50.0)
    return x, hidden, cell


if __name__ == "__main__":
    SRC_VOCAB = 20
    EMBED = 16
    HIDDEN = 32
    BATCH = 2
    SEQ = 8
    N_LAYERS = 4
    PAD_IDX = 2

    key = jax.random.PRNGKey(0)
    pkey, xkey = jax.random.split(key)
    params = init_encoder_params(pkey, SRC_VOCAB, EMBED, HIDDEN,
                                 n_layers=N_LAYERS, padding_idx=PAD_IDX)
    x = jax.random.randint(xkey, (BATCH, SEQ), 0, SRC_VOCAB, dtype=jnp.int32)

    outputs, hidden, cell = encoder_forward(params, x)
    jax.block_until_ready((outputs, hidden, cell))

    assert outputs.shape == (BATCH, SEQ, HIDDEN)
    assert hidden.shape == (N_LAYERS, BATCH, HIDDEN)
    assert cell.shape == (N_LAYERS, BATCH, HIDDEN)
    assert bool(jnp.all(jnp.abs(hidden) <= 50.0))
    assert bool(jnp.all(jnp.abs(cell) <= 50.0))

    # Numerical parity against a pure-JAX reference of the same forward pass.
    ref_out, ref_hid, ref_cell = _encoder_forward_ref(params, x)
    assert bool(jnp.allclose(outputs, ref_out, atol=1e-3, rtol=1e-3))
    assert bool(jnp.allclose(hidden, ref_hid, atol=1e-3, rtol=1e-3))
    assert bool(jnp.allclose(cell, ref_cell, atol=1e-3, rtol=1e-3))

    print("KERNEL_OK")
</pallas_src>

<mosaic_0001>
module attributes {stable_mosaic.version = 11 : i64} {
  func.func @_encoder_kernel(%arg0: memref<8x8xi32, #tpu.memory_space<vmem>>, %arg1: memref<24x128xf32, #tpu.memory_space<vmem>>, %arg2: memref<32x128xf32, #tpu.memory_space<vmem>>, %arg3: memref<1x128xf32, #tpu.memory_space<vmem>>, %arg4: memref<3x64x128xf32, #tpu.memory_space<vmem>>, %arg5: memref<3x1x128xf32, #tpu.memory_space<vmem>>, %arg6: memref<2x256xf32, #tpu.memory_space<vmem>>, %arg7: memref<4x2x32xf32, #tpu.memory_space<vmem>>, %arg8: memref<4x2x32xf32, #tpu.memory_space<vmem>>) attributes {dimension_semantics = [], scalar_prefetch = 0 : i64, scratch_operands = 0 : i64, tpu.core_type = #tpu.core_type<tc>} {
    %c0 = arith.constant 0 : index
    %c0_0 = arith.constant 0 : index
    %0 = vector.load %arg1[%c0, %c0_0] : memref<24x128xf32, #tpu.memory_space<vmem>>, vector<24x128xf32>
    %c0_1 = arith.constant 0 : index
    %c0_2 = arith.constant 0 : index
    %1 = vector.load %arg3[%c0_1, %c0_2] : memref<1x128xf32, #tpu.memory_space<vmem>>, vector<1x128xf32>
    %2 = tpu.iota {dimensions = array<i32: 1>} : vector<8x24xi32>
    %c0_3 = arith.constant 0 : index
    %c0_4 = arith.constant 0 : index
    %3 = vector.load %arg0[%c0_3, %c0_4] : memref<8x8xi32, #tpu.memory_space<vmem>>, vector<8x1xi32>
    %4 = vector.broadcast %3 : vector<8x1xi32> to vector<8x24xi32>
    %5 = arith.cmpi eq, %2, %4 : vector<8x24xi32>
    %6 = arith.extui %5 : vector<8x24xi1> to vector<8x24xi32>
    %7 = arith.sitofp %6 : vector<8x24xi32> to vector<8x24xf32>
    %cst = arith.constant dense<0.000000e+00> : vector<8x128xf32>
    %8 = tpu.matmul %7, %0, %cst {dimension_numbers = #tpu.dot_dimension_numbers<[1], [0], [0], [1], [0, 0, 1, 1], [], []>} : vector<8x24xf32>, vector<24x128xf32>, vector<8x128xf32> -> vector<8x128xf32>
    %9 = vector.broadcast %1 : vector<1x128xf32> to vector<8x128xf32>
    %10 = arith.addf %8, %9 : vector<8x128xf32>
    %c0_5 = arith.constant 0 : index
    %c1 = arith.constant 1 : index
    %11 = vector.load %arg0[%c0_5, %c1] : memref<8x8xi32, #tpu.memory_space<vmem>>, vector<8x1xi32>
    %12 = vector.broadcast %11 : vector<8x1xi32> to vector<8x24xi32>
    %13 = arith.cmpi eq, %2, %12 : vector<8x24xi32>
    %14 = arith.extui %13 : vector<8x24xi1> to vector<8x24xi32>
    %15 = arith.sitofp %14 : vector<8x24xi32> to vector<8x24xf32>
    %cst_6 = arith.constant dense<0.000000e+00> : vector<8x128xf32>
    %16 = tpu.matmul %15, %0, %cst_6 {dimension_numbers = #tpu.dot_dimension_numbers<[1], [0], [0], [1], [0, 0, 1, 1], [], []>} : vector<8x24xf32>, vector<24x128xf32>, vector<8x128xf32> -> vector<8x128xf32>
    %17 = vector.broadcast %1 : vector<1x128xf32> to vector<8x128xf32>
    %18 = arith.addf %16, %17 : vector<8x128xf32>
    %c0_7 = arith.constant 0 : index
    %c2 = arith.constant 2 : index
    %19 = vector.load %arg0[%c0_7, %c2] : memref<8x8xi32, #tpu.memory_space<vmem>>, vector<8x1xi32>
    %20 = vector.broadcast %19 : vector<8x1xi32> to vector<8x24xi32>
    %21 = arith.cmpi eq, %2, %20 : vector<8x24xi32>
    %22 = arith.extui %21 : vector<8x24xi1> to vector<8x24xi32>
    %23 = arith.sitofp %22 : vector<8x24xi32> to vector<8x24xf32>
    %cst_8 = arith.constant dense<0.000000e+00> : vector<8x128xf32>
    %24 = tpu.matmul %23, %0, %cst_8 {dimension_numbers = #tpu.dot_dimension_numbers<[1], [0], [0], [1], [0, 0, 1, 1], [], []>} : vector<8x24xf32>, vector<24x128xf32>, vector<8x128xf32> -> vector<8x128xf32>
    %25 = vector.broadcast %1 : vector<1x128xf32> to vector<8x128xf32>
    %26 = arith.addf %24, %25 : vector<8x128xf32>
    %c0_9 = arith.constant 0 : index
    %c3 = arith.constant 3 : index
    %27 = vector.load %arg0[%c0_9, %c3] : memref<8x8xi32, #tpu.memory_space<vmem>>, vector<8x1xi32>
    %28 = vector.broadcast %27 : vector<8x1xi32> to vector<8x24xi32>
    %29 = arith.cmpi eq, %2, %28 : vector<8x24xi32>
    %30 = arith.extui %29 : vector<8x24xi1> to vector<8x24xi32>
    %31 = arith.sitofp %30 : vector<8x24xi32> to vector<8x24xf32>
    %cst_10 = arith.constant dense<0.000000e+00> : vector<8x128xf32>
    %32 = tpu.matmul %31, %0, %cst_10 {dimension_numbers = #tpu.dot_dimension_numbers<[1], [0], [0], [1], [0, 0, 1, 1], [], []>} : vector<8x24xf32>, vector<24x128xf32>, vector<8x128xf32> -> vector<8x128xf32>
    %33 = vector.broadcast %1 : vector<1x128xf32> to vector<8x128xf32>
    %34 = arith.addf %32, %33 : vector<8x128xf32>
    %c0_11 = arith.constant 0 : index
    %c4 = arith.constant 4 : index
    %35 = vector.load %arg0[%c0_11, %c4] : memref<8x8xi32, #tpu.memory_space<vmem>>, vector<8x1xi32>
    %36 = vector.broadcast %35 : vector<8x1xi32> to vector<8x24xi32>
    %37 = arith.cmpi eq, %2, %36 : vector<8x24xi32>
    %38 = arith.extui %37 : vector<8x24xi1> to vector<8x24xi32>
    %39 = arith.sitofp %38 : vector<8x24xi32> to vector<8x24xf32>
    %cst_12 = arith.constant dense<0.000000e+00> : vector<8x128xf32>
    %40 = tpu.matmul %39, %0, %cst_12 {dimension_numbers = #tpu.dot_dimension_numbers<[1], [0], [0], [1], [0, 0, 1, 1], [], []>} : vector<8x24xf32>, vector<24x128xf32>, vector<8x128xf32> -> vector<8x128xf32>
    %41 = vector.broadcast %1 : vector<1x128xf32> to vector<8x128xf32>
    %42 = arith.addf %40, %41 : vector<8x128xf32>
    %c0_13 = arith.constant 0 : index
    %c5 = arith.constant 5 : index
    %43 = vector.load %arg0[%c0_13, %c5] : memref<8x8xi32, #tpu.memory_space<vmem>>, vector<8x1xi32>
    %44 = vector.broadcast %43 : vector<8x1xi32> to vector<8x24xi32>
    %45 = arith.cmpi eq, %2, %44 : vector<8x24xi32>
    %46 = arith.extui %45 : vector<8x24xi1> to vector<8x24xi32>
    %47 = arith.sitofp %46 : vector<8x24xi32> to vector<8x24xf32>
    %cst_14 = arith.constant dense<0.000000e+00> : vector<8x128xf32>
    %48 = tpu.matmul %47, %0, %cst_14 {dimension_numbers = #tpu.dot_dimension_numbers<[1], [0], [0], [1], [0, 0, 1, 1], [], []>} : vector<8x24xf32>, vector<24x128xf32>, vector<8x128xf32> -> vector<8x128xf32>
    %49 = vector.broadcast %1 : vector<1x128xf32> to vector<8x128xf32>
    %50 = arith.addf %48, %49 : vector<8x128xf32>
    %c0_15 = arith.constant 0 : index
    %c6 = arith.constant 6 : index
    %51 = vector.load %arg0[%c0_15, %c6] : memref<8x8xi32, #tpu.memory_space<vmem>>, vector<8x1xi32>
    %52 = vector.broadcast %51 : vector<8x1xi32> to vector<8x24xi32>
    %53 = arith.cmpi eq, %2, %52 : vector<8x24xi32>
    %54 = arith.extui %53 : vector<8x24xi1> to vector<8x24xi32>
    %55 = arith.sitofp %54 : vector<8x24xi32> to vector<8x24xf32>
    %cst_16 = arith.constant dense<0.000000e+00> : vector<8x128xf32>
    %56 = tpu.matmul %55, %0, %cst_16 {dimension_numbers = #tpu.dot_dimension_numbers<[1], [0], [0], [1], [0, 0, 1, 1], [], []>} : vector<8x24xf32>, vector<24x128xf32>, vector<8x128xf32> -> vector<8x128xf32>
    %57 = vector.broadcast %1 : vector<1x128xf32> to vector<8x128xf32>
    %58 = arith.addf %56, %57 : vector<8x128xf32>
    %c0_17 = arith.constant 0 : index
    %c7 = arith.constant 7 : index
    %59 = vector.load %arg0[%c0_17, %c7] : memref<8x8xi32, #tpu.memory_space<vmem>>, vector<8x1xi32>
    %60 = vector.broadcast %59 : vector<8x1xi32> to vector<8x24xi32>
    %61 = arith.cmpi eq, %2, %60 : vector<8x24xi32>
    %62 = arith.extui %61 : vector<8x24xi1> to vector<8x24xi32>
    %63 = arith.sitofp %62 : vector<8x24xi32> to vector<8x24xf32>
    %cst_18 = arith.constant dense<0.000000e+00> : vector<8x128xf32>
    %64 = tpu.matmul %63, %0, %cst_18 {dimension_numbers = #tpu.dot_dimension_numbers<[1], [0], [0], [1], [0, 0, 1, 1], [], []>} : vector<8x24xf32>, vector<24x128xf32>, vector<8x128xf32> -> vector<8x128xf32>
    %65 = vector.broadcast %1 : vector<1x128xf32> to vector<8x128xf32>
    %66 = arith.addf %64, %65 : vector<8x128xf32>
    %c0_19 = arith.constant 0 : index
    %c0_20 = arith.constant 0 : index
    %67 = vector.load %arg2[%c0_19, %c0_20] : memref<32x128xf32, #tpu.memory_space<vmem>>, vector<32x128xf32>
    %c0_21 = arith.constant 0 : index
    %c0_22 = arith.constant 0 : index
    %c0_23 = arith.constant 0 : index
    %68 = vector.load %arg5[%c0_21, %c0_22, %c0_23] : memref<3x1x128xf32, #tpu.memory_space<vmem>>, vector<1x1x128xf32>
    %69 = vector.shape_cast %68 : vector<1x1x128xf32> to vector<1x128xf32>
    %c1_24 = arith.constant 1 : index
    %c0_25 = arith.constant 0 : index
    %c0_26 = arith.constant 0 : index
    %70 = vector.load %arg5[%c1_24, %c0_25, %c0_26] : memref<3x1x128xf32, #tpu.memory_space<vmem>>, vector<1x1x128xf32>
    %71 = vector.shape_cast %70 : vector<1x1x128xf32> to vector<1x128xf32>
    %c2_27 = arith.constant 2 : index
    %c0_28 = arith.constant 0 : index
    %c0_29 = arith.constant 0 : index
    %72 = vector.load %arg5[%c2_27, %c0_28, %c0_29] : memref<3x1x128xf32, #tpu.memory_space<vmem>>, vector<1x1x128xf32>
    %73 = vector.shape_cast %72 : vector<1x1x128xf32> to vector<1x128xf32>
    %cst_30 = arith.constant 0.000000e+00 : f32
    %74 = vector.broadcast %cst_30 : f32 to vector<8x32xf32>
    %cst_31 = arith.constant dense<0.000000e+00> : vector<8x128xf32>
    %75 = tpu.matmul %74, %67, %cst_31 {dimension_numbers = #tpu.dot_dimension_numbers<[1], [0], [0], [1], [0, 0, 1, 1], [], []>} : vector<8x32xf32>, vector<32x128xf32>, vector<8x128xf32> -> vector<8x128xf32>
    %76 = arith.addf %10, %75 : vector<8x128xf32>
    %77 = vector.extract_strided_slice %76 {offsets = [0, 0], sizes = [8, 96], strides = [1, 1]} : vector<8x128xf32> to vector<8x96xf32>
    %78 = arith.negf %77 : vector<8x96xf32>
    %79 = math.exp %78 : vector<8x96xf32>
    %cst_32 = arith.constant 1.000000e+00 : f32
    %80 = vector.broadcast %cst_32 : f32 to vector<8x96xf32>
    %81 = arith.addf %80, %79 : vector<8x96xf32>
    %82 = arith.divf %80, %81 : vector<8x96xf32>
    %83 = vector.extract_strided_slice %76 {offsets = [0, 96], sizes = [8, 32], strides = [1, 1]} : vector<8x128xf32> to vector<8x32xf32>
    %84 = math.tanh %83 : vector<8x32xf32>
    %85 = vector.extract_strided_slice %82 {offsets = [0, 32], sizes = [8, 32], strides = [1, 1]} : vector<8x96xf32> to vector<8x32xf32>
    %86 = arith.mulf %85, %74 : vector<8x32xf32>
    %87 = vector.extract_strided_slice %82 {offsets = [0, 0], sizes = [8, 32], strides = [1, 1]} : vector<8x96xf32> to vector<8x32xf32>
    %88 = arith.mulf %87, %84 : vector<8x32xf32>
    %89 = arith.addf %86, %88 : vector<8x32xf32>
    %90 = vector.extract_strided_slice %82 {offsets = [0, 64], sizes = [8, 32], strides = [1, 1]} : vector<8x96xf32> to vector<8x32xf32>
    %91 = math.tanh %89 : vector<8x32xf32>
    %92 = arith.mulf %90, %91 : vector<8x32xf32>
    %93 = tpu.concatenate %92, %74 in 1 : vector<8x32xf32>, vector<8x32xf32> -> vector<8x64xf32>
    %c0_33 = arith.constant 0 : index
    %c0_34 = arith.constant 0 : index
    %c0_35 = arith.constant 0 : index
    %94 = vector.load %arg4[%c0_33, %c0_34, %c0_35] : memref<3x64x128xf32, #tpu.memory_space<vmem>>, vector<1x64x128xf32>
    %95 = vector.shape_cast %94 : vector<1x64x128xf32> to vector<64x128xf32>
    %cst_36 = arith.constant dense<0.000000e+00> : vector<8x128xf32>
    %96 = tpu.matmul %93, %95, %cst_36 {dimension_numbers = #tpu.dot_dimension_numbers<[1], [0], [0], [1], [0, 0, 1, 1], [], []>} : vector<8x64xf32>, vector<64x128xf32>, vector<8x128xf32> -> vector<8x128xf32>
    %97 = vector.broadcast %69 : vector<1x128xf32> to vector<8x128xf32>
    %98 = arith.addf %96, %97 : vector<8x128xf32>
    %99 = vector.extract_strided_slice %98 {offsets = [0, 0], sizes = [8, 96], strides = [1, 1]} : vector<8x128xf32> to vector<8x96xf32>
    %100 = arith.negf %99 : vector<8x96xf32>
    %101 = math.exp %100 : vector<8x96xf32>
    %cst_37 = arith.constant 1.000000e+00 : f32
    %102 = vector.broadcast %cst_37 : f32 to vector<8x96xf32>
    %103 = arith.addf %102, %101 : vector<8x96xf32>
    %104 = arith.divf %102, %103 : vector<8x96xf32>
    %105 = vector.extract_strided_slice %98 {offsets = [0, 96], sizes = [8, 32], strides = [1, 1]} : vector<8x128xf32> to vector<8x32xf32>
    %106 = math.tanh %105 : vector<8x32xf32>
    %107 = vector.extract_strided_slice %104 {offsets = [0, 32], sizes = [8, 32], strides = [1, 1]} : vector<8x96xf32> to vector<8x32xf32>
    %108 = arith.mulf %107, %74 : vector<8x32xf32>
    %109 = vector.extract_strided_slice %104 {offsets = [0, 0], sizes = [8, 32], strides = [1, 1]} : vector<8x96xf32> to vector<8x32xf32>
    %110 = arith.mulf %109, %106 : vector<8x32xf32>
    %111 = arith.addf %108, %110 : vector<8x32xf32>
    %112 = vector.extract_strided_slice %104 {offsets = [0, 64], sizes = [8, 32], strides = [1, 1]} : vector<8x96xf32> to vector<8x32xf32>
    %113 = math.tanh %111 : vector<8x32xf32>
    %114 = arith.mulf %112, %113 : vector<8x32xf32>
    %cst_38 = arith.constant dense<0.000000e+00> : vector<8x128xf32>
    %115 = tpu.matmul %92, %67, %cst_38 {dimension_numbers = #tpu.dot_dimension_numbers<[1], [0], [0], [1], [0, 0, 1, 1], [], []>} : vector<8x32xf32>, vector<32x128xf32>, vector<8x128xf32> -> vector<8x128xf32>
    %116 = arith.addf %18, %115 : vector<8x128xf32>
    %117 = vector.extract_strided_slice %116 {offsets = [0, 0], sizes = [8, 96], strides = [1, 1]} : vector<8x128xf32> to vector<8x96xf32>
    %118 = arith.negf %117 : vector<8x96xf32>
    %119 = math.exp %118 : vector<8x96xf32>
    %cst_39 = arith.constant 1.000000e+00 : f32
    %120 = vector.broadcast %cst_39 : f32 to vector<8x96xf32>
    %121 = arith.addf %120, %119 : vector<8x96xf32>
    %122 = arith.divf %120, %121 : vector<8x96xf32>
    %123 = vector.extract_strided_slice %116 {offsets = [0, 96], sizes = [8, 32], strides = [1, 1]} : vector<8x128xf32> to vector<8x32xf32>
    %124 = math.tanh %123 : vector<8x32xf32>
    %125 = vector.extract_strided_slice %122 {offsets = [0, 32], sizes = [8, 32], strides = [1, 1]} : vector<8x96xf32> to vector<8x32xf32>
    %126 = arith.mulf %125, %89 : vector<8x32xf32>
    %127 = vector.extract_strided_slice %122 {offsets = [0, 0], sizes = [8, 32], strides = [1, 1]} : vector<8x96xf32> to vector<8x32xf32>
    %128 = arith.mulf %127, %124 : vector<8x32xf32>
    %129 = arith.addf %126, %128 : vector<8x32xf32>
    %130 = vector.extract_strided_slice %122 {offsets = [0, 64], sizes = [8, 32], strides = [1, 1]} : vector<8x96xf32> to vector<8x32xf32>
    %131 = math.tanh %129 : vector<8x32xf32>
    %132 = arith.mulf %130, %131 : vector<8x32xf32>
    %133 = tpu.concatenate %114, %74 in 1 : vector<8x32xf32>, vector<8x32xf32> -> vector<8x64xf32>
    %c1_40 = arith.constant 1 : index
    %c0_41 = arith.constant 0 : index
    %c0_42 = arith.constant 0 : index
    %134 = vector.load %arg4[%c1_40, %c0_41, %c0_42] : memref<3x64x128xf32, #tpu.memory_space<vmem>>, vector<1x64x128xf32>
    %135 = vector.shape_cast %134 : vector<1x64x128xf32> to vector<64x128xf32>
    %cst_43 = arith.constant dense<0.000000e+00> : vector<8x128xf32>
    %136 = tpu.matmul %133, %135, %cst_43 {dimension_numbers = #tpu.dot_dimension_numbers<[1], [0], [0], [1], [0, 0, 1, 1], [], []>} : vector<8x64xf32>, vector<64x128xf32>, vector<8x128xf32> -> vector<8x128xf32>
    %137 = vector.broadcast %71 : vector<1x128xf32> to vector<8x128xf32>
    %138 = arith.addf %136, %137 : vector<8x128xf32>
    %139 = vector.extract_strided_slice %138 {offsets = [0, 0], sizes = [8, 96], strides = [1, 1]} : vector<8x128xf32> to vector<8x96xf32>
    %140 = arith.negf %139 : vector<8x96xf32>
    %141 = math.exp %140 : vector<8x96xf32>
    %cst_44 = arith.constant 1.000000e+00 : f32
    %142 = vector.broadcast %cst_44 : f32 to vector<8x96xf32>
    %143 = arith.addf %142, %141 : vector<8x96xf32>
    %144 = arith.divf %142, %143 : vector<8x96xf32>
    %145 = vector.extract_strided_slice %138 {offsets = [0, 96], sizes = [8, 32], strides = [1, 1]} : vector<8x128xf32> to vector<8x32xf32>
    %146 = math.tanh %145 : vector<8x32xf32>
    %147 = vector.extract_strided_slice %144 {offsets = [0, 32], sizes = [8, 32], strides = [1, 1]} : vector<8x96xf32> to vector<8x32xf32>
    %148 = arith.mulf %147, %74 : vector<8x32xf32>
    %149 = vector.extract_strided_slice %144 {offsets = [0, 0], sizes = [8, 32], strides = [1, 1]} : vector<8x96xf32> to vector<8x32xf32>
    %150 = arith.mulf %149, %146 : vector<8x32xf32>
    %151 = arith.addf %148, %150 : vector<8x32xf32>
    %152 = vector.extract_strided_slice %144 {offsets = [0, 64], sizes = [8, 32], strides = [1, 1]} : vector<8x96xf32> to vector<8x32xf32>
    %153 = math.tanh %151 : vector<8x32xf32>
    %154 = arith.mulf %152, %153 : vector<8x32xf32>
    %155 = tpu.concatenate %132, %114 in 1 : vector<8x32xf32>, vector<8x32xf32> -> vector<8x64xf32>
    %c0_45 = arith.constant 0 : index
    %c0_46 = arith.constant 0 : index
    %c0_47 = arith.constant 0 : index
    %156 = vector.load %arg4[%c0_45, %c0_46, %c0_47] : memref<3x64x128xf32, #tpu.memory_space<vmem>>, vector<1x64x128xf32>
    %157 = vector.shape_cast %156 : vector<1x64x128xf32> to vector<64x128xf32>
    %cst_48 = arith.constant dense<0.000000e+00> : vector<8x128xf32>
    %158 = tpu.matmul %155, %157, %cst_48 {dimension_numbers = #tpu.dot_dimension_numbers<[1], [0], [0], [1], [0, 0, 1, 1], [], []>} : vector<8x64xf32>, vector<64x128xf32>, vector<8x128xf32> -> vector<8x128xf32>
    %159 = vector.broadcast %69 : vector<1x128xf32> to vector<8x128xf32>
    %160 = arith.addf %158, %159 : vector<8x128xf32>
    %161 = vector.extract_strided_slice %160 {offsets = [0, 0], sizes = [8, 96], strides = [1, 1]} : vector<8x128xf32> to vector<8x96xf32>
    %162 = arith.negf %161 : vector<8x96xf32>
    %163 = math.exp %162 : vector<8x96xf32>
    %cst_49 = arith.constant 1.000000e+00 : f32
    %164 = vector.broadcast %cst_49 : f32 to vector<8x96xf32>
    %165 = arith.addf %164, %163 : vector<8x96xf32>
    %166 = arith.divf %164, %165 : vector<8x96xf32>
    %167 = vector.extract_strided_slice %160 {offsets = [0, 96], sizes = [8, 32], strides = [1, 1]} : vector<8x128xf32> to vector<8x32xf32>
    %168 = math.tanh %167 : vector<8x32xf32>
    %169 = vector.extract_strided_slice %166 {offsets = [0, 32], sizes = [8, 32], strides = [1, 1]} : vector<8x96xf32> to vector<8x32xf32>
    %170 = arith.mulf %169, %111 : vector<8x32xf32>
    %171 = vector.extract_strided_slice %166 {offsets = [0, 0], sizes = [8, 32], strides = [1, 1]} : vector<8x96xf32> to vector<8x32xf32>
    %172 = arith.mulf %171, %168 : vector<8x32xf32>
    %173 = arith.addf %170, %172 : vector<8x32xf32>
    %174 = vector.extract_strided_slice %166 {offsets = [0, 64], sizes = [8, 32], strides = [1, 1]} : vector<8x96xf32> to vector<8x32xf32>
    %175 = math.tanh %173 : vector<8x32xf32>
    %176 = arith.mulf %174, %175 : vector<8x32xf32>
    %cst_50 = arith.constant dense<0.000000e+00> : vector<8x128xf32>
    %177 = tpu.matmul %132, %67, %cst_50 {dimension_numbers = #tpu.dot_dimension_numbers<[1], [0], [0], [1], [0, 0, 1, 1], [], []>} : vector<8x32xf32>, vector<32x128xf32>, vector<8x128xf32> -> vector<8x128xf32>
    %178 = arith.addf %26, %177 : vector<8x128xf32>
    %179 = vector.extract_strided_slice %178 {offsets = [0, 0], sizes = [8, 96], strides = [1, 1]} : vector<8x128xf32> to vector<8x96xf32>
    %180 = arith.negf %179 : vector<8x96xf32>
    %181 = math.exp %180 : vector<8x96xf32>
    %cst_51 = arith.constant 1.000000e+00 : f32
    %182 = vector.broadcast %cst_51 : f32 to vector<8x96xf32>
    %183 = arith.addf %182, %181 : vector<8x96xf32>
    %184 = arith.divf %182, %183 : vector<8x96xf32>
    %185 = vector.extract_strided_slice %178 {offsets = [0, 96], sizes = [8, 32], strides = [1, 1]} : vector<8x128xf32> to vector<8x32xf32>
    %186 = math.tanh %185 : vector<8x32xf32>
    %187 = vector.extract_strided_slice %184 {offsets = [0, 32], sizes = [8, 32], strides = [1, 1]} : vector<8x96xf32> to vector<8x32xf32>
    %188 = arith.mulf %187, %129 : vector<8x32xf32>
    %189 = vector.extract_strided_slice %184 {offsets = [0, 0], sizes = [8, 32], strides = [1, 1]} : vector<8x96xf32> to vector<8x32xf32>
    %190 = arith.mulf %189, %186 : vector<8x32xf32>
    %191 = arith.addf %188, %190 : vector<8x32xf32>
    %192 = vector.extract_strided_slice %184 {offsets = [0, 64], sizes = [8, 32], strides = [1, 1]} : vector<8x96xf32> to vector<8x32xf32>
    %193 = math.tanh %191 : vector<8x32xf32>
    %194 = arith.mulf %192, %193 : vector<8x32xf32>
    %195 = tpu.concatenate %154, %74 in 1 : vector<8x32xf32>, vector<8x32xf32> -> vector<8x64xf32>
    %c2_52 = arith.constant 2 : index
    %c0_53 = arith.constant 0 : index
    %c0_54 = arith.constant 0 : index
    %196 = vector.load %arg4[%c2_52, %c0_53, %c0_54] : memref<3x64x128xf32, #tpu.memory_space<vmem>>, vector<1x64x128xf32>
    %197 = vector.shape_cast %196 : vector<1x64x128xf32> to vector<64x128xf32>
    %cst_55 = arith.constant dense<0.000000e+00> : vector<8x128xf32>
    %198 = tpu.matmul %195, %197, %cst_55 {dimension_numbers = #tpu.dot_dimension_numbers<[1], [0], [0], [1], [0, 0, 1, 1], [], []>} : vector<8x64xf32>, vector<64x128xf32>, vector<8x128xf32> -> vector<8x128xf32>
    %199 = vector.broadcast %73 : vector<1x128xf32> to vector<8x128xf32>
    %200 = arith.addf %198, %199 : vector<8x128xf32>
    %201 = vector.extract_strided_slice %200 {offsets = [0, 0], sizes = [8, 96], strides = [1, 1]} : vector<8x128xf32> to vector<8x96xf32>
    %202 = arith.negf %201 : vector<8x96xf32>
    %203 = math.exp %202 : vector<8x96xf32>
    %cst_56 = arith.constant 1.000000e+00 : f32
    %204 = vector.broadcast %cst_56 : f32 to vector<8x96xf32>
    %205 = arith.addf %204, %203 : vector<8x96xf32>
    %206 = arith.divf %204, %205 : vector<8x96xf32>
    %207 = vector.extract_strided_slice %200 {offsets = [0, 96], sizes = [8, 32], strides = [1, 1]} : vector<8x128xf32> to vector<8x32xf32>
    %208 = math.tanh %207 : vector<8x32xf32>
    %209 = vector.extract_strided_slice %206 {offsets = [0, 32], sizes = [8, 32], strides = [1, 1]} : vector<8x96xf32> to vector<8x32xf32>
    %210 = arith.mulf %209, %74 : vector<8x32xf32>
    %211 = vector.extract_strided_slice %206 {offsets = [0, 0], sizes = [8, 32], strides = [1, 1]} : vector<8x96xf32> to vector<8x32xf32>
    %212 = arith.mulf %211, %208 : vector<8x32xf32>
    %213 = arith.addf %210, %212 : vector<8x32xf32>
    %214 = vector.extract_strided_slice %206 {offsets = [0, 64], sizes = [8, 32], strides = [1, 1]} : vector<8x96xf32> to vector<8x32xf32>
    %215 = math.tanh %213 : vector<8x32xf32>
    %216 = arith.mulf %214, %215 : vector<8x32xf32>
    %217 = vector.extract_strided_slice %216 {offsets = [0, 0], sizes = [2, 32], strides = [1, 1]} : vector<8x32xf32> to vector<2x32xf32>
    %c0_57 = arith.constant 0 : index
    %c0_58 = arith.constant 0 : index
    %218 = vector.load %arg6[%c0_57, %c0_58] : memref<2x256xf32, #tpu.memory_space<vmem>>, vector<2x32xf32>
    tpu.vector_store %arg6[%c0_57, %c0_58], %217 {strides = array<i32>} : memref<2x256xf32, #tpu.memory_space<vmem>>, vector<2x32xf32>,
    %219 = tpu.concatenate %176, %154 in 1 : vector<8x32xf32>, vector<8x32xf32> -> vector<8x64xf32>
    %c1_59 = arith.constant 1 : index
    %c0_60 = arith.constant 0 : index
    %c0_61 = arith.constant 0 : index
    %220 = vector.load %arg4[%c1_59, %c0_60, %c0_61] : memref<3x64x128xf32, #tpu.memory_space<vmem>>, vector<1x64x128xf32>
    %221 = vector.shape_cast %220 : vector<1x64x128xf32> to vector<64x128xf32>
    %cst_62 = arith.constant dense<0.000000e+00> : vector<8x128xf32>
    %222 = tpu.matmul %219, %221, %cst_62 {dimension_numbers = #tpu.dot_dimension_numbers<[1], [0], [0], [1], [0, 0, 1, 1], [], []>} : vector<8x64xf32>, vector<64x128xf32>, vector<8x128xf32> -> vector<8x128xf32>
    %223 = vector.broadcast %71 : vector<1x128xf32> to vector<8x128xf32>
    %224 = arith.addf %222, %223 : vector<8x128xf32>
    %225 = vector.extract_strided_slice %224 {offsets = [0, 0], sizes = [8, 96], strides = [1, 1]} : vector<8x128xf32> to vector<8x96xf32>
    %226 = arith.negf %225 : vector<8x96xf32>
    %227 = math.exp %226 : vector<8x96xf32>
    %cst_63 = arith.constant 1.000000e+00 : f32
    %228 = vector.broadcast %cst_63 : f32 to vector<8x96xf32>
    %229 = arith.addf %228, %227 : vector<8x96xf32>
    %230 = arith.divf %228, %229 : vector<8x96xf32>
    %231 = vector.extract_strided_slice %224 {offsets = [0, 96], sizes = [8, 32], strides = [1, 1]} : vector<8x128xf32> to vector<8x32xf32>
    %232 = math.tanh %231 : vector<8x32xf32>
    %233 = vector.extract_strided_slice %230 {offsets = [0, 32], sizes = [8, 32], strides = [1, 1]} : vector<8x96xf32> to vector<8x32xf32>
    %234 = arith.mulf %233, %151 : vector<8x32xf32>
    %235 = vector.extract_strided_slice %230 {offsets = [0, 0], sizes = [8, 32], strides = [1, 1]} : vector<8x96xf32> to vector<8x32xf32>
    %236 = arith.mulf %235, %232 : vector<8x32xf32>
    %237 = arith.addf %234, %236 : vector<8x32xf32>
    %238 = vector.extract_strided_slice %230 {offsets = [0, 64], sizes = [8, 32], strides = [1, 1]} : vector<8x96xf32> to vector<8x32xf32>
    %239 = math.tanh %237 : vector<8x32xf32>
    %240 = arith.mulf %238, %239 : vector<8x32xf32>
    %241 = tpu.concatenate %194, %176 in 1 : vector<8x32xf32>, vector<8x32xf32> -> vector<8x64xf32>
    %c0_64 = arith.constant 0 : index
    %c0_65 = arith.constant 0 : index
    %c0_66 = arith.constant 0 : index
    %242 = vector.load %arg4[%c0_64, %c0_65, %c0_66] : memref<3x64x128xf32, #tpu.memory_space<vmem>>, vector<1x64x128xf32>
    %243 = vector.shape_cast %242 : vector<1x64x128xf32> to vector<64x128xf32>
    %cst_67 = arith.constant dense<0.000000e+00> : vector<8x128xf32>
    %244 = tpu.matmul %241, %243, %cst_67 {dimension_numbers = #tpu.dot_dimension_numbers<[1], [0], [0], [1], [0, 0, 1, 1], [], []>} : vector<8x64xf32>, vector<64x128xf32>, vector<8x128xf32> -> vector<8x128xf32>
    %245 = vector.broadcast %69 : vector<1x128xf32> to vector<8x128xf32>
    %246 = arith.addf %244, %245 : vector<8x128xf32>
    %247 = vector.extract_strided_slice %246 {offsets = [0, 0], sizes = [8, 96], strides = [1, 1]} : vector<8x128xf32> to vector<8x96xf32>
    %248 = arith.negf %247 : vector<8x96xf32>
    %249 = math.exp %248 : vector<8x96xf32>
    %cst_68 = arith.constant 1.000000e+00 : f32
    %250 = vector.broadcast %cst_68 : f32 to vector<8x96xf32>
    %251 = arith.addf %250, %249 : vector<8x96xf32>
    %252 = arith.divf %250, %251 : vector<8x96xf32>
    %253 = vector.extract_strided_slice %246 {offsets = [0, 96], sizes = [8, 32], strides = [1, 1]} : vector<8x128xf32> to vector<8x32xf32>
    %254 = math.tanh %253 : vector<8x32xf32>
    %255 = vector.extract_strided_slice %252 {offsets = [0, 32], sizes = [8, 32], strides = [1, 1]} : vector<8x96xf32> to vector<8x32xf32>
    %256 = arith.mulf %255, %173 : vector<8x32xf32>
    %257 = vector.extract_strided_slice %252 {offsets = [0, 0], sizes = [8, 32], strides = [1, 1]} : vector<8x96xf32> to vector<8x32xf32>
    %258 = arith.mulf %257, %254 : vector<8x32xf32>
    %259 = arith.addf %256, %258 : vector<8x32xf32>
    %260 = vector.extract_strided_slice %252 {offsets = [0, 64], sizes = [8, 32], strides = [1, 1]} : vector<8x96xf32> to vector<8x32xf32>
    %261 = math.tanh %259 : vector<8x32xf32>
    %262 = arith.mulf %260, %261 : vector<8x32xf32>
    %cst_69 = arith.constant dense<0.000000e+00> : vector<8x128xf32>
    %263 = tpu.matmul %194, %67, %cst_69 {dimension_numbers = #tpu.dot_dimension_numbers<[1], [0], [0], [1], [0, 0, 1, 1], [], []>} : vector<8x32xf32>, vector<32x128xf32>, vector<8x128xf32> -> vector<8x128xf32>
    %264 = arith.addf %34, %263 : vector<8x128xf32>
    %265 = vector.extract_strided_slice %264 {offsets = [0, 0], sizes = [8, 96], strides = [1, 1]} : vector<8x128xf32> to vector<8x96xf32>
    %266 = arith.negf %265 : vector<8x96xf32>
    %267 = math.exp %266 : vector<8x96xf32>
    %cst_70 = arith.constant 1.000000e+00 : f32
    %268 = vector.broadcast %cst_70 : f32 to vector<8x96xf32>
    %269 = arith.addf %268, %267 : vector<8x96xf32>
    %270 = arith.divf %268, %269 : vector<8x96xf32>
    %271 = vector.extract_strided_slice %264 {offsets = [0, 96], sizes = [8, 32], strides = [1, 1]} : vector<8x128xf32> to vector<8x32xf32>
    %272 = math.tanh %271 : vector<8x32xf32>
    %273 = vector.extract_strided_slice %270 {offsets = [0, 32], sizes = [8, 32], strides = [1, 1]} : vector<8x96xf32> to vector<8x32xf32>
    %274 = arith.mulf %273, %191 : vector<8x32xf32>
    %275 = vector.extract_strided_slice %270 {offsets = [0, 0], sizes = [8, 32], strides = [1, 1]} : vector<8x96xf32> to vector<8x32xf32>
    %276 = arith.mulf %275, %272 : vector<8x32xf32>
    %277 = arith.addf %274, %276 : vector<8x32xf32>
    %278 = vector.extract_strided_slice %270 {offsets = [0, 64], sizes = [8, 32], strides = [1, 1]} : vector<8x96xf32> to vector<8x32xf32>
    %279 = math.tanh %277 : vector<8x32xf32>
    %280 = arith.mulf %278, %279 : vector<8x32xf32>
    %281 = tpu.concatenate %240, %216 in 1 : vector<8x32xf32>, vector<8x32xf32> -> vector<8x64xf32>
    %c2_71 = arith.constant 2 : index
    %c0_72 = arith.constant 0 : index
    %c0_73 = arith.constant 0 : index
    %282 = vector.load %arg4[%c2_71, %c0_72, %c0_73] : memref<3x64x128xf32, #tpu.memory_space<vmem>>, vector<1x64x128xf32>
    %283 = vector.shape_cast %282 : vector<1x64x128xf32> to vector<64x128xf32>
    %cst_74 = arith.constant dense<0.000000e+00> : vector<8x128xf32>
    %284 = tpu.matmul %281, %283, %cst_74 {dimension_numbers = #tpu.dot_dimension_numbers<[1], [0], [0], [1], [0, 0, 1, 1], [], []>} : vector<8x64xf32>, vector<64x128xf32>, vector<8x128xf32> -> vector<8x128xf32>
    %285 = vector.broadcast %73 : vector<1x128xf32> to vector<8x128xf32>
    %286 = arith.addf %284, %285 : vector<8x128xf32>
    %287 = vector.extract_strided_slice %286 {offsets = [0, 0], sizes = [8, 96], strides = [1, 1]} : vector<8x128xf32> to vector<8x96xf32>
    %288 = arith.negf %287 : vector<8x96xf32>
    %289 = math.exp %288 : vector<8x96xf32>
    %cst_75 = arith.constant 1.000000e+00 : f32
    %290 = vector.broadcast %cst_75 : f32 to vector<8x96xf32>
    %291 = arith.addf %290, %289 : vector<8x96xf32>
    %292 = arith.divf %290, %291 : vector<8x96xf32>
    %293 = vector.extract_strided_slice %286 {offsets = [0, 96], sizes = [8, 32], strides = [1, 1]} : vector<8x128xf32> to vector<8x32xf32>
    %294 = math.tanh %293 : vector<8x32xf32>
    %295 = vector.extract_strided_slice %292 {offsets = [0, 32], sizes = [8, 32], strides = [1, 1]} : vector<8x96xf32> to vector<8x32xf32>
    %296 = arith.mulf %295, %213 : vector<8x32xf32>
    %297 = vector.extract_strided_slice %292 {offsets = [0, 0], sizes = [8, 32], strides = [1, 1]} : vector<8x96xf32> to vector<8x32xf32>
    %298 = arith.mulf %297, %294 : vector<8x32xf32>
    %299 = arith.addf %296, %298 : vector<8x32xf32>
    %300 = vector.extract_strided_slice %292 {offsets = [0, 64], sizes = [8, 32], strides = [1, 1]} : vector<8x96xf32> to vector<8x32xf32>
    %301 = math.tanh %299 : vector<8x32xf32>
    %302 = arith.mulf %300, %301 : vector<8x32xf32>
    %303 = vector.extract_strided_slice %302 {offsets = [0, 0], sizes = [2, 32], strides = [1, 1]} : vector<8x32xf32> to vector<2x32xf32>
    %c0_76 = arith.constant 0 : index
    %c32 = arith.constant 32 : index
    %304 = vector.load %arg6[%c0_76, %c32] : memref<2x256xf32, #tpu.memory_space<vmem>>, vector<2x32xf32>
    tpu.vector_store %arg6[%c0_76, %c32], %303 {strides = array<i32>} : memref<2x256xf32, #tpu.memory_space<vmem>>, vector<2x32xf32>,
    %305 = tpu.concatenate %262, %240 in 1 : vector<8x32xf32>, vector<8x32xf32> -> vector<8x64xf32>
    %c1_77 = arith.constant 1 : index
    %c0_78 = arith.constant 0 : index
    %c0_79 = arith.constant 0 : index
    %306 = vector.load %arg4[%c1_77, %c0_78, %c0_79] : memref<3x64x128xf32, #tpu.memory_space<vmem>>, vector<1x64x128xf32>
    %307 = vector.shape_cast %306 : vector<1x64x128xf32> to vector<64x128xf32>
    %cst_80 = arith.constant dense<0.000000e+00> : vector<8x128xf32>
    %308 = tpu.matmul %305, %307, %cst_80 {dimension_numbers = #tpu.dot_dimension_numbers<[1], [0], [0], [1], [0, 0, 1, 1], [], []>} : vector<8x64xf32>, vector<64x128xf32>, vector<8x128xf32> -> vector<8x128xf32>
    %309 = vector.broadcast %71 : vector<1x128xf32> to vector<8x128xf32>
    %310 = arith.addf %308, %309 : vector<8x128xf32>
    %311 = vector.extract_strided_slice %310 {offsets = [0, 0], sizes = [8, 96], strides = [1, 1]} : vector<8x128xf32> to vector<8x96xf32>
    %312 = arith.negf %311 : vector<8x96xf32>
    %313 = math.exp %312 : vector<8x96xf32>
    %cst_81 = arith.constant 1.000000e+00 : f32
    %314 = vector.broadcast %cst_81 : f32 to vector<8x96xf32>
    %315 = arith.addf %314, %313 : vector<8x96xf32>
    %316 = arith.divf %314, %315 : vector<8x96xf32>
    %317 = vector.extract_strided_slice %310 {offsets = [0, 96], sizes = [8, 32], strides = [1, 1]} : vector<8x128xf32> to vector<8x32xf32>
    %318 = math.tanh %317 : vector<8x32xf32>
    %319 = vector.extract_strided_slice %316 {offsets = [0, 32], sizes = [8, 32], strides = [1, 1]} : vector<8x96xf32> to vector<8x32xf32>
    %320 = arith.mulf %319, %237 : vector<8x32xf32>
    %321 = vector.extract_strided_slice %316 {offsets = [0, 0], sizes = [8, 32], strides = [1, 1]} : vector<8x96xf32> to vector<8x32xf32>
    %322 = arith.mulf %321, %318 : vector<8x32xf32>
    %323 = arith.addf %320, %322 : vector<8x32xf32>
    %324 = vector.extract_strided_slice %316 {offsets = [0, 64], sizes = [8, 32], strides = [1, 1]} : vector<8x96xf32> to vector<8x32xf32>
    %325 = math.tanh %323 : vector<8x32xf32>
    %326 = arith.mulf %324, %325 : vector<8x32xf32>
    %327 = tpu.concatenate %280, %262 in 1 : vector<8x32xf32>, vector<8x32xf32> -> vector<8x64xf32>
    %c0_82 = arith.constant 0 : index
    %c0_83 = arith.constant 0 : index
    %c0_84 = arith.constant 0 : index
    %328 = vector.load %arg4[%c0_82, %c0_83, %c0_84] : memref<3x64x128xf32, #tpu.memory_space<vmem>>, vector<1x64x128xf32>
    %329 = vector.shape_cast %328 : vector<1x64x128xf32> to vector<64x128xf32>
    %cst_85 = arith.constant dense<0.000000e+00> : vector<8x128xf32>
    %330 = tpu.matmul %327, %329, %cst_85 {dimension_numbers = #tpu.dot_dimension_numbers<[1], [0], [0], [1], [0, 0, 1, 1], [], []>} : vector<8x64xf32>, vector<64x128xf32>, vector<8x128xf32> -> vector<8x128xf32>
    %331 = vector.broadcast %69 : vector<1x128xf32> to vector<8x128xf32>
    %332 = arith.addf %330, %331 : vector<8x128xf32>
    %333 = vector.extract_strided_slice %332 {offsets = [0, 0], sizes = [8, 96], strides = [1, 1]} : vector<8x128xf32> to vector<8x96xf32>
    %334 = arith.negf %333 : vector<8x96xf32>
    %335 = math.exp %334 : vector<8x96xf32>
    %cst_86 = arith.constant 1.000000e+00 : f32
    %336 = vector.broadcast %cst_86 : f32 to vector<8x96xf32>
    %337 = arith.addf %336, %335 : vector<8x96xf32>
    %338 = arith.divf %336, %337 : vector<8x96xf32>
    %339 = vector.extract_strided_slice %332 {offsets = [0, 96], sizes = [8, 32], strides = [1, 1]} : vector<8x128xf32> to vector<8x32xf32>
    %340 = math.tanh %339 : vector<8x32xf32>
    %341 = vector.extract_strided_slice %338 {offsets = [0, 32], sizes = [8, 32], strides = [1, 1]} : vector<8x96xf32> to vector<8x32xf32>
    %342 = arith.mulf %341, %259 : vector<8x32xf32>
    %343 = vector.extract_strided_slice %338 {offsets = [0, 0], sizes = [8, 32], strides = [1, 1]} : vector<8x96xf32> to vector<8x32xf32>
    %344 = arith.mulf %343, %340 : vector<8x32xf32>
    %345 = arith.addf %342, %344 : vector<8x32xf32>
    %346 = vector.extract_strided_slice %338 {offsets = [0, 64], sizes = [8, 32], strides = [1, 1]} : vector<8x96xf32> to vector<8x32xf32>
    %347 = math.tanh %345 : vector<8x32xf32>
    %348 = arith.mulf %346, %347 : vector<8x32xf32>
    %cst_87 = arith.constant dense<0.000000e+00> : vector<8x128xf32>
    %349 = tpu.matmul %280, %67, %cst_87 {dimension_numbers = #tpu.dot_dimension_numbers<[1], [0], [0], [1], [0, 0, 1, 1], [], []>} : vector<8x32xf32>, vector<32x128xf32>, vector<8x128xf32> -> vector<8x128xf32>
    %350 = arith.addf %42, %349 : vector<8x128xf32>
    %351 = vector.extract_strided_slice %350 {offsets = [0, 0], sizes = [8, 96], strides = [1, 1]} : vector<8x128xf32> to vector<8x96xf32>
    %352 = arith.negf %351 : vector<8x96xf32>
    %353 = math.exp %352 : vector<8x96xf32>
    %cst_88 = arith.constant 1.000000e+00 : f32
    %354 = vector.broadcast %cst_88 : f32 to vector<8x96xf32>
    %355 = arith.addf %354, %353 : vector<8x96xf32>
    %356 = arith.divf %354, %355 : vector<8x96xf32>
    %357 = vector.extract_strided_slice %350 {offsets = [0, 96], sizes = [8, 32], strides = [1, 1]} : vector<8x128xf32> to vector<8x32xf32>
    %358 = math.tanh %357 : vector<8x32xf32>
    %359 = vector.extract_strided_slice %356 {offsets = [0, 32], sizes = [8, 32], strides = [1, 1]} : vector<8x96xf32> to vector<8x32xf32>
    %360 = arith.mulf %359, %277 : vector<8x32xf32>
    %361 = vector.extract_strided_slice %356 {offsets = [0, 0], sizes = [8, 32], strides = [1, 1]} : vector<8x96xf32> to vector<8x32xf32>
    %362 = arith.mulf %361, %358 : vector<8x32xf32>
    %363 = arith.addf %360, %362 : vector<8x32xf32>
    %364 = vector.extract_strided_slice %356 {offsets = [0, 64], sizes = [8, 32], strides = [1, 1]} : vector<8x96xf32> to vector<8x32xf32>
    %365 = math.tanh %363 : vector<8x32xf32>
    %366 = arith.mulf %364, %365 : vector<8x32xf32>
    %367 = tpu.concatenate %326, %302 in 1 : vector<8x32xf32>, vector<8x32xf32> -> vector<8x64xf32>
    %c2_89 = arith.constant 2 : index
    %c0_90 = arith.constant 0 : index
    %c0_91 = arith.constant 0 : index
    %368 = vector.load %arg4[%c2_89, %c0_90, %c0_91] : memref<3x64x128xf32, #tpu.memory_space<vmem>>, vector<1x64x128xf32>
    %369 = vector.shape_cast %368 : vector<1x64x128xf32> to vector<64x128xf32>
    %cst_92 = arith.constant dense<0.000000e+00> : vector<8x128xf32>
    %370 = tpu.matmul %367, %369, %cst_92 {dimension_numbers = #tpu.dot_dimension_numbers<[1], [0], [0], [1], [0, 0, 1, 1], [], []>} : vector<8x64xf32>, vector<64x128xf32>, vector<8x128xf32> -> vector<8x128xf32>
    %371 = vector.broadcast %73 : vector<1x128xf32> to vector<8x128xf32>
    %372 = arith.addf %370, %371 : vector<8x128xf32>
    %373 = vector.extract_strided_slice %372 {offsets = [0, 0], sizes = [8, 96], strides = [1, 1]} : vector<8x128xf32> to vector<8x96xf32>
    %374 = arith.negf %373 : vector<8x96xf32>
    %375 = math.exp %374 : vector<8x96xf32>
    %cst_93 = arith.constant 1.000000e+00 : f32
    %376 = vector.broadcast %cst_93 : f32 to vector<8x96xf32>
    %377 = arith.addf %376, %375 : vector<8x96xf32>
    %378 = arith.divf %376, %377 : vector<8x96xf32>
    %379 = vector.extract_strided_slice %372 {offsets = [0, 96], sizes = [8, 32], strides = [1, 1]} : vector<8x128xf32> to vector<8x32xf32>
    %380 = math.tanh %379 : vector<8x32xf32>
    %381 = vector.extract_strided_slice %378 {offsets = [0, 32], sizes = [8, 32], strides = [1, 1]} : vector<8x96xf32> to vector<8x32xf32>
    %382 = arith.mulf %381, %299 : vector<8x32xf32>
    %383 = vector.extract_strided_slice %378 {offsets = [0, 0], sizes = [8, 32], strides = [1, 1]} : vector<8x96xf32> to vector<8x32xf32>
    %384 = arith.mulf %383, %380 : vector<8x32xf32>
    %385 = arith.addf %382, %384 : vector<8x32xf32>
    %386 = vector.extract_strided_slice %378 {offsets = [0, 64], sizes = [8, 32], strides = [1, 1]} : vector<8x96xf32> to vector<8x32xf32>
    %387 = math.tanh %385 : vector<8x32xf32>
    %388 = arith.mulf %386, %387 : vector<8x32xf32>
    %389 = vector.extract_strided_slice %388 {offsets = [0, 0], sizes = [2, 32], strides = [1, 1]} : vector<8x32xf32> to vector<2x32xf32>
    %c0_94 = arith.constant 0 : index
    %c64 = arith.constant 64 : index
    %390 = vector.load %arg6[%c0_94, %c64] : memref<2x256xf32, #tpu.memory_space<vmem>>, vector<2x32xf32>
    tpu.vector_store %arg6[%c0_94, %c64], %389 {strides = array<i32>} : memref<2x256xf32, #tpu.memory_space<vmem>>, vector<2x32xf32>,
    %391 = tpu.concatenate %348, %326 in 1 : vector<8x32xf32>, vector<8x32xf32> -> vector<8x64xf32>
    %c1_95 = arith.constant 1 : index
    %c0_96 = arith.constant 0 : index
    %c0_97 = arith.constant 0 : index
    %392 = vector.load %arg4[%c1_95, %c0_96, %c0_97] : memref<3x64x128xf32, #tpu.memory_space<vmem>>, vector<1x64x128xf32>
    %393 = vector.shape_cast %392 : vector<1x64x128xf32> to vector<64x128xf32>
    %cst_98 = arith.constant dense<0.000000e+00> : vector<8x128xf32>
    %394 = tpu.matmul %391, %393, %cst_98 {dimension_numbers = #tpu.dot_dimension_numbers<[1], [0], [0], [1], [0, 0, 1, 1], [], []>} : vector<8x64xf32>, vector<64x128xf32>, vector<8x128xf32> -> vector<8x128xf32>
    %395 = vector.broadcast %71 : vector<1x128xf32> to vector<8x128xf32>
    %396 = arith.addf %394, %395 : vector<8x128xf32>
    %397 = vector.extract_strided_slice %396 {offsets = [0, 0], sizes = [8, 96], strides = [1, 1]} : vector<8x128xf32> to vector<8x96xf32>
    %398 = arith.negf %397 : vector<8x96xf32>
    %399 = math.exp %398 : vector<8x96xf32>
    %cst_99 = arith.constant 1.000000e+00 : f32
    %400 = vector.broadcast %cst_99 : f32 to vector<8x96xf32>
    %401 = arith.addf %400, %399 : vector<8x96xf32>
    %402 = arith.divf %400, %401 : vector<8x96xf32>
    %403 = vector.extract_strided_slice %396 {offsets = [0, 96], sizes = [8, 32], strides = [1, 1]} : vector<8x128xf32> to vector<8x32xf32>
    %404 = math.tanh %403 : vector<8x32xf32>
    %405 = vector.extract_strided_slice %402 {offsets = [0, 32], sizes = [8, 32], strides = [1, 1]} : vector<8x96xf32> to vector<8x32xf32>
    %406 = arith.mulf %405, %323 : vector<8x32xf32>
    %407 = vector.extract_strided_slice %402 {offsets = [0, 0], sizes = [8, 32], strides = [1, 1]} : vector<8x96xf32> to vector<8x32xf32>
    %408 = arith.mulf %407, %404 : vector<8x32xf32>
    %409 = arith.addf %406, %408 : vector<8x32xf32>
    %410 = vector.extract_strided_slice %402 {offsets = [0, 64], sizes = [8, 32], strides = [1, 1]} : vector<8x96xf32> to vector<8x32xf32>
    %411 = math.tanh %409 : vector<8x32xf32>
    %412 = arith.mulf %410, %411 : vector<8x32xf32>
    %413 = tpu.concatenate %366, %348 in 1 : vector<8x32xf32>, vector<8x32xf32> -> vector<8x64xf32>
    %c0_100 = arith.constant 0 : index
    %c0_101 = arith.constant 0 : index
    %c0_102 = arith.constant 0 : index
    %414 = vector.load %arg4[%c0_100, %c0_101, %c0_102] : memref<3x64x128xf32, #tpu.memory_space<vmem>>, vector<1x64x128xf32>
    %415 = vector.shape_cast %414 : vector<1x64x128xf32> to vector<64x128xf32>
    %cst_103 = arith.constant dense<0.000000e+00> : vector<8x128xf32>
    %416 = tpu.matmul %413, %415, %cst_103 {dimension_numbers = #tpu.dot_dimension_numbers<[1], [0], [0], [1], [0, 0, 1, 1], [], []>} : vector<8x64xf32>, vector<64x128xf32>, vector<8x128xf32> -> vector<8x128xf32>
    %417 = vector.broadcast %69 : vector<1x128xf32> to vector<8x128xf32>
    %418 = arith.addf %416, %417 : vector<8x128xf32>
    %419 = vector.extract_strided_slice %418 {offsets = [0, 0], sizes = [8, 96], strides = [1, 1]} : vector<8x128xf32> to vector<8x96xf32>
    %420 = arith.negf %419 : vector<8x96xf32>
    %421 = math.exp %420 : vector<8x96xf32>
    %cst_104 = arith.constant 1.000000e+00 : f32
    %422 = vector.broadcast %cst_104 : f32 to vector<8x96xf32>
    %423 = arith.addf %422, %421 : vector<8x96xf32>
    %424 = arith.divf %422, %423 : vector<8x96xf32>
    %425 = vector.extract_strided_slice %418 {offsets = [0, 96], sizes = [8, 32], strides = [1, 1]} : vector<8x128xf32> to vector<8x32xf32>
    %426 = math.tanh %425 : vector<8x32xf32>
    %427 = vector.extract_strided_slice %424 {offsets = [0, 32], sizes = [8, 32], strides = [1, 1]} : vector<8x96xf32> to vector<8x32xf32>
    %428 = arith.mulf %427, %345 : vector<8x32xf32>
    %429 = vector.extract_strided_slice %424 {offsets = [0, 0], sizes = [8, 32], strides = [1, 1]} : vector<8x96xf32> to vector<8x32xf32>
    %430 = arith.mulf %429, %426 : vector<8x32xf32>
    %431 = arith.addf %428, %430 : vector<8x32xf32>
    %432 = vector.extract_strided_slice %424 {offsets = [0, 64], sizes = [8, 32], strides = [1, 1]} : vector<8x96xf32> to vector<8x32xf32>
    %433 = math.tanh %431 : vector<8x32xf32>
    %434 = arith.mulf %432, %433 : vector<8x32xf32>
    %cst_105 = arith.constant dense<0.000000e+00> : vector<8x128xf32>
    %435 = tpu.matmul %366, %67, %cst_105 {dimension_numbers = #tpu.dot_dimension_numbers<[1], [0], [0], [1], [0, 0, 1, 1], [], []>} : vector<8x32xf32>, vector<32x128xf32>, vector<8x128xf32> -> vector<8x128xf32>
    %436 = arith.addf %50, %435 : vector<8x128xf32>
    %437 = vector.extract_strided_slice %436 {offsets = [0, 0], sizes = [8, 96], strides = [1, 1]} : vector<8x128xf32> to vector<8x96xf32>
    %438 = arith.negf %437 : vector<8x96xf32>
    %439 = math.exp %438 : vector<8x96xf32>
    %cst_106 = arith.constant 1.000000e+00 : f32
    %440 = vector.broadcast %cst_106 : f32 to vector<8x96xf32>
    %441 = arith.addf %440, %439 : vector<8x96xf32>
    %442 = arith.divf %440, %441 : vector<8x96xf32>
    %443 = vector.extract_strided_slice %436 {offsets = [0, 96], sizes = [8, 32], strides = [1, 1]} : vector<8x128xf32> to vector<8x32xf32>
    %444 = math.tanh %443 : vector<8x32xf32>
    %445 = vector.extract_strided_slice %442 {offsets = [0, 32], sizes = [8, 32], strides = [1, 1]} : vector<8x96xf32> to vector<8x32xf32>
    %446 = arith.mulf %445, %363 : vector<8x32xf32>
    %447 = vector.extract_strided_slice %442 {offsets = [0, 0], sizes = [8, 32], strides = [1, 1]} : vector<8x96xf32> to vector<8x32xf32>
    %448 = arith.mulf %447, %444 : vector<8x32xf32>
    %449 = arith.addf %446, %448 : vector<8x32xf32>
    %450 = vector.extract_strided_slice %442 {offsets = [0, 64], sizes = [8, 32], strides = [1, 1]} : vector<8x96xf32> to vector<8x32xf32>
    %451 = math.tanh %449 : vector<8x32xf32>
    %452 = arith.mulf %450, %451 : vector<8x32xf32>
    %453 = tpu.concatenate %412, %388 in 1 : vector<8x32xf32>, vector<8x32xf32> -> vector<8x64xf32>
    %c2_107 = arith.constant 2 : index
    %c0_108 = arith.constant 0 : index
    %c0_109 = arith.constant 0 : index
    %454 = vector.load %arg4[%c2_107, %c0_108, %c0_109] : memref<3x64x128xf32, #tpu.memory_space<vmem>>, vector<1x64x128xf32>
    %455 = vector.shape_cast %454 : vector<1x64x128xf32> to vector<64x128xf32>
    %cst_110 = arith.constant dense<0.000000e+00> : vector<8x128xf32>
    %456 = tpu.matmul %453, %455, %cst_110 {dimension_numbers = #tpu.dot_dimension_numbers<[1], [0], [0], [1], [0, 0, 1, 1], [], []>} : vector<8x64xf32>, vector<64x128xf32>, vector<8x128xf32> -> vector<8x128xf32>
    %457 = vector.broadcast %73 : vector<1x128xf32> to vector<8x128xf32>
    %458 = arith.addf %456, %457 : vector<8x128xf32>
    %459 = vector.extract_strided_slice %458 {offsets = [0, 0], sizes = [8, 96], strides = [1, 1]} : vector<8x128xf32> to vector<8x96xf32>
    %460 = arith.negf %459 : vector<8x96xf32>
    %461 = math.exp %460 : vector<8x96xf32>
    %cst_111 = arith.constant 1.000000e+00 : f32
    %462 = vector.broadcast %cst_111 : f32 to vector<8x96xf32>
    %463 = arith.addf %462, %461 : vector<8x96xf32>
    %464 = arith.divf %462, %463 : vector<8x96xf32>
    %465 = vector.extract_strided_slice %458 {offsets = [0, 96], sizes = [8, 32], strides = [1, 1]} : vector<8x128xf32> to vector<8x32xf32>
    %466 = math.tanh %465 : vector<8x32xf32>
    %467 = vector.extract_strided_slice %464 {offsets = [0, 32], sizes = [8, 32], strides = [1, 1]} : vector<8x96xf32> to vector<8x32xf32>
    %468 = arith.mulf %467, %385 : vector<8x32xf32>
    %469 = vector.extract_strided_slice %464 {offsets = [0, 0], sizes = [8, 32], strides = [1, 1]} : vector<8x96xf32> to vector<8x32xf32>
    %470 = arith.mulf %469, %466 : vector<8x32xf32>
    %471 = arith.addf %468, %470 : vector<8x32xf32>
    %472 = vector.extract_strided_slice %464 {offsets = [0, 64], sizes = [8, 32], strides = [1, 1]} : vector<8x96xf32> to vector<8x32xf32>
    %473 = math.tanh %471 : vector<8x32xf32>
    %474 = arith.mulf %472, %473 : vector<8x32xf32>
    %475 = vector.extract_strided_slice %474 {offsets = [0, 0], sizes = [2, 32], strides = [1, 1]} : vector<8x32xf32> to vector<2x32xf32>
    %c0_112 = arith.constant 0 : index
    %c96 = arith.constant 96 : index
    %476 = vector.load %arg6[%c0_112, %c96] : memref<2x256xf32, #tpu.memory_space<vmem>>, vector<2x32xf32>
    tpu.vector_store %arg6[%c0_112, %c96], %475 {strides = array<i32>} : memref<2x256xf32, #tpu.memory_space<vmem>>, vector<2x32xf32>,
    %477 = tpu.concatenate %434, %412 in 1 : vector<8x32xf32>, vector<8x32xf32> -> vector<8x64xf32>
    %c1_113 = arith.constant 1 : index
    %c0_114 = arith.constant 0 : index
    %c0_115 = arith.constant 0 : index
    %478 = vector.load %arg4[%c1_113, %c0_114, %c0_115] : memref<3x64x128xf32, #tpu.memory_space<vmem>>, vector<1x64x128xf32>
    %479 = vector.shape_cast %478 : vector<1x64x128xf32> to vector<64x128xf32>
    %cst_116 = arith.constant dense<0.000000e+00> : vector<8x128xf32>
    %480 = tpu.matmul %477, %479, %cst_116 {dimension_numbers = #tpu.dot_dimension_numbers<[1], [0], [0], [1], [0, 0, 1, 1], [], []>} : vector<8x64xf32>, vector<64x128xf32>, vector<8x128xf32> -> vector<8x128xf32>
    %481 = vector.broadcast %71 : vector<1x128xf32> to vector<8x128xf32>
    %482 = arith.addf %480, %481 : vector<8x128xf32>
    %483 = vector.extract_strided_slice %482 {offsets = [0, 0], sizes = [8, 96], strides = [1, 1]} : vector<8x128xf32> to vector<8x96xf32>
    %484 = arith.negf %483 : vector<8x96xf32>
    %485 = math.exp %484 : vector<8x96xf32>
    %cst_117 = arith.constant 1.000000e+00 : f32
    %486 = vector.broadcast %cst_117 : f32 to vector<8x96xf32>
    %487 = arith.addf %486, %485 : vector<8x96xf32>
    %488 = arith.divf %486, %487 : vector<8x96xf32>
    %489 = vector.extract_strided_slice %482 {offsets = [0, 96], sizes = [8, 32], strides = [1, 1]} : vector<8x128xf32> to vector<8x32xf32>
    %490 = math.tanh %489 : vector<8x32xf32>
    %491 = vector.extract_strided_slice %488 {offsets = [0, 32], sizes = [8, 32], strides = [1, 1]} : vector<8x96xf32> to vector<8x32xf32>
    %492 = arith.mulf %491, %409 : vector<8x32xf32>
    %493 = vector.extract_strided_slice %488 {offsets = [0, 0], sizes = [8, 32], strides = [1, 1]} : vector<8x96xf32> to vector<8x32xf32>
    %494 = arith.mulf %493, %490 : vector<8x32xf32>
    %495 = arith.addf %492, %494 : vector<8x32xf32>
    %496 = vector.extract_strided_slice %488 {offsets = [0, 64], sizes = [8, 32], strides = [1, 1]} : vector<8x96xf32> to vector<8x32xf32>
    %497 = math.tanh %495 : vector<8x32xf32>
    %498 = arith.mulf %496, %497 : vector<8x32xf32>
    %499 = tpu.concatenate %452, %434 in 1 : vector<8x32xf32>, vector<8x32xf32> -> vector<8x64xf32>
    %c0_118 = arith.constant 0 : index
    %c0_119 = arith.constant 0 : index
    %c0_120 = arith.constant 0 : index
    %500 = vector.load %arg4[%c0_118, %c0_119, %c0_120] : memref<3x64x128xf32, #tpu.memory_space<vmem>>, vector<1x64x128xf32>
    %501 = vector.shape_cast %500 : vector<1x64x128xf32> to vector<64x128xf32>
    %cst_121 = arith.constant dense<0.000000e+00> : vector<8x128xf32>
    %502 = tpu.matmul %499, %501, %cst_121 {dimension_numbers = #tpu.dot_dimension_numbers<[1], [0], [0], [1], [0, 0, 1, 1], [], []>} : vector<8x64xf32>, vector<64x128xf32>, vector<8x128xf32> -> vector<8x128xf32>
    %503 = vector.broadcast %69 : vector<1x128xf32> to vector<8x128xf32>
    %504 = arith.addf %502, %503 : vector<8x128xf32>
    %505 = vector.extract_strided_slice %504 {offsets = [0, 0], sizes = [8, 96], strides = [1, 1]} : vector<8x128xf32> to vector<8x96xf32>
    %506 = arith.negf %505 : vector<8x96xf32>
    %507 = math.exp %506 : vector<8x96xf32>
    %cst_122 = arith.constant 1.000000e+00 : f32
    %508 = vector.broadcast %cst_122 : f32 to vector<8x96xf32>
    %509 = arith.addf %508, %507 : vector<8x96xf32>
    %510 = arith.divf %508, %509 : vector<8x96xf32>
    %511 = vector.extract_strided_slice %504 {offsets = [0, 96], sizes = [8, 32], strides = [1, 1]} : vector<8x128xf32> to vector<8x32xf32>
    %512 = math.tanh %511 : vector<8x32xf32>
    %513 = vector.extract_strided_slice %510 {offsets = [0, 32], sizes = [8, 32], strides = [1, 1]} : vector<8x96xf32> to vector<8x32xf32>
    %514 = arith.mulf %513, %431 : vector<8x32xf32>
    %515 = vector.extract_strided_slice %510 {offsets = [0, 0], sizes = [8, 32], strides = [1, 1]} : vector<8x96xf32> to vector<8x32xf32>
    %516 = arith.mulf %515, %512 : vector<8x32xf32>
    %517 = arith.addf %514, %516 : vector<8x32xf32>
    %518 = vector.extract_strided_slice %510 {offsets = [0, 64], sizes = [8, 32], strides = [1, 1]} : vector<8x96xf32> to vector<8x32xf32>
    %519 = math.tanh %517 : vector<8x32xf32>
    %520 = arith.mulf %518, %519 : vector<8x32xf32>
    %cst_123 = arith.constant dense<0.000000e+00> : vector<8x128xf32>
    %521 = tpu.matmul %452, %67, %cst_123 {dimension_numbers = #tpu.dot_dimension_numbers<[1], [0], [0], [1], [0, 0, 1, 1], [], []>} : vector<8x32xf32>, vector<32x128xf32>, vector<8x128xf32> -> vector<8x128xf32>
    %522 = arith.addf %58, %521 : vector<8x128xf32>
    %523 = vector.extract_strided_slice %522 {offsets = [0, 0], sizes = [8, 96], strides = [1, 1]} : vector<8x128xf32> to vector<8x96xf32>
    %524 = arith.negf %523 : vector<8x96xf32>
    %525 = math.exp %524 : vector<8x96xf32>
    %cst_124 = arith.constant 1.000000e+00 : f32
    %526 = vector.broadcast %cst_124 : f32 to vector<8x96xf32>
    %527 = arith.addf %526, %525 : vector<8x96xf32>
    %528 = arith.divf %526, %527 : vector<8x96xf32>
    %529 = vector.extract_strided_slice %522 {offsets = [0, 96], sizes = [8, 32], strides = [1, 1]} : vector<8x128xf32> to vector<8x32xf32>
    %530 = math.tanh %529 : vector<8x32xf32>
    %531 = vector.extract_strided_slice %528 {offsets = [0, 32], sizes = [8, 32], strides = [1, 1]} : vector<8x96xf32> to vector<8x32xf32>
    %532 = arith.mulf %531, %449 : vector<8x32xf32>
    %533 = vector.extract_strided_slice %528 {offsets = [0, 0], sizes = [8, 32], strides = [1, 1]} : vector<8x96xf32> to vector<8x32xf32>
    %534 = arith.mulf %533, %530 : vector<8x32xf32>
    %535 = arith.addf %532, %534 : vector<8x32xf32>
    %536 = vector.extract_strided_slice %528 {offsets = [0, 64], sizes = [8, 32], strides = [1, 1]} : vector<8x96xf32> to vector<8x32xf32>
    %537 = math.tanh %535 : vector<8x32xf32>
    %538 = arith.mulf %536, %537 : vector<8x32xf32>
    %539 = tpu.concatenate %498, %474 in 1 : vector<8x32xf32>, vector<8x32xf32> -> vector<8x64xf32>
    %c2_125 = arith.constant 2 : index
    %c0_126 = arith.constant 0 : index
    %c0_127 = arith.constant 0 : index
    %540 = vector.load %arg4[%c2_125, %c0_126, %c0_127] : memref<3x64x128xf32, #tpu.memory_space<vmem>>, vector<1x64x128xf32>
    %541 = vector.shape_cast %540 : vector<1x64x128xf32> to vector<64x128xf32>
    %cst_128 = arith.constant dense<0.000000e+00> : vector<8x128xf32>
    %542 = tpu.matmul %539, %541, %cst_128 {dimension_numbers = #tpu.dot_dimension_numbers<[1], [0], [0], [1], [0, 0, 1, 1], [], []>} : vector<8x64xf32>, vector<64x128xf32>, vector<8x128xf32> -> vector<8x128xf32>
    %543 = vector.broadcast %73 : vector<1x128xf32> to vector<8x128xf32>
    %544 = arith.addf %542, %543 : vector<8x128xf32>
    %545 = vector.extract_strided_slice %544 {offsets = [0, 0], sizes = [8, 96], strides = [1, 1]} : vector<8x128xf32> to vector<8x96xf32>
    %546 = arith.negf %545 : vector<8x96xf32>
    %547 = math.exp %546 : vector<8x96xf32>
    %cst_129 = arith.constant 1.000000e+00 : f32
    %548 = vector.broadcast %cst_129 : f32 to vector<8x96xf32>
    %549 = arith.addf %548, %547 : vector<8x96xf32>
    %550 = arith.divf %548, %549 : vector<8x96xf32>
    %551 = vector.extract_strided_slice %544 {offsets = [0, 96], sizes = [8, 32], strides = [1, 1]} : vector<8x128xf32> to vector<8x32xf32>
    %552 = math.tanh %551 : vector<8x32xf32>
    %553 = vector.extract_strided_slice %550 {offsets = [0, 32], sizes = [8, 32], strides = [1, 1]} : vector<8x96xf32> to vector<8x32xf32>
    %554 = arith.mulf %553, %471 : vector<8x32xf32>
    %555 = vector.extract_strided_slice %550 {offsets = [0, 0], sizes = [8, 32], strides = [1, 1]} : vector<8x96xf32> to vector<8x32xf32>
    %556 = arith.mulf %555, %552 : vector<8x32xf32>
    %557 = arith.addf %554, %556 : vector<8x32xf32>
    %558 = vector.extract_strided_slice %550 {offsets = [0, 64], sizes = [8, 32], strides = [1, 1]} : vector<8x96xf32> to vector<8x32xf32>
    %559 = math.tanh %557 : vector<8x32xf32>
    %560 = arith.mulf %558, %559 : vector<8x32xf32>
    %561 = vector.extract_strided_slice %560 {offsets = [0, 0], sizes = [2, 32], strides = [1, 1]} : vector<8x32xf32> to vector<2x32xf32>
    %c0_130 = arith.constant 0 : index
    %c128 = arith.constant 128 : index
    %562 = vector.load %arg6[%c0_130, %c128] : memref<2x256xf32, #tpu.memory_space<vmem>>, vector<2x32xf32>
    tpu.vector_store %arg6[%c0_130, %c128], %561 {strides = array<i32>} : memref<2x256xf32, #tpu.memory_space<vmem>>, vector<2x32xf32>,
    %563 = tpu.concatenate %520, %498 in 1 : vector<8x32xf32>, vector<8x32xf32> -> vector<8x64xf32>
    %c1_131 = arith.constant 1 : index
    %c0_132 = arith.constant 0 : index
    %c0_133 = arith.constant 0 : index
    %564 = vector.load %arg4[%c1_131, %c0_132, %c0_133] : memref<3x64x128xf32, #tpu.memory_space<vmem>>, vector<1x64x128xf32>
    %565 = vector.shape_cast %564 : vector<1x64x128xf32> to vector<64x128xf32>
    %cst_134 = arith.constant dense<0.000000e+00> : vector<8x128xf32>
    %566 = tpu.matmul %563, %565, %cst_134 {dimension_numbers = #tpu.dot_dimension_numbers<[1], [0], [0], [1], [0, 0, 1, 1], [], []>} : vector<8x64xf32>, vector<64x128xf32>, vector<8x128xf32> -> vector<8x128xf32>
    %567 = vector.broadcast %71 : vector<1x128xf32> to vector<8x128xf32>
    %568 = arith.addf %566, %567 : vector<8x128xf32>
    %569 = vector.extract_strided_slice %568 {offsets = [0, 0], sizes = [8, 96], strides = [1, 1]} : vector<8x128xf32> to vector<8x96xf32>
    %570 = arith.negf %569 : vector<8x96xf32>
    %571 = math.exp %570 : vector<8x96xf32>
    %cst_135 = arith.constant 1.000000e+00 : f32
    %572 = vector.broadcast %cst_135 : f32 to vector<8x96xf32>
    %573 = arith.addf %572, %571 : vector<8x96xf32>
    %574 = arith.divf %572, %573 : vector<8x96xf32>
    %575 = vector.extract_strided_slice %568 {offsets = [0, 96], sizes = [8, 32], strides = [1, 1]} : vector<8x128xf32> to vector<8x32xf32>
    %576 = math.tanh %575 : vector<8x32xf32>
    %577 = vector.extract_strided_slice %574 {offsets = [0, 32], sizes = [8, 32], strides = [1, 1]} : vector<8x96xf32> to vector<8x32xf32>
    %578 = arith.mulf %577, %495 : vector<8x32xf32>
    %579 = vector.extract_strided_slice %574 {offsets = [0, 0], sizes = [8, 32], strides = [1, 1]} : vector<8x96xf32> to vector<8x32xf32>
    %580 = arith.mulf %579, %576 : vector<8x32xf32>
    %581 = arith.addf %578, %580 : vector<8x32xf32>
    %582 = vector.extract_strided_slice %574 {offsets = [0, 64], sizes = [8, 32], strides = [1, 1]} : vector<8x96xf32> to vector<8x32xf32>
    %583 = math.tanh %581 : vector<8x32xf32>
    %584 = arith.mulf %582, %583 : vector<8x32xf32>
    %585 = tpu.concatenate %538, %520 in 1 : vector<8x32xf32>, vector<8x32xf32> -> vector<8x64xf32>
    %c0_136 = arith.constant 0 : index
    %c0_137 = arith.constant 0 : index
    %c0_138 = arith.constant 0 : index
    %586 = vector.load %arg4[%c0_136, %c0_137, %c0_138] : memref<3x64x128xf32, #tpu.memory_space<vmem>>, vector<1x64x128xf32>
    %587 = vector.shape_cast %586 : vector<1x64x128xf32> to vector<64x128xf32>
    %cst_139 = arith.constant dense<0.000000e+00> : vector<8x128xf32>
    %588 = tpu.matmul %585, %587, %cst_139 {dimension_numbers = #tpu.dot_dimension_numbers<[1], [0], [0], [1], [0, 0, 1, 1], [], []>} : vector<8x64xf32>, vector<64x128xf32>, vector<8x128xf32> -> vector<8x128xf32>
    %589 = vector.broadcast %69 : vector<1x128xf32> to vector<8x128xf32>
    %590 = arith.addf %588, %589 : vector<8x128xf32>
    %591 = vector.extract_strided_slice %590 {offsets = [0, 0], sizes = [8, 96], strides = [1, 1]} : vector<8x128xf32> to vector<8x96xf32>
    %592 = arith.negf %591 : vector<8x96xf32>
    %593 = math.exp %592 : vector<8x96xf32>
    %cst_140 = arith.constant 1.000000e+00 : f32
    %594 = vector.broadcast %cst_140 : f32 to vector<8x96xf32>
    %595 = arith.addf %594, %593 : vector<8x96xf32>
    %596 = arith.divf %594, %595 : vector<8x96xf32>
    %597 = vector.extract_strided_slice %590 {offsets = [0, 96], sizes = [8, 32], strides = [1, 1]} : vector<8x128xf32> to vector<8x32xf32>
    %598 = math.tanh %597 : vector<8x32xf32>
    %599 = vector.extract_strided_slice %596 {offsets = [0, 32], sizes = [8, 32], strides = [1, 1]} : vector<8x96xf32> to vector<8x32xf32>
    %600 = arith.mulf %599, %517 : vector<8x32xf32>
    %601 = vector.extract_strided_slice %596 {offsets = [0, 0], sizes = [8, 32], strides = [1, 1]} : vector<8x96xf32> to vector<8x32xf32>
    %602 = arith.mulf %601, %598 : vector<8x32xf32>
    %603 = arith.addf %600, %602 : vector<8x32xf32>
    %604 = vector.extract_strided_slice %596 {offsets = [0, 64], sizes = [8, 32], strides = [1, 1]} : vector<8x96xf32> to vector<8x32xf32>
    %605 = math.tanh %603 : vector<8x32xf32>
    %606 = arith.mulf %604, %605 : vector<8x32xf32>
    %cst_141 = arith.constant dense<0.000000e+00> : vector<8x128xf32>
    %607 = tpu.matmul %538, %67, %cst_141 {dimension_numbers = #tpu.dot_dimension_numbers<[1], [0], [0], [1], [0, 0, 1, 1], [], []>} : vector<8x32xf32>, vector<32x128xf32>, vector<8x128xf32> -> vector<8x128xf32>
    %608 = arith.addf %66, %607 : vector<8x128xf32>
    %609 = vector.extract_strided_slice %608 {offsets = [0, 0], sizes = [8, 96], strides = [1, 1]} : vector<8x128xf32> to vector<8x96xf32>
    %610 = arith.negf %609 : vector<8x96xf32>
    %611 = math.exp %610 : vector<8x96xf32>
    %cst_142 = arith.constant 1.000000e+00 : f32
    %612 = vector.broadcast %cst_142 : f32 to vector<8x96xf32>
    %613 = arith.addf %612, %611 : vector<8x96xf32>
    %614 = arith.divf %612, %613 : vector<8x96xf32>
    %615 = vector.extract_strided_slice %608 {offsets = [0, 96], sizes = [8, 32], strides = [1, 1]} : vector<8x128xf32> to vector<8x32xf32>
    %616 = math.tanh %615 : vector<8x32xf32>
    %617 = vector.extract_strided_slice %614 {offsets = [0, 32], sizes = [8, 32], strides = [1, 1]} : vector<8x96xf32> to vector<8x32xf32>
    %618 = arith.mulf %617, %535 : vector<8x32xf32>
    %619 = vector.extract_strided_slice %614 {offsets = [0, 0], sizes = [8, 32], strides = [1, 1]} : vector<8x96xf32> to vector<8x32xf32>
    %620 = arith.mulf %619, %616 : vector<8x32xf32>
    %621 = arith.addf %618, %620 : vector<8x32xf32>
    %622 = vector.extract_strided_slice %614 {offsets = [0, 64], sizes = [8, 32], strides = [1, 1]} : vector<8x96xf32> to vector<8x32xf32>
    %623 = math.tanh %621 : vector<8x32xf32>
    %624 = arith.mulf %622, %623 : vector<8x32xf32>
    %cst_143 = arith.constant -5.000000e+01 : f32
    %cst_144 = arith.constant 5.000000e+01 : f32
    %625 = vector.broadcast %cst_143 : f32 to vector<8x32xf32>
    %626 = arith.maximumf %625, %624 : vector<8x32xf32>
    %627 = vector.broadcast %cst_144 : f32 to vector<8x32xf32>
    %628 = arith.minimumf %627, %626 : vector<8x32xf32>
    %629 = vector.extract_strided_slice %628 {offsets = [0, 0], sizes = [2, 32], strides = [1, 1]} : vector<8x32xf32> to vector<2x32xf32>
    %c0_145 = arith.constant 0 : index
    %c0_146 = arith.constant 0 : index
    %c0_147 = arith.constant 0 : index
    %630 = vector.load %arg7[%c0_145, %c0_146, %c0_147] : memref<4x2x32xf32, #tpu.memory_space<vmem>>, vector<1x2x32xf32>
    %631 = vector.shape_cast %630 : vector<1x2x32xf32> to vector<2x32xf32>
    %632 = vector.shape_cast %629 : vector<2x32xf32> to vector<1x2x32xf32>
    tpu.vector_store %arg7[%c0_145, %c0_146, %c0_147], %632 {strides = array<i32>} : memref<4x2x32xf32, #tpu.memory_space<vmem>>, vector<1x2x32xf32>,
    %cst_148 = arith.constant -5.000000e+01 : f32
    %cst_149 = arith.constant 5.000000e+01 : f32
    %633 = vector.broadcast %cst_148 : f32 to vector<8x32xf32>
    %634 = arith.maximumf %633, %621 : vector<8x32xf32>
    %635 = vector.broadcast %cst_149 : f32 to vector<8x32xf32>
    %636 = arith.minimumf %635, %634 : vector<8x32xf32>
    %637 = vector.extract_strided_slice %636 {offsets = [0, 0], sizes = [2, 32], strides = [1, 1]} : vector<8x32xf32> to vector<2x32xf32>
    %c0_150 = arith.constant 0 : index
    %c0_151 = arith.constant 0 : index
    %c0_152 = arith.constant 0 : index
    %638 = vector.load %arg8[%c0_150, %c0_151, %c0_152] : memref<4x2x32xf32, #tpu.memory_space<vmem>>, vector<1x2x32xf32>
    %639 = vector.shape_cast %638 : vector<1x2x32xf32> to vector<2x32xf32>
    %640 = vector.shape_cast %637 : vector<2x32xf32> to vector<1x2x32xf32>
    tpu.vector_store %arg8[%c0_150, %c0_151, %c0_152], %640 {strides = array<i32>} : memref<4x2x32xf32, #tpu.memory_space<vmem>>, vector<1x2x32xf32>,
    %641 = tpu.concatenate %584, %560 in 1 : vector<8x32xf32>, vector<8x32xf32> -> vector<8x64xf32>
    %c2_153 = arith.constant 2 : index
    %c0_154 = arith.constant 0 : index
    %c0_155 = arith.constant 0 : index
    %642 = vector.load %arg4[%c2_153, %c0_154, %c0_155] : memref<3x64x128xf32, #tpu.memory_space<vmem>>, vector<1x64x128xf32>
    %643 = vector.shape_cast %642 : vector<1x64x128xf32> to vector<64x128xf32>
    %cst_156 = arith.constant dense<0.000000e+00> : vector<8x128xf32>
    %644 = tpu.matmul %641, %643, %cst_156 {dimension_numbers = #tpu.dot_dimension_numbers<[1], [0], [0], [1], [0, 0, 1, 1], [], []>} : vector<8x64xf32>, vector<64x128xf32>, vector<8x128xf32> -> vector<8x128xf32>
    %645 = vector.broadcast %73 : vector<1x128xf32> to vector<8x128xf32>
    %646 = arith.addf %644, %645 : vector<8x128xf32>
    %647 = vector.extract_strided_slice %646 {offsets = [0, 0], sizes = [8, 96], strides = [1, 1]} : vector<8x128xf32> to vector<8x96xf32>
    %648 = arith.negf %647 : vector<8x96xf32>
    %649 = math.exp %648 : vector<8x96xf32>
    %cst_157 = arith.constant 1.000000e+00 : f32
    %650 = vector.broadcast %cst_157 : f32 to vector<8x96xf32>
    %651 = arith.addf %650, %649 : vector<8x96xf32>
    %652 = arith.divf %650, %651 : vector<8x96xf32>
    %653 = vector.extract_strided_slice %646 {offsets = [0, 96], sizes = [8, 32], strides = [1, 1]} : vector<8x128xf32> to vector<8x32xf32>
    %654 = math.tanh %653 : vector<8x32xf32>
    %655 = vector.extract_strided_slice %652 {offsets = [0, 32], sizes = [8, 32], strides = [1, 1]} : vector<8x96xf32> to vector<8x32xf32>
    %656 = arith.mulf %655, %557 : vector<8x32xf32>
    %657 = vector.extract_strided_slice %652 {offsets = [0, 0], sizes = [8, 32], strides = [1, 1]} : vector<8x96xf32> to vector<8x32xf32>
    %658 = arith.mulf %657, %654 : vector<8x32xf32>
    %659 = arith.addf %656, %658 : vector<8x32xf32>
    %660 = vector.extract_strided_slice %652 {offsets = [0, 64], sizes = [8, 32], strides = [1, 1]} : vector<8x96xf32> to vector<8x32xf32>
    %661 = math.tanh %659 : vector<8x32xf32>
    %662 = arith.mulf %660, %661 : vector<8x32xf32>
    %663 = vector.extract_strided_slice %662 {offsets = [0, 0], sizes = [2, 32], strides = [1, 1]} : vector<8x32xf32> to vector<2x32xf32>
    %c0_158 = arith.constant 0 : index
    %c160 = arith.constant 160 : index
    %664 = vector.load %arg6[%c0_158, %c160] : memref<2x256xf32, #tpu.memory_space<vmem>>, vector<2x32xf32>
    tpu.vector_store %arg6[%c0_158, %c160], %663 {strides = array<i32>} : memref<2x256xf32, #tpu.memory_space<vmem>>, vector<2x32xf32>,
    %665 = tpu.concatenate %606, %584 in 1 : vector<8x32xf32>, vector<8x32xf32> -> vector<8x64xf32>
    %c1_159 = arith.constant 1 : index
    %c0_160 = arith.constant 0 : index
    %c0_161 = arith.constant 0 : index
    %666 = vector.load %arg4[%c1_159, %c0_160, %c0_161] : memref<3x64x128xf32, #tpu.memory_space<vmem>>, vector<1x64x128xf32>
    %667 = vector.shape_cast %666 : vector<1x64x128xf32> to vector<64x128xf32>
    %cst_162 = arith.constant dense<0.000000e+00> : vector<8x128xf32>
    %668 = tpu.matmul %665, %667, %cst_162 {dimension_numbers = #tpu.dot_dimension_numbers<[1], [0], [0], [1], [0, 0, 1, 1], [], []>} : vector<8x64xf32>, vector<64x128xf32>, vector<8x128xf32> -> vector<8x128xf32>
    %669 = vector.broadcast %71 : vector<1x128xf32> to vector<8x128xf32>
    %670 = arith.addf %668, %669 : vector<8x128xf32>
    %671 = vector.extract_strided_slice %670 {offsets = [0, 0], sizes = [8, 96], strides = [1, 1]} : vector<8x128xf32> to vector<8x96xf32>
    %672 = arith.negf %671 : vector<8x96xf32>
    %673 = math.exp %672 : vector<8x96xf32>
    %cst_163 = arith.constant 1.000000e+00 : f32
    %674 = vector.broadcast %cst_163 : f32 to vector<8x96xf32>
    %675 = arith.addf %674, %673 : vector<8x96xf32>
    %676 = arith.divf %674, %675 : vector<8x96xf32>
    %677 = vector.extract_strided_slice %670 {offsets = [0, 96], sizes = [8, 32], strides = [1, 1]} : vector<8x128xf32> to vector<8x32xf32>
    %678 = math.tanh %677 : vector<8x32xf32>
    %679 = vector.extract_strided_slice %676 {offsets = [0, 32], sizes = [8, 32], strides = [1, 1]} : vector<8x96xf32> to vector<8x32xf32>
    %680 = arith.mulf %679, %581 : vector<8x32xf32>
    %681 = vector.extract_strided_slice %676 {offsets = [0, 0], sizes = [8, 32], strides = [1, 1]} : vector<8x96xf32> to vector<8x32xf32>
    %682 = arith.mulf %681, %678 : vector<8x32xf32>
    %683 = arith.addf %680, %682 : vector<8x32xf32>
    %684 = vector.extract_strided_slice %676 {offsets = [0, 64], sizes = [8, 32], strides = [1, 1]} : vector<8x96xf32> to vector<8x32xf32>
    %685 = math.tanh %683 : vector<8x32xf32>
    %686 = arith.mulf %684, %685 : vector<8x32xf32>
    %687 = tpu.concatenate %624, %606 in 1 : vector<8x32xf32>, vector<8x32xf32> -> vector<8x64xf32>
    %c0_164 = arith.constant 0 : index
    %c0_165 = arith.constant 0 : index
    %c0_166 = arith.constant 0 : index
    %688 = vector.load %arg4[%c0_164, %c0_165, %c0_166] : memref<3x64x128xf32, #tpu.memory_space<vmem>>, vector<1x64x128xf32>
    %689 = vector.shape_cast %688 : vector<1x64x128xf32> to vector<64x128xf32>
    %cst_167 = arith.constant dense<0.000000e+00> : vector<8x128xf32>
    %690 = tpu.matmul %687, %689, %cst_167 {dimension_numbers = #tpu.dot_dimension_numbers<[1], [0], [0], [1], [0, 0, 1, 1], [], []>} : vector<8x64xf32>, vector<64x128xf32>, vector<8x128xf32> -> vector<8x128xf32>
    %691 = vector.broadcast %69 : vector<1x128xf32> to vector<8x128xf32>
    %692 = arith.addf %690, %691 : vector<8x128xf32>
    %693 = vector.extract_strided_slice %692 {offsets = [0, 0], sizes = [8, 96], strides = [1, 1]} : vector<8x128xf32> to vector<8x96xf32>
    %694 = arith.negf %693 : vector<8x96xf32>
    %695 = math.exp %694 : vector<8x96xf32>
    %cst_168 = arith.constant 1.000000e+00 : f32
    %696 = vector.broadcast %cst_168 : f32 to vector<8x96xf32>
    %697 = arith.addf %696, %695 : vector<8x96xf32>
    %698 = arith.divf %696, %697 : vector<8x96xf32>
    %699 = vector.extract_strided_slice %692 {offsets = [0, 96], sizes = [8, 32], strides = [1, 1]} : vector<8x128xf32> to vector<8x32xf32>
    %700 = math.tanh %699 : vector<8x32xf32>
    %701 = vector.extract_strided_slice %698 {offsets = [0, 32], sizes = [8, 32], strides = [1, 1]} : vector<8x96xf32> to vector<8x32xf32>
    %702 = arith.mulf %701, %603 : vector<8x32xf32>
    %703 = vector.extract_strided_slice %698 {offsets = [0, 0], sizes = [8, 32], strides = [1, 1]} : vector<8x96xf32> to vector<8x32xf32>
    %704 = arith.mulf %703, %700 : vector<8x32xf32>
    %705 = arith.addf %702, %704 : vector<8x32xf32>
    %706 = vector.extract_strided_slice %698 {offsets = [0, 64], sizes = [8, 32], strides = [1, 1]} : vector<8x96xf32> to vector<8x32xf32>
    %707 = math.tanh %705 : vector<8x32xf32>
    %708 = arith.mulf %706, %707 : vector<8x32xf32>
    %cst_169 = arith.constant -5.000000e+01 : f32
    %cst_170 = arith.constant 5.000000e+01 : f32
    %709 = vector.broadcast %cst_169 : f32 to vector<8x32xf32>
    %710 = arith.maximumf %709, %708 : vector<8x32xf32>
    %711 = vector.broadcast %cst_170 : f32 to vector<8x32xf32>
    %712 = arith.minimumf %711, %710 : vector<8x32xf32>
    %713 = vector.extract_strided_slice %712 {offsets = [0, 0], sizes = [2, 32], strides = [1, 1]} : vector<8x32xf32> to vector<2x32xf32>
    %c1_171 = arith.constant 1 : index
    %c0_172 = arith.constant 0 : index
    %c0_173 = arith.constant 0 : index
    %714 = vector.load %arg7[%c1_171, %c0_172, %c0_173] : memref<4x2x32xf32, #tpu.memory_space<vmem>>, vector<1x2x32xf32>
    %715 = vector.shape_cast %714 : vector<1x2x32xf32> to vector<2x32xf32>
    %716 = vector.shape_cast %713 : vector<2x32xf32> to vector<1x2x32xf32>
    tpu.vector_store %arg7[%c1_171, %c0_172, %c0_173], %716 {strides = array<i32>} : memref<4x2x32xf32, #tpu.memory_space<vmem>>, vector<1x2x32xf32>,
    %cst_174 = arith.constant -5.000000e+01 : f32
    %cst_175 = arith.constant 5.000000e+01 : f32
    %717 = vector.broadcast %cst_174 : f32 to vector<8x32xf32>
    %718 = arith.maximumf %717, %705 : vector<8x32xf32>
    %719 = vector.broadcast %cst_175 : f32 to vector<8x32xf32>
    %720 = arith.minimumf %719, %718 : vector<8x32xf32>
    %721 = vector.extract_strided_slice %720 {offsets = [0, 0], sizes = [2, 32], strides = [1, 1]} : vector<8x32xf32> to vector<2x32xf32>
    %c1_176 = arith.constant 1 : index
    %c0_177 = arith.constant 0 : index
    %c0_178 = arith.constant 0 : index
    %722 = vector.load %arg8[%c1_176, %c0_177, %c0_178] : memref<4x2x32xf32, #tpu.memory_space<vmem>>, vector<1x2x32xf32>
    %723 = vector.shape_cast %722 : vector<1x2x32xf32> to vector<2x32xf32>
    %724 = vector.shape_cast %721 : vector<2x32xf32> to vector<1x2x32xf32>
    tpu.vector_store %arg8[%c1_176, %c0_177, %c0_178], %724 {strides = array<i32>} : memref<4x2x32xf32, #tpu.memory_space<vmem>>, vector<1x2x32xf32>,
    %725 = tpu.concatenate %686, %662 in 1 : vector<8x32xf32>, vector<8x32xf32> -> vector<8x64xf32>
    %c2_179 = arith.constant 2 : index
    %c0_180 = arith.constant 0 : index
    %c0_181 = arith.constant 0 : index
    %726 = vector.load %arg4[%c2_179, %c0_180, %c0_181] : memref<3x64x128xf32, #tpu.memory_space<vmem>>, vector<1x64x128xf32>
    %727 = vector.shape_cast %726 : vector<1x64x128xf32> to vector<64x128xf32>
    %cst_182 = arith.constant dense<0.000000e+00> : vector<8x128xf32>
    %728 = tpu.matmul %725, %727, %cst_182 {dimension_numbers = #tpu.dot_dimension_numbers<[1], [0], [0], [1], [0, 0, 1, 1], [], []>} : vector<8x64xf32>, vector<64x128xf32>, vector<8x128xf32> -> vector<8x128xf32>
    %729 = vector.broadcast %73 : vector<1x128xf32> to vector<8x128xf32>
    %730 = arith.addf %728, %729 : vector<8x128xf32>
    %731 = vector.extract_strided_slice %730 {offsets = [0, 0], sizes = [8, 96], strides = [1, 1]} : vector<8x128xf32> to vector<8x96xf32>
    %732 = arith.negf %731 : vector<8x96xf32>
    %733 = math.exp %732 : vector<8x96xf32>
    %cst_183 = arith.constant 1.000000e+00 : f32
    %734 = vector.broadcast %cst_183 : f32 to vector<8x96xf32>
    %735 = arith.addf %734, %733 : vector<8x96xf32>
    %736 = arith.divf %734, %735 : vector<8x96xf32>
    %737 = vector.extract_strided_slice %730 {offsets = [0, 96], sizes = [8, 32], strides = [1, 1]} : vector<8x128xf32> to vector<8x32xf32>
    %738 = math.tanh %737 : vector<8x32xf32>
    %739 = vector.extract_strided_slice %736 {offsets = [0, 32], sizes = [8, 32], strides = [1, 1]} : vector<8x96xf32> to vector<8x32xf32>
    %740 = arith.mulf %739, %659 : vector<8x32xf32>
    %741 = vector.extract_strided_slice %736 {offsets = [0, 0], sizes = [8, 32], strides = [1, 1]} : vector<8x96xf32> to vector<8x32xf32>
    %742 = arith.mulf %741, %738 : vector<8x32xf32>
    %743 = arith.addf %740, %742 : vector<8x32xf32>
    %744 = vector.extract_strided_slice %736 {offsets = [0, 64], sizes = [8, 32], strides = [1, 1]} : vector<8x96xf32> to vector<8x32xf32>
    %745 = math.tanh %743 : vector<8x32xf32>
    %746 = arith.mulf %744, %745 : vector<8x32xf32>
    %747 = vector.extract_strided_slice %746 {offsets = [0, 0], sizes = [2, 32], strides = [1, 1]} : vector<8x32xf32> to vector<2x32xf32>
    %c0_184 = arith.constant 0 : index
    %c192 = arith.constant 192 : index
    %748 = vector.load %arg6[%c0_184, %c192] : memref<2x256xf32, #tpu.memory_space<vmem>>, vector<2x32xf32>
    tpu.vector_store %arg6[%c0_184, %c192], %747 {strides = array<i32>} : memref<2x256xf32, #tpu.memory_space<vmem>>, vector<2x32xf32>,
    %749 = tpu.concatenate %708, %686 in 1 : vector<8x32xf32>, vector<8x32xf32> -> vector<8x64xf32>
    %c1_185 = arith.constant 1 : index
    %c0_186 = arith.constant 0 : index
    %c0_187 = arith.constant 0 : index
    %750 = vector.load %arg4[%c1_185, %c0_186, %c0_187] : memref<3x64x128xf32, #tpu.memory_space<vmem>>, vector<1x64x128xf32>
    %751 = vector.shape_cast %750 : vector<1x64x128xf32> to vector<64x128xf32>
    %cst_188 = arith.constant dense<0.000000e+00> : vector<8x128xf32>
    %752 = tpu.matmul %749, %751, %cst_188 {dimension_numbers = #tpu.dot_dimension_numbers<[1], [0], [0], [1], [0, 0, 1, 1], [], []>} : vector<8x64xf32>, vector<64x128xf32>, vector<8x128xf32> -> vector<8x128xf32>
    %753 = vector.broadcast %71 : vector<1x128xf32> to vector<8x128xf32>
    %754 = arith.addf %752, %753 : vector<8x128xf32>
    %755 = vector.extract_strided_slice %754 {offsets = [0, 0], sizes = [8, 96], strides = [1, 1]} : vector<8x128xf32> to vector<8x96xf32>
    %756 = arith.negf %755 : vector<8x96xf32>
    %757 = math.exp %756 : vector<8x96xf32>
    %cst_189 = arith.constant 1.000000e+00 : f32
    %758 = vector.broadcast %cst_189 : f32 to vector<8x96xf32>
    %759 = arith.addf %758, %757 : vector<8x96xf32>
    %760 = arith.divf %758, %759 : vector<8x96xf32>
    %761 = vector.extract_strided_slice %754 {offsets = [0, 96], sizes = [8, 32], strides = [1, 1]} : vector<8x128xf32> to vector<8x32xf32>
    %762 = math.tanh %761 : vector<8x32xf32>
    %763 = vector.extract_strided_slice %760 {offsets = [0, 32], sizes = [8, 32], strides = [1, 1]} : vector<8x96xf32> to vector<8x32xf32>
    %764 = arith.mulf %763, %683 : vector<8x32xf32>
    %765 = vector.extract_strided_slice %760 {offsets = [0, 0], sizes = [8, 32], strides = [1, 1]} : vector<8x96xf32> to vector<8x32xf32>
    %766 = arith.mulf %765, %762 : vector<8x32xf32>
    %767 = arith.addf %764, %766 : vector<8x32xf32>
    %768 = vector.extract_strided_slice %760 {offsets = [0, 64], sizes = [8, 32], strides = [1, 1]} : vector<8x96xf32> to vector<8x32xf32>
    %769 = math.tanh %767 : vector<8x32xf32>
    %770 = arith.mulf %768, %769 : vector<8x32xf32>
    %cst_190 = arith.constant -5.000000e+01 : f32
    %cst_191 = arith.constant 5.000000e+01 : f32
    %771 = vector.broadcast %cst_190 : f32 to vector<8x32xf32>
    %772 = arith.maximumf %771, %770 : vector<8x32xf32>
    %773 = vector.broadcast %cst_191 : f32 to vector<8x32xf32>
    %774 = arith.minimumf %773, %772 : vector<8x32xf32>
    %775 = vector.extract_strided_slice %774 {offsets = [0, 0], sizes = [2, 32], strides = [1, 1]} : vector<8x32xf32> to vector<2x32xf32>
    %c2_192 = arith.constant 2 : index
    %c0_193 = arith.constant 0 : index
    %c0_194 = arith.constant 0 : index
    %776 = vector.load %arg7[%c2_192, %c0_193, %c0_194] : memref<4x2x32xf32, #tpu.memory_space<vmem>>, vector<1x2x32xf32>
    %777 = vector.shape_cast %776 : vector<1x2x32xf32> to vector<2x32xf32>
    %778 = vector.shape_cast %775 : vector<2x32xf32> to vector<1x2x32xf32>
    tpu.vector_store %arg7[%c2_192, %c0_193, %c0_194], %778 {strides = array<i32>} : memref<4x2x32xf32, #tpu.memory_space<vmem>>, vector<1x2x32xf32>,
    %cst_195 = arith.constant -5.000000e+01 : f32
    %cst_196 = arith.constant 5.000000e+01 : f32
    %779 = vector.broadcast %cst_195 : f32 to vector<8x32xf32>
    %780 = arith.maximumf %779, %767 : vector<8x32xf32>
    %781 = vector.broadcast %cst_196 : f32 to vector<8x32xf32>
    %782 = arith.minimumf %781, %780 : vector<8x32xf32>
    %783 = vector.extract_strided_slice %782 {offsets = [0, 0], sizes = [2, 32], strides = [1, 1]} : vector<8x32xf32> to vector<2x32xf32>
    %c2_197 = arith.constant 2 : index
    %c0_198 = arith.constant 0 : index
    %c0_199 = arith.constant 0 : index
    %784 = vector.load %arg8[%c2_197, %c0_198, %c0_199] : memref<4x2x32xf32, #tpu.memory_space<vmem>>, vector<1x2x32xf32>
    %785 = vector.shape_cast %784 : vector<1x2x32xf32> to vector<2x32xf32>
    %786 = vector.shape_cast %783 : vector<2x32xf32> to vector<1x2x32xf32>
    tpu.vector_store %arg8[%c2_197, %c0_198, %c0_199], %786 {strides = array<i32>} : memref<4x2x32xf32, #tpu.memory_space<vmem>>, vector<1x2x32xf32>,
    %787 = tpu.concatenate %770, %746 in 1 : vector<8x32xf32>, vector<8x32xf32> -> vector<8x64xf32>
    %c2_200 = arith.constant 2 : index
    %c0_201 = arith.constant 0 : index
    %c0_202 = arith.constant 0 : index
    %788 = vector.load %arg4[%c2_200, %c0_201, %c0_202] : memref<3x64x128xf32, #tpu.memory_space<vmem>>, vector<1x64x128xf32>
    %789 = vector.shape_cast %788 : vector<1x64x128xf32> to vector<64x128xf32>
    %cst_203 = arith.constant dense<0.000000e+00> : vector<8x128xf32>
    %790 = tpu.matmul %787, %789, %cst_203 {dimension_numbers = #tpu.dot_dimension_numbers<[1], [0], [0], [1], [0, 0, 1, 1], [], []>} : vector<8x64xf32>, vector<64x128xf32>, vector<8x128xf32> -> vector<8x128xf32>
    %791 = vector.broadcast %73 : vector<1x128xf32> to vector<8x128xf32>
    %792 = arith.addf %790, %791 : vector<8x128xf32>
    %793 = vector.extract_strided_slice %792 {offsets = [0, 0], sizes = [8, 96], strides = [1, 1]} : vector<8x128xf32> to vector<8x96xf32>
    %794 = arith.negf %793 : vector<8x96xf32>
    %795 = math.exp %794 : vector<8x96xf32>
    %cst_204 = arith.constant 1.000000e+00 : f32
    %796 = vector.broadcast %cst_204 : f32 to vector<8x96xf32>
    %797 = arith.addf %796, %795 : vector<8x96xf32>
    %798 = arith.divf %796, %797 : vector<8x96xf32>
    %799 = vector.extract_strided_slice %792 {offsets = [0, 96], sizes = [8, 32], strides = [1, 1]} : vector<8x128xf32> to vector<8x32xf32>
    %800 = math.tanh %799 : vector<8x32xf32>
    %801 = vector.extract_strided_slice %798 {offsets = [0, 32], sizes = [8, 32], strides = [1, 1]} : vector<8x96xf32> to vector<8x32xf32>
    %802 = arith.mulf %801, %743 : vector<8x32xf32>
    %803 = vector.extract_strided_slice %798 {offsets = [0, 0], sizes = [8, 32], strides = [1, 1]} : vector<8x96xf32> to vector<8x32xf32>
    %804 = arith.mulf %803, %800 : vector<8x32xf32>
    %805 = arith.addf %802, %804 : vector<8x32xf32>
    %806 = vector.extract_strided_slice %798 {offsets = [0, 64], sizes = [8, 32], strides = [1, 1]} : vector<8x96xf32> to vector<8x32xf32>
    %807 = math.tanh %805 : vector<8x32xf32>
    %808 = arith.mulf %806, %807 : vector<8x32xf32>
    %809 = vector.extract_strided_slice %808 {offsets = [0, 0], sizes = [2, 32], strides = [1, 1]} : vector<8x32xf32> to vector<2x32xf32>
    %c0_205 = arith.constant 0 : index
    %c224 = arith.constant 224 : index
    %810 = vector.load %arg6[%c0_205, %c224] : memref<2x256xf32, #tpu.memory_space<vmem>>, vector<2x32xf32>
    tpu.vector_store %arg6[%c0_205, %c224], %809 {strides = array<i32>} : memref<2x256xf32, #tpu.memory_space<vmem>>, vector<2x32xf32>,
    %cst_206 = arith.constant -5.000000e+01 : f32
    %cst_207 = arith.constant 5.000000e+01 : f32
    %811 = vector.broadcast %cst_206 : f32 to vector<8x32xf32>
    %812 = arith.maximumf %811, %808 : vector<8x32xf32>
    %813 = vector.broadcast %cst_207 : f32 to vector<8x32xf32>
    %814 = arith.minimumf %813, %812 : vector<8x32xf32>
    %815 = vector.extract_strided_slice %814 {offsets = [0, 0], sizes = [2, 32], strides = [1, 1]} : vector<8x32xf32> to vector<2x32xf32>
    %c3_208 = arith.constant 3 : index
    %c0_209 = arith.constant 0 : index
    %c0_210 = arith.constant 0 : index
    %816 = vector.load %arg7[%c3_208, %c0_209, %c0_210] : memref<4x2x32xf32, #tpu.memory_space<vmem>>, vector<1x2x32xf32>
    %817 = vector.shape_cast %816 : vector<1x2x32xf32> to vector<2x32xf32>
    %818 = vector.shape_cast %815 : vector<2x32xf32> to vector<1x2x32xf32>
    tpu.vector_store %arg7[%c3_208, %c0_209, %c0_210], %818 {strides = array<i32>} : memref<4x2x32xf32, #tpu.memory_space<vmem>>, vector<1x2x32xf32>,
    %cst_211 = arith.constant -5.000000e+01 : f32
    %cst_212 = arith.constant 5.000000e+01 : f32
    %819 = vector.broadcast %cst_211 : f32 to vector<8x32xf32>
    %820 = arith.maximumf %819, %805 : vector<8x32xf32>
    %821 = vector.broadcast %cst_212 : f32 to vector<8x32xf32>
    %822 = arith.minimumf %821, %820 : vector<8x32xf32>
    %823 = vector.extract_strided_slice %822 {offsets = [0, 0], sizes = [2, 32], strides = [1, 1]} : vector<8x32xf32> to vector<2x32xf32>
    %c3_213 = arith.constant 3 : index
    %c0_214 = arith.constant 0 : index
    %c0_215 = arith.constant 0 : index
    %824 = vector.load %arg8[%c3_213, %c0_214, %c0_215] : memref<4x2x32xf32, #tpu.memory_space<vmem>>, vector<1x2x32xf32>
    %825 = vector.shape_cast %824 : vector<1x2x32xf32> to vector<2x32xf32>
    %826 = vector.shape_cast %823 : vector<2x32xf32> to vector<1x2x32xf32>
    tpu.vector_store %arg8[%c3_213, %c0_214, %c0_215], %826 {strides = array<i32>} : memref<4x2x32xf32, #tpu.memory_space<vmem>>, vector<1x2x32xf32>,
    return
  }
}

</mosaic_0001>

<llo_original>
// kernel: encoder_forward.1
$region0: #{encoder_forward.1}
  #allocation0 [shape = 'u32[]', space=smem, size = 0x4, offset = 0x4, fixed_abs, tag = 'smem constant byte address 0x4 - core index']
  #allocation1 [shape = 'u32[72,128]{1,0:T(1,128)}', space=vmem, size = 0x9000, scoped, tag = 'internal scratch']
  %s0 = inlined_call_operand.vmem [shape: s32[8,8], index: 0, kind: input, shape index: {}]
  %s1 = inlined_call_operand.hbm [shape: f32[24,128], index: 1, kind: input, shape index: {}]
  %s2 = inlined_call_operand.hbm [shape: f32[32,128], index: 2, kind: input, shape index: {}]
  %s3 = inlined_call_operand.vmem [shape: f32[1,128], index: 3, kind: input, shape index: {}]
  %s4 = inlined_call_operand.hbm [shape: f32[3,64,128], index: 4, kind: input, shape index: {}]
  %s5 = inlined_call_operand.vmem [shape: f32[3,1,128], index: 5, kind: input, shape index: {}]
  %s6 = inlined_call_operand.vmem [shape: f32[2,256], index: 6, kind: output, shape index: {0}]
  %s7 = inlined_call_operand.hbm [shape: f32[4,2,32], index: 7, kind: output, shape index: {1}]
  %s8 = inlined_call_operand.hbm [shape: f32[4,2,32], index: 8, kind: output, shape index: {2}]
  %9 = xla_tuple %s6, %s7, %s8
  %s10 = sld [smem:[#allocation0]]
  $region62: #{encoder_forward.1} parent=0
    _
  %s12 = ssub.s32 1, %s10
  %s13 = scalar_select 0, %s12, %s10
  $region1: #{encoder_forward.1} parent=0
    #allocation2 [shape = 'u8[12288]{0}', space=vmem, size = 0x3000, scoped, tag = 'input window, operand 1, single buffered']
    #allocation3 [shape = 's32[1]{0}', space=sflag, size = 0x4, scoped, tag = 'scoped memory for encoder_forward.1']
    #allocation4 [shape = 's32[1]{0}', space=sflag, size = 0x4, scoped, tag = 'scoped memory for encoder_forward.1']
    #allocation5 [shape = 'u8[16384]{0}', space=vmem, size = 0x4000, scoped, tag = 'input window, operand 2, single buffered']
    #allocation6 [shape = 's32[1]{0}', space=sflag, size = 0x4, scoped, tag = 'scoped memory for encoder_forward.1']
    #allocation7 [shape = 'u8[98304]{0}', space=vmem, size = 0x18000, scoped, tag = 'input window, operand 4, single buffered']
    #allocation8 [shape = 'u8[4096]{0}', space=vmem, size = 0x1000, scoped, tag = 'output window, operand 1, single buffered']
    #allocation9 [shape = 'u8[4096]{0}', space=vmem, size = 0x1000, scoped, tag = 'output window, operand 2, single buffered']
    #allocation10 [shape = 's32[1]{0}', space=sflag, size = 0x4, scoped, tag = 'scoped memory for encoder_forward.1']
    %14 = vsyncpa [#allocation3], 0
    %15 = vsyncpa [#allocation6], 0
    %16 = vsyncpa [#allocation4], 0
    %17 = vsyncpa [#allocation10], 0
    // Predicated region
    $region2: #{encoder_forward.1} parent=1 // pred_check
      _
    $region3: #{encoder_forward.1} parent=1 // pred_check_branch
      %19 = sbr.rel (0) target = $region5
    $region4: #{encoder_forward.1} parent=1 // pred_region
      _
    $region5: #{encoder_forward.1} parent=1 // pred_fallthru
      _
    // Predicated region
    $region6: #{encoder_forward.1} parent=1 // pred_check
      _
    $region7: #{encoder_forward.1} parent=1 // pred_check_branch
      %21 = sbr.rel (0) target = $region9
    $region8: #{encoder_forward.1} parent=1 // pred_region
      %23 = vsyncadd [#allocation3], 0
      %s24 = sshll.u32 %s1, 4
      %s25 = int_to_ptr.hbm [resolvable:$true] %s24
      %s26 = sshll.u32 [#allocation2], 4
      %s27 = int_to_ptr.vmem [resolvable:$true] %s26
      %32 = dma.hbm_to_vmem [thread:$0]  %s25, 384, %s27, [#allocation3], 128, 128, 8
    $region9: #{encoder_forward.1} parent=1 // pred_fallthru
      _
    // Predicated region
    $region10: #{encoder_forward.1} parent=1 // pred_check
      _
    $region11: #{encoder_forward.1} parent=1 // pred_check_branch
      %34 = sbr.rel (0) target = $region13
    $region12: #{encoder_forward.1} parent=1 // pred_region
      %36 = vsyncadd [#allocation6], 0
      %s37 = sshll.u32 %s2, 4
      %s38 = int_to_ptr.hbm [resolvable:$true] %s37
      %s39 = sshll.u32 [#allocation5], 4
      %s40 = int_to_ptr.vmem [resolvable:$true] %s39
      %45 = dma.hbm_to_vmem [thread:$0]  %s38, 512, %s40, [#allocation6], 128, 128, 8
    $region13: #{encoder_forward.1} parent=1 // pred_fallthru
      _
    // Predicated region
    $region14: #{encoder_forward.1} parent=1 // pred_check
      _
    $region15: #{encoder_forward.1} parent=1 // pred_check_branch
      %47 = sbr.rel (0) target = $region17
    $region16: #{encoder_forward.1} parent=1 // pred_region
      _
    $region17: #{encoder_forward.1} parent=1 // pred_fallthru
      _
    // Predicated region
    $region18: #{encoder_forward.1} parent=1 // pred_check
      _
    $region19: #{encoder_forward.1} parent=1 // pred_check_branch
      %49 = sbr.rel (0) target = $region21
    $region20: #{encoder_forward.1} parent=1 // pred_region
      %51 = vsyncadd [#allocation6], 0
      %s52 = sshll.u32 %s4, 4
      %s53 = int_to_ptr.hbm [resolvable:$true] %s52
      %s54 = sshll.u32 [#allocation7], 4
      %s55 = int_to_ptr.vmem [resolvable:$true] %s54
      %60 = dma.hbm_to_vmem [thread:$0]  %s53, 3072, %s55, [#allocation6], 128, 128, 8
    $region21: #{encoder_forward.1} parent=1 // pred_fallthru
      _
    // Predicated region
    $region22: #{encoder_forward.1} parent=1 // pred_check
      _
    $region23: #{encoder_forward.1} parent=1 // pred_check_branch
      %62 = sbr.rel (0) target = $region25
    $region24: #{encoder_forward.1} parent=1 // pred_region
      _
    $region25: #{encoder_forward.1} parent=1 // pred_fallthru
      _
    // Predicated region
    $region26: #{encoder_forward.1} parent=1 // pred_check
      _
    $region27: #{encoder_forward.1} parent=1 // pred_check_branch
      %64 = sbr.rel (0) target = $region29
    $region28: #{encoder_forward.1} parent=1 // pred_region
      %66 = dma.done [#allocation3], 384
    $region29: #{encoder_forward.1} parent=1 // pred_fallthru
      _
    // Predicated region
    $region30: #{encoder_forward.1} parent=1 // pred_check
      _
    $region31: #{encoder_forward.1} parent=1 // pred_check_branch
      %68 = sbr.rel (0) target = $region33
    $region32: #{encoder_forward.1} parent=1 // pred_region
      %70 = dma.done [#allocation6], 512
    $region33: #{encoder_forward.1} parent=1 // pred_fallthru
      _
    // Predicated region
    $region34: #{encoder_forward.1} parent=1 // pred_check
      _
    $region35: #{encoder_forward.1} parent=1 // pred_check_branch
      %72 = sbr.rel (0) target = $region37
    $region36: #{encoder_forward.1} parent=1 // pred_region
      %74 = dma.done [#allocation6], 3072
    $region37: #{encoder_forward.1} parent=1 // pred_fallthru
      _
    %v75 = vld [vmem:[#allocation2] sm:$0xff]
    %v76 = vld [vmem:[#allocation2 + $0x8] sm:$0xff]
    %v77 = vld [vmem:[#allocation2 + $0x10] sm:$0xff]
    %v78 = vld [vmem:[%s3] sm:$0x1]
    %v79 = vlaneseq
    %v80 = vand.u32 %v79, 127
    %v81 = vld [vmem:[%s0] sm:$0xff]
    %82 = vset.pattern.permute.xlu0 0
    %83 = vperm.xlu0 %82, %v81
    %v84 = vpop.permute.xlu0 %83
    %vm85 = vcmp.eq.s32.totalorder %v80, %v84
    %v86 = vsel %vm85, 1, 0
    %v87 = vcvt.s32.f32 %v86
    %v89 = vperm.slane %v78, 0
    %vm91 = vcmask 195584
    %v93 = vsel %vm91, %v87, 0
    %95 = vmatpush.msra.mxu0 0.0
    %96 = vmatpush.msra.mxu0 0.0
    %97 = vmatpush.msra.mxu0 0.0
    %98 = vmatpush.msra.mxu0 0.0
    %99 = vmatpush.msra.mxu0 0.0
    %100 = vmatpush.msra.mxu0 0.0
    %101 = vmatpush.msra.mxu0 0.0
    %102 = vmatpush.msra.mxu0 0.0
    %103 = vmatpush.msra.mxu0 0.0
    %104 = vmatpush.msra.mxu0 0.0
    %105 = vmatpush.msra.mxu0 0.0
    %106 = vmatpush.msra.mxu0 0.0
    %107 = vmatpush.msra.mxu0 0.0
    %108 = vmatpush.msra.mxu0 %v77
    %109 = vmatpush.msra.mxu0 %v76
    %110 = vmatpush.msra.mxu0 %v75
    %111 = vmatmul.f32.gmra.mxu0 %v93
    %v112 = vpop.f32.mrf.mxu0
    %v113 = vadd.f32 %v89, %v112
    %114 = vdwg.mxu0
    %115 = vset.pattern.permute.xlu0 1
    %116 = vperm.xlu0 %115, %v81
    %v117 = vpop.permute.xlu0 %116
    %vm118 = vcmp.eq.s32.totalorder %v80, %v117
    %v119 = vsel %vm118, 1, 0
    %v120 = vcvt.s32.f32 %v119
    %v122 = vsel %vm91, %v120, 0
    %124 = vmatpush.msra.mxu0 0.0
    %125 = vmatpush.msra.mxu0 0.0
    %126 = vmatpush.msra.mxu0 0.0
    %127 = vmatpush.msra.mxu0 0.0
    %128 = vmatpush.msra.mxu0 0.0
    %129 = vmatpush.msra.mxu0 0.0
    %130 = vmatpush.msra.mxu0 0.0
    %131 = vmatpush.msra.mxu0 0.0
    %132 = vmatpush.msra.mxu0 0.0
    %133 = vmatpush.msra.mxu0 0.0
    %134 = vmatpush.msra.mxu0 0.0
    %135 = vmatpush.msra.mxu0 0.0
    %136 = vmatpush.msra.mxu0 0.0
    %137 = vmatpush.msra.mxu0 %v77
    %138 = vmatpush.msra.mxu0 %v76
    %139 = vmatpush.msra.mxu0 %v75
    %140 = vmatmul.f32.gmra.mxu0 %v122
    %v141 = vpop.f32.mrf.mxu0
    %v142 = vadd.f32 %v89, %v141
    %143 = vdwg.mxu0
    %144 = vset.pattern.permute.xlu0 2
    %145 = vperm.xlu0 %144, %v81
    %v146 = vpop.permute.xlu0 %145
    %vm147 = vcmp.eq.s32.totalorder %v80, %v146
    %v148 = vsel %vm147, 1, 0
    %v149 = vcvt.s32.f32 %v148
    %v151 = vsel %vm91, %v149, 0
    %153 = vmatpush.msra.mxu0 0.0
    %154 = vmatpush.msra.mxu0 0.0
    %155 = vmatpush.msra.mxu0 0.0
    %156 = vmatpush.msra.mxu0 0.0
    %157 = vmatpush.msra.mxu0 0.0
    %158 = vmatpush.msra.mxu0 0.0
    %159 = vmatpush.msra.mxu0 0.0
    %160 = vmatpush.msra.mxu0 0.0
    %161 = vmatpush.msra.mxu0 0.0
    %162 = vmatpush.msra.mxu0 0.0
    %163 = vmatpush.msra.mxu0 0.0
    %164 = vmatpush.msra.mxu0 0.0
    %165 = vmatpush.msra.mxu0 0.0
    %166 = vmatpush.msra.mxu0 %v77
    %167 = vmatpush.msra.mxu0 %v76
    %168 = vmatpush.msra.mxu0 %v75
    %169 = vmatmul.f32.gmra.mxu0 %v151
    %v170 = vpop.f32.mrf.mxu0
    %v171 = vadd.f32 %v89, %v170
    %172 = vdwg.mxu0
    %173 = vset.pattern.permute.xlu0 3
    %174 = vperm.xlu0 %173, %v81
    %v175 = vpop.permute.xlu0 %174
    %vm176 = vcmp.eq.s32.totalorder %v80, %v175
    %v177 = vsel %vm176, 1, 0
    %v178 = vcvt.s32.f32 %v177
    %v180 = vsel %vm91, %v178, 0
    %182 = vmatpush.msra.mxu0 0.0
    %183 = vmatpush.msra.mxu0 0.0
    %184 = vmatpush.msra.mxu0 0.0
    %185 = vmatpush.msra.mxu0 0.0
    %186 = vmatpush.msra.mxu0 0.0
    %187 = vmatpush.msra.mxu0 0.0
    %188 = vmatpush.msra.mxu0 0.0
    %189 = vmatpush.msra.mxu0 0.0
    %190 = vmatpush.msra.mxu0 0.0
    %191 = vmatpush.msra.mxu0 0.0
    %192 = vmatpush.msra.mxu0 0.0
    %193 = vmatpush.msra.mxu0 0.0
    %194 = vmatpush.msra.mxu0 0.0
    %195 = vmatpush.msra.mxu0 %v77
    %196 = vmatpush.msra.mxu0 %v76
    %197 = vmatpush.msra.mxu0 %v75
    %198 = vmatmul.f32.gmra.mxu0 %v180
    %v199 = vpop.f32.mrf.mxu0
    %v200 = vadd.f32 %v89, %v199
    %201 = vdwg.mxu0
    %202 = vset.pattern.permute.xlu0 4
    %203 = vperm.xlu0 %202, %v81
    %v204 = vpop.permute.xlu0 %203
    %vm205 = vcmp.eq.s32.totalorder %v80, %v204
    %v206 = vsel %vm205, 1, 0
    %v207 = vcvt.s32.f32 %v206
    %v209 = vsel %vm91, %v207, 0
    %211 = vmatpush.msra.mxu0 0.0
    %212 = vmatpush.msra.mxu0 0.0
    %213 = vmatpush.msra.mxu0 0.0
    %214 = vmatpush.msra.mxu0 0.0
    %215 = vmatpush.msra.mxu0 0.0
    %216 = vmatpush.msra.mxu0 0.0
    %217 = vmatpush.msra.mxu0 0.0
    %218 = vmatpush.msra.mxu0 0.0
    %219 = vmatpush.msra.mxu0 0.0
    %220 = vmatpush.msra.mxu0 0.0
    %221 = vmatpush.msra.mxu0 0.0
    %222 = vmatpush.msra.mxu0 0.0
    %223 = vmatpush.msra.mxu0 0.0
    %224 = vmatpush.msra.mxu0 %v77
    %225 = vmatpush.msra.mxu0 %v76
    %226 = vmatpush.msra.mxu0 %v75
    %227 = vmatmul.f32.gmra.mxu0 %v209
    %v228 = vpop.f32.mrf.mxu0
    %v229 = vadd.f32 %v89, %v228
    %230 = vdwg.mxu0
    %231 = vset.pattern.permute.xlu0 5
    %232 = vperm.xlu0 %231, %v81
    %v233 = vpop.permute.xlu0 %232
    %vm234 = vcmp.eq.s32.totalorder %v80, %v233
    %v235 = vsel %vm234, 1, 0
    %v236 = vcvt.s32.f32 %v235
    %v238 = vsel %vm91, %v236, 0
    %240 = vmatpush.msra.mxu0 0.0
    %241 = vmatpush.msra.mxu0 0.0
    %242 = vmatpush.msra.mxu0 0.0
    %243 = vmatpush.msra.mxu0 0.0
    %244 = vmatpush.msra.mxu0 0.0
    %245 = vmatpush.msra.mxu0 0.0
    %246 = vmatpush.msra.mxu0 0.0
    %247 = vmatpush.msra.mxu0 0.0
    %248 = vmatpush.msra.mxu0 0.0
    %249 = vmatpush.msra.mxu0 0.0
    %250 = vmatpush.msra.mxu0 0.0
    %251 = vmatpush.msra.mxu0 0.0
    %252 = vmatpush.msra.mxu0 0.0
    %253 = vmatpush.msra.mxu0 %v77
    %254 = vmatpush.msra.mxu0 %v76
    %255 = vmatpush.msra.mxu0 %v75
    %256 = vmatmul.f32.gmra.mxu0 %v238
    %v257 = vpop.f32.mrf.mxu0
    %v258 = vadd.f32 %v89, %v257
    %259 = vdwg.mxu0
    %260 = vset.pattern.permute.xlu0 6
    %261 = vperm.xlu0 %260, %v81
    %v262 = vpop.permute.xlu0 %261
    %vm263 = vcmp.eq.s32.totalorder %v80, %v262
    %v264 = vsel %vm263, 1, 0
    %v265 = vcvt.s32.f32 %v264
    %v267 = vsel %vm91, %v265, 0
    %269 = vmatpush.msra.mxu0 0.0
    %270 = vmatpush.msra.mxu0 0.0
    %271 = vmatpush.msra.mxu0 0.0
    %272 = vmatpush.msra.mxu0 0.0
    %273 = vmatpush.msra.mxu0 0.0
    %274 = vmatpush.msra.mxu0 0.0
    %275 = vmatpush.msra.mxu0 0.0
    %276 = vmatpush.msra.mxu0 0.0
    %277 = vmatpush.msra.mxu0 0.0
    %278 = vmatpush.msra.mxu0 0.0
    %279 = vmatpush.msra.mxu0 0.0
    %280 = vmatpush.msra.mxu0 0.0
    %281 = vmatpush.msra.mxu0 0.0
    %282 = vmatpush.msra.mxu0 %v77
    %283 = vmatpush.msra.mxu0 %v76
    %284 = vmatpush.msra.mxu0 %v75
    %285 = vmatmul.f32.gmra.mxu0 %v267
    %v286 = vpop.f32.mrf.mxu0
    %v287 = vadd.f32 %v89, %v286
    %288 = vdwg.mxu0
    %289 = vset.pattern.permute.xlu0 7
    %290 = vperm.xlu0 %289, %v81
    %v291 = vpop.permute.xlu0 %290
    %vm292 = vcmp.eq.s32.totalorder %v80, %v291
    %v293 = vsel %vm292, 1, 0
    %v294 = vcvt.s32.f32 %v293
    %v296 = vsel %vm91, %v294, 0
    %298 = vmatpush.msra.mxu0 0.0
    %299 = vmatpush.msra.mxu0 0.0
    %300 = vmatpush.msra.mxu0 0.0
    %301 = vmatpush.msra.mxu0 0.0
    %302 = vmatpush.msra.mxu0 0.0
    %303 = vmatpush.msra.mxu0 0.0
    %304 = vmatpush.msra.mxu0 0.0
    %305 = vmatpush.msra.mxu0 0.0
    %306 = vmatpush.msra.mxu0 0.0
    %307 = vmatpush.msra.mxu0 0.0
    %308 = vmatpush.msra.mxu0 0.0
    %309 = vmatpush.msra.mxu0 0.0
    %310 = vmatpush.msra.mxu0 0.0
    %311 = vmatpush.msra.mxu0 %v77
    %312 = vmatpush.msra.mxu0 %v76
    %313 = vmatpush.msra.mxu0 %v75
    %314 = vmatmul.f32.gmra.mxu0 %v296
    %v315 = vpop.f32.mrf.mxu0
    %v316 = vadd.f32 %v89, %v315
    %317 = vdwg.mxu0
    %v318 = vld [vmem:[#allocation5] sm:$0xff]
    %v319 = vld [vmem:[#allocation5 + $0x8] sm:$0xff]
    %v320 = vld [vmem:[#allocation5 + $0x10] sm:$0xff]
    %v321 = vld [vmem:[#allocation5 + $0x18] sm:$0xff]
    %v322 = vld [vmem:[%s5] sm:$0x1]
    %s323 = scalar_lea.vmem %s5, 1
    %v324 = vld [vmem:[%s323] sm:$0x1]
    %s325 = scalar_lea.vmem %s5, 2
    %v326 = vld [vmem:[%s325] sm:$0x1]
    %vm327 = vcmask 261120
    %v329 = vsel %vm327, 0.0, 0
    %331 = vmatpush.msra.mxu0 0.0
    %332 = vmatpush.msra.mxu0 0.0
    %333 = vmatpush.msra.mxu0 0.0
    %334 = vmatpush.msra.mxu0 0.0
    %335 = vmatpush.msra.mxu0 0.0
    %336 = vmatpush.msra.mxu0 0.0
    %337 = vmatpush.msra.mxu0 0.0
    %338 = vmatpush.msra.mxu0 0.0
    %339 = vmatpush.msra.mxu0 0.0
    %340 = vmatpush.msra.mxu0 0.0
    %341 = vmatpush.msra.mxu0 0.0
    %342 = vmatpush.msra.mxu0 0.0
    %343 = vmatpush.msra.mxu0 %v321
    %344 = vmatpush.msra.mxu0 %v320
    %345 = vmatpush.msra.mxu0 %v319
    %346 = vmatpush.msra.mxu0 %v318
    %347 = vmatmul.f32.gmra.mxu0 %v329
    %v348 = vpop.f32.mrf.mxu0
    %v349 = vadd.f32 0.0, %v348
    %350 = vdwg.mxu0
    %v351 = vadd.f32 %v113, %v349
    %v352 = vxor.u32 %v351, 2147483648
    %v353 = vmul.f32 %v352, 1.442695
    %v354 = vpow.pop %v353
    %v355 = vadd.f32 %v354, 1.0
    %v356 = vrcp.pop %v355
    %v357 = vmul.f32 %v355, %v356
    %v358 = vsub.f32 1.0, %v357
    %v359 = vmul.f32 %v356, %v358
    %v360 = vadd.f32 %v356, %v359
    %vm361 = vweird.f32 %v355
    %vm362 = vweird.f32 %v356
    %vm363 = vmor %vm361, %vm362
    %v364 = vsel %vm363, %v356, %v360
    %v365 = vand.u32 2147483647, %v355
    %vm366 = vcmp.eq.f32.partialorder %v365, 8.507059e+37
    %v367 = vand.u32 %v355, 2147483648
    %v368 = vor.u32 1.1754944e-38, %v367
    %v369 = vsel %vm366, %v368, %v364
    %v370 = vmul.f32 1.0, %v369
    %v371 = vtanh.pop %v351
    %v372 = vmul.f32 %v370, 0.0
    %374 = vrot.lane.b32.xlu0 %v371, 32
    %v375 = vpop.permute.xlu0 %374
    %v377 = vmul.f32 %v370, %v375
    %379 = vrot.lane.b32.xlu0 %v377, 32
    %v380 = vpop.permute.xlu0 %379
    %v382 = vadd.f32 %v372, %v380
    %v383 = vtanh.pop %v382
    %385 = vrot.lane.b32.xlu0 %v383, 32
    %v386 = vpop.permute.xlu0 %385
    %v388 = vmul.f32 %v370, %v386
    %390 = vrot.lane.b32.xlu0 %v388, 64
    %v391 = vpop.permute.xlu0 %390
    %v393 = vsel %vm327, %v391, 0.0
    %v394 = vld [vmem:[#allocation7] sm:$0xff]
    %v395 = vld [vmem:[#allocation7 + $0x8] sm:$0xff]
    %v396 = vld [vmem:[#allocation7 + $0x10] sm:$0xff]
    %v397 = vld [vmem:[#allocation7 + $0x18] sm:$0xff]
    %v398 = vld [vmem:[#allocation7 + $0x20] sm:$0xff]
    %v399 = vld [vmem:[#allocation7 + $0x28] sm:$0xff]
    %v400 = vld [vmem:[#allocation7 + $0x30] sm:$0xff]
    %v401 = vld [vmem:[#allocation7 + $0x38] sm:$0xff]
    %v403 = vperm.slane %v322, 0
    %vm405 = vcmask 523264
    %v407 = vsel %vm405, %v393, 0
    %409 = vmatpush.msra.mxu0 0.0
    %410 = vmatpush.msra.mxu0 0.0
    %411 = vmatpush.msra.mxu0 0.0
    %412 = vmatpush.msra.mxu0 0.0
    %413 = vmatpush.msra.mxu0 0.0
    %414 = vmatpush.msra.mxu0 0.0
    %415 = vmatpush.msra.mxu0 0.0
    %416 = vmatpush.msra.mxu0 0.0
    %417 = vmatpush.msra.mxu0 %v401
    %418 = vmatpush.msra.mxu0 %v400
    %419 = vmatpush.msra.mxu0 %v399
    %420 = vmatpush.msra.mxu0 %v398
    %421 = vmatpush.msra.mxu0 %v397
    %422 = vmatpush.msra.mxu0 %v396
    %423 = vmatpush.msra.mxu0 %v395
    %424 = vmatpush.msra.mxu0 %v394
    %425 = vmatmul.f32.gmra.mxu0 %v407
    %v426 = vpop.f32.mrf.mxu0
    %v427 = vadd.f32 %v403, %v426
    %428 = vdwg.mxu0
    %v429 = vxor.u32 %v427, 2147483648
    %v430 = vmul.f32 %v429, 1.442695
    %v431 = vpow.pop %v430
    %v432 = vadd.f32 %v431, 1.0
    %v433 = vrcp.pop %v432
    %v434 = vmul.f32 %v432, %v433
    %v435 = vsub.f32 1.0, %v434
    %v436 = vmul.f32 %v433, %v435
    %v437 = vadd.f32 %v433, %v436
    %vm438 = vweird.f32 %v432
    %vm439 = vweird.f32 %v433
    %vm440 = vmor %vm438, %vm439
    %v441 = vsel %vm440, %v433, %v437
    %v442 = vand.u32 2147483647, %v432
    %vm443 = vcmp.eq.f32.partialorder %v442, 8.507059e+37
    %v444 = vand.u32 %v432, 2147483648
    %v445 = vor.u32 1.1754944e-38, %v444
    %v446 = vsel %vm443, %v445, %v441
    %v447 = vmul.f32 1.0, %v446
    %v448 = vtanh.pop %v427
    %v449 = vmul.f32 %v447, 0.0
    %451 = vrot.lane.b32.xlu0 %v448, 32
    %v452 = vpop.permute.xlu0 %451
    %v454 = vmul.f32 %v447, %v452
    %456 = vrot.lane.b32.xlu0 %v454, 32
    %v457 = vpop.permute.xlu0 %456
    %v459 = vadd.f32 %v449, %v457
    %v460 = vtanh.pop %v459
    %462 = vrot.lane.b32.xlu0 %v460, 32
    %v463 = vpop.permute.xlu0 %462
    %v465 = vmul.f32 %v447, %v463
    %v466 = vsel %vm327, %v391, 0
    %468 = vmatpush.msra.mxu0 0.0
    %469 = vmatpush.msra.mxu0 0.0
    %470 = vmatpush.msra.mxu0 0.0
    %471 = vmatpush.msra.mxu0 0.0
    %472 = vmatpush.msra.mxu0 0.0
    %473 = vmatpush.msra.mxu0 0.0
    %474 = vmatpush.msra.mxu0 0.0
    %475 = vmatpush.msra.mxu0 0.0
    %476 = vmatpush.msra.mxu0 0.0
    %477 = vmatpush.msra.mxu0 0.0
    %478 = vmatpush.msra.mxu0 0.0
    %479 = vmatpush.msra.mxu0 0.0
    %480 = vmatpush.msra.mxu0 %v321
    %481 = vmatpush.msra.mxu0 %v320
    %482 = vmatpush.msra.mxu0 %v319
    %483 = vmatpush.msra.mxu0 %v318
    %484 = vmatmul.f32.gmra.mxu0 %v466
    %v485 = vpop.f32.mrf.mxu0
    %v486 = vadd.f32 0.0, %v485
    %487 = vdwg.mxu0
    %v488 = vadd.f32 %v142, %v486
    %v489 = vxor.u32 %v488, 2147483648
    %v490 = vmul.f32 %v489, 1.442695
    %v491 = vpow.pop %v490
    %v492 = vadd.f32 %v491, 1.0
    %v493 = vrcp.pop %v492
    %v494 = vmul.f32 %v492, %v493
    %v495 = vsub.f32 1.0, %v494
    %v496 = vmul.f32 %v493, %v495
    %v497 = vadd.f32 %v493, %v496
    %vm498 = vweird.f32 %v492
    %vm499 = vweird.f32 %v493
    %vm500 = vmor %vm498, %vm499
    %v501 = vsel %vm500, %v493, %v497
    %v502 = vand.u32 2147483647, %v492
    %vm503 = vcmp.eq.f32.partialorder %v502, 8.507059e+37
    %v504 = vand.u32 %v492, 2147483648
    %v505 = vor.u32 1.1754944e-38, %v504
    %v506 = vsel %vm503, %v505, %v501
    %v507 = vmul.f32 1.0, %v506
    %v508 = vtanh.pop %v488
    %v509 = vmul.f32 %v507, %v382
    %511 = vrot.lane.b32.xlu0 %v508, 32
    %v512 = vpop.permute.xlu0 %511
    %v514 = vmul.f32 %v507, %v512
    %516 = vrot.lane.b32.xlu0 %v514, 32
    %v517 = vpop.permute.xlu0 %516
    %v519 = vadd.f32 %v509, %v517
    %v520 = vtanh.pop %v519
    %522 = vrot.lane.b32.xlu0 %v520, 32
    %v523 = vpop.permute.xlu0 %522
    %v525 = vmul.f32 %v507, %v523
    %527 = vrot.lane.b32.xlu0 %v465, 64
    %v528 = vpop.permute.xlu0 %527
    %v530 = vsel %vm327, %v528, 0.0
    %s531 = scalar_lea.vmem [#allocation7], 64
    %v532 = vld [vmem:[%s531] sm:$0xff]
    %v533 = vld [vmem:[%s531 + $0x8] sm:$0xff]
    %v534 = vld [vmem:[%s531 + $0x10] sm:$0xff]
    %v535 = vld [vmem:[%s531 + $0x18] sm:$0xff]
    %v536 = vld [vmem:[%s531 + $0x20] sm:$0xff]
    %v537 = vld [vmem:[%s531 + $0x28] sm:$0xff]
    %v538 = vld [vmem:[%s531 + $0x30] sm:$0xff]
    %v539 = vld [vmem:[%s531 + $0x38] sm:$0xff]
    %v541 = vperm.slane %v324, 0
    %v544 = vsel %vm405, %v530, 0
    %546 = vmatpush.msra.mxu0 0.0
    %547 = vmatpush.msra.mxu0 0.0
    %548 = vmatpush.msra.mxu0 0.0
    %549 = vmatpush.msra.mxu0 0.0
    %550 = vmatpush.msra.mxu0 0.0
    %551 = vmatpush.msra.mxu0 0.0
    %552 = vmatpush.msra.mxu0 0.0
    %553 = vmatpush.msra.mxu0 0.0
    %554 = vmatpush.msra.mxu0 %v539
    %555 = vmatpush.msra.mxu0 %v538
    %556 = vmatpush.msra.mxu0 %v537
    %557 = vmatpush.msra.mxu0 %v536
    %558 = vmatpush.msra.mxu0 %v535
    %559 = vmatpush.msra.mxu0 %v534
    %560 = vmatpush.msra.mxu0 %v533
    %561 = vmatpush.msra.mxu0 %v532
    %562 = vmatmul.f32.gmra.mxu0 %v544
    %v563 = vpop.f32.mrf.mxu0
    %v564 = vadd.f32 %v541, %v563
    %565 = vdwg.mxu0
    %v566 = vxor.u32 %v564, 2147483648
    %v567 = vmul.f32 %v566, 1.442695
    %v568 = vpow.pop %v567
    %v569 = vadd.f32 %v568, 1.0
    %v570 = vrcp.pop %v569
    %v571 = vmul.f32 %v569, %v570
    %v572 = vsub.f32 1.0, %v571
    %v573 = vmul.f32 %v570, %v572
    %v574 = vadd.f32 %v570, %v573
    %vm575 = vweird.f32 %v569
    %vm576 = vweird.f32 %v570
    %vm577 = vmor %vm575, %vm576
    %v578 = vsel %vm577, %v570, %v574
    %v579 = vand.u32 2147483647, %v569
    %vm580 = vcmp.eq.f32.partialorder %v579, 8.507059e+37
    %v581 = vand.u32 %v569, 2147483648
    %v582 = vor.u32 1.1754944e-38, %v581
    %v583 = vsel %vm580, %v582, %v578
    %v584 = vmul.f32 1.0, %v583
    %v585 = vtanh.pop %v564
    %v586 = vmul.f32 %v584, 0.0
    %588 = vrot.lane.b32.xlu0 %v585, 32
    %v589 = vpop.permute.xlu0 %588
    %v591 = vmul.f32 %v584, %v589
    %593 = vrot.lane.b32.xlu0 %v591, 32
    %v594 = vpop.permute.xlu0 %593
    %v596 = vadd.f32 %v586, %v594
    %v597 = vtanh.pop %v596
    %599 = vrot.lane.b32.xlu0 %v597, 32
    %v600 = vpop.permute.xlu0 %599
    %v602 = vmul.f32 %v584, %v600
    %604 = vrot.lane.b32.xlu0 %v525, 64
    %v605 = vpop.permute.xlu0 %604
    %607 = vrot.lane.b32.xlu0 %v465, 96
    %v608 = vpop.permute.xlu0 %607
    %v610 = vsel %vm327, %v605, %v608
    %v612 = vsel %vm405, %v610, 0
    %614 = vmatpush.msra.mxu0 0.0
    %615 = vmatpush.msra.mxu0 0.0
    %616 = vmatpush.msra.mxu0 0.0
    %617 = vmatpush.msra.mxu0 0.0
    %618 = vmatpush.msra.mxu0 0.0
    %619 = vmatpush.msra.mxu0 0.0
    %620 = vmatpush.msra.mxu0 0.0
    %621 = vmatpush.msra.mxu0 0.0
    %622 = vmatpush.msra.mxu0 %v401
    %623 = vmatpush.msra.mxu0 %v400
    %624 = vmatpush.msra.mxu0 %v399
    %625 = vmatpush.msra.mxu0 %v398
    %626 = vmatpush.msra.mxu0 %v397
    %627 = vmatpush.msra.mxu0 %v396
    %628 = vmatpush.msra.mxu0 %v395
    %629 = vmatpush.msra.mxu0 %v394
    %630 = vmatmul.f32.gmra.mxu0 %v612
    %v631 = vpop.f32.mrf.mxu0
    %v632 = vadd.f32 %v403, %v631
    %633 = vdwg.mxu0
    %v634 = vxor.u32 %v632, 2147483648
    %v635 = vmul.f32 %v634, 1.442695
    %v636 = vpow.pop %v635
    %v637 = vadd.f32 %v636, 1.0
    %v638 = vrcp.pop %v637
    %v639 = vmul.f32 %v637, %v638
    %v640 = vsub.f32 1.0, %v639
    %v641 = vmul.f32 %v638, %v640
    %v642 = vadd.f32 %v638, %v641
    %vm643 = vweird.f32 %v637
    %vm644 = vweird.f32 %v638
    %vm645 = vmor %vm643, %vm644
    %v646 = vsel %vm645, %v638, %v642
    %v647 = vand.u32 2147483647, %v637
    %vm648 = vcmp.eq.f32.partialorder %v647, 8.507059e+37
    %v649 = vand.u32 %v637, 2147483648
    %v650 = vor.u32 1.1754944e-38, %v649
    %v651 = vsel %vm648, %v650, %v646
    %v652 = vmul.f32 1.0, %v651
    %v653 = vtanh.pop %v632
    %v654 = vmul.f32 %v652, %v459
    %656 = vrot.lane.b32.xlu0 %v653, 32
    %v657 = vpop.permute.xlu0 %656
    %v659 = vmul.f32 %v652, %v657
    %661 = vrot.lane.b32.xlu0 %v659, 32
    %v662 = vpop.permute.xlu0 %661
    %v664 = vadd.f32 %v654, %v662
    %v665 = vtanh.pop %v664
    %667 = vrot.lane.b32.xlu0 %v665, 32
    %v668 = vpop.permute.xlu0 %667
    %v670 = vmul.f32 %v652, %v668
    %v671 = vsel %vm327, %v605, 0
    %673 = vmatpush.msra.mxu0 0.0
    %674 = vmatpush.msra.mxu0 0.0
    %675 = vmatpush.msra.mxu0 0.0
    %676 = vmatpush.msra.mxu0 0.0
    %677 = vmatpush.msra.mxu0 0.0
    %678 = vmatpush.msra.mxu0 0.0
    %679 = vmatpush.msra.mxu0 0.0
    %680 = vmatpush.msra.mxu0 0.0
    %681 = vmatpush.msra.mxu0 0.0
    %682 = vmatpush.msra.mxu0 0.0
    %683 = vmatpush.msra.mxu0 0.0
    %684 = vmatpush.msra.mxu0 0.0
    %685 = vmatpush.msra.mxu0 %v321
    %686 = vmatpush.msra.mxu0 %v320
    %687 = vmatpush.msra.mxu0 %v319
    %688 = vmatpush.msra.mxu0 %v318
    %689 = vmatmul.f32.gmra.mxu0 %v671
    %v690 = vpop.f32.mrf.mxu0
    %v691 = vadd.f32 0.0, %v690
    %692 = vdwg.mxu0
    %v693 = vadd.f32 %v171, %v691
    %v694 = vxor.u32 %v693, 2147483648
    %v695 = vmul.f32 %v694, 1.442695
    %v696 = vpow.pop %v695
    %v697 = vadd.f32 %v696, 1.0
    %v698 = vrcp.pop %v697
    %v699 = vmul.f32 %v697, %v698
    %v700 = vsub.f32 1.0, %v699
    %v701 = vmul.f32 %v698, %v700
    %v702 = vadd.f32 %v698, %v701
    %vm703 = vweird.f32 %v697
    %vm704 = vweird.f32 %v698
    %vm705 = vmor %vm703, %vm704
    %v706 = vsel %vm705, %v698, %v702
    %v707 = vand.u32 2147483647, %v697
    %vm708 = vcmp.eq.f32.partialorder %v707, 8.507059e+37
    %v709 = vand.u32 %v697, 2147483648
    %v710 = vor.u32 1.1754944e-38, %v709
    %v711 = vsel %vm708, %v710, %v706
    %v712 = vmul.f32 1.0, %v711
    %v713 = vtanh.pop %v693
    %v714 = vmul.f32 %v712, %v519
    %716 = vrot.lane.b32.xlu0 %v713, 32
    %v717 = vpop.permute.xlu0 %716
    %v719 = vmul.f32 %v712, %v717
    %721 = vrot.lane.b32.xlu0 %v719, 32
    %v722 = vpop.permute.xlu0 %721
    %v724 = vadd.f32 %v714, %v722
    %v725 = vtanh.pop %v724
    %727 = vrot.lane.b32.xlu0 %v725, 32
    %v728 = vpop.permute.xlu0 %727
    %v730 = vmul.f32 %v712, %v728
    %732 = vrot.lane.b32.xlu0 %v602, 64
    %v733 = vpop.permute.xlu0 %732
    %v735 = vsel %vm327, %v733, 0.0
    %s736 = scalar_lea.vmem [#allocation7], 128
    %v737 = vld [vmem:[%s736] sm:$0xff]
    %v738 = vld [vmem:[%s736 + $0x8] sm:$0xff]
    %v739 = vld [vmem:[%s736 + $0x10] sm:$0xff]
    %v740 = vld [vmem:[%s736 + $0x18] sm:$0xff]
    %v741 = vld [vmem:[%s736 + $0x20] sm:$0xff]
    %v742 = vld [vmem:[%s736 + $0x28] sm:$0xff]
    %v743 = vld [vmem:[%s736 + $0x30] sm:$0xff]
    %v744 = vld [vmem:[%s736 + $0x38] sm:$0xff]
    %v746 = vperm.slane %v326, 0
    %v749 = vsel %vm405, %v735, 0
    %751 = vmatpush.msra.mxu0 0.0
    %752 = vmatpush.msra.mxu0 0.0
    %753 = vmatpush.msra.mxu0 0.0
    %754 = vmatpush.msra.mxu0 0.0
    %755 = vmatpush.msra.mxu0 0.0
    %756 = vmatpush.msra.mxu0 0.0
    %757 = vmatpush.msra.mxu0 0.0
    %758 = vmatpush.msra.mxu0 0.0
    %759 = vmatpush.msra.mxu0 %v744
    %760 = vmatpush.msra.mxu0 %v743
    %761 = vmatpush.msra.mxu0 %v742
    %762 = vmatpush.msra.mxu0 %v741
    %763 = vmatpush.msra.mxu0 %v740
    %764 = vmatpush.msra.mxu0 %v739
    %765 = vmatpush.msra.mxu0 %v738
    %766 = vmatpush.msra.mxu0 %v737
    %767 = vmatmul.f32.gmra.mxu0 %v749
    %v768 = vpop.f32.mrf.mxu0
    %v769 = vadd.f32 %v746, %v768
    %770 = vdwg.mxu0
    %v771 = vxor.u32 %v769, 2147483648
    %v772 = vmul.f32 %v771, 1.442695
    %v773 = vpow.pop %v772
    %v774 = vadd.f32 %v773, 1.0
    %v775 = vrcp.pop %v774
    %v776 = vmul.f32 %v774, %v775
    %v777 = vsub.f32 1.0, %v776
    %v778 = vmul.f32 %v775, %v777
    %v779 = vadd.f32 %v775, %v778
    %vm780 = vweird.f32 %v774
    %vm781 = vweird.f32 %v775
    %vm782 = vmor %vm780, %vm781
    %v783 = vsel %vm782, %v775, %v779
    %v784 = vand.u32 2147483647, %v774
    %vm785 = vcmp.eq.f32.partialorder %v784, 8.507059e+37
    %v786 = vand.u32 %v774, 2147483648
    %v787 = vor.u32 1.1754944e-38, %v786
    %v788 = vsel %vm785, %v787, %v783
    %v789 = vmul.f32 1.0, %v788
    %v790 = vtanh.pop %v769
    %v791 = vmul.f32 %v789, 0.0
    %793 = vrot.lane.b32.xlu0 %v790, 32
    %v794 = vpop.permute.xlu0 %793
    %v796 = vmul.f32 %v789, %v794
    %798 = vrot.lane.b32.xlu0 %v796, 32
    %v799 = vpop.permute.xlu0 %798
    %v801 = vadd.f32 %v791, %v799
    %v802 = vtanh.pop %v801
    %804 = vrot.lane.b32.xlu0 %v802, 32
    %v805 = vpop.permute.xlu0 %804
    %v807 = vmul.f32 %v789, %v805
    %809 = vrot.lane.b32.xlu0 %v807, 64
    %v810 = vpop.permute.xlu0 %809
    %vm812 = vcmask 254976
    %813 = vst.msk [vmem:[%s6] sm:$0x3] %vm812, %v810
    %815 = vrot.lane.b32.xlu0 %v670, 64
    %v816 = vpop.permute.xlu0 %815
    %818 = vrot.lane.b32.xlu0 %v602, 96
    %v819 = vpop.permute.xlu0 %818
    %v821 = vsel %vm327, %v816, %v819
    %v822 = vld [vmem:[%s531] sm:$0xff]
    %v823 = vld [vmem:[%s531 + $0x8] sm:$0xff]
    %v824 = vld [vmem:[%s531 + $0x10] sm:$0xff]
    %v825 = vld [vmem:[%s531 + $0x18] sm:$0xff]
    %v826 = vld [vmem:[%s531 + $0x20] sm:$0xff]
    %v827 = vld [vmem:[%s531 + $0x28] sm:$0xff]
    %v828 = vld [vmem:[%s531 + $0x30] sm:$0xff]
    %v829 = vld [vmem:[%s531 + $0x38] sm:$0xff]
    %v831 = vsel %vm405, %v821, 0
    %833 = vmatpush.msra.mxu0 0.0
    %834 = vmatpush.msra.mxu0 0.0
    %835 = vmatpush.msra.mxu0 0.0
    %836 = vmatpush.msra.mxu0 0.0
    %837 = vmatpush.msra.mxu0 0.0
    %838 = vmatpush.msra.mxu0 0.0
    %839 = vmatpush.msra.mxu0 0.0
    %840 = vmatpush.msra.mxu0 0.0
    %841 = vmatpush.msra.mxu0 %v829
    %842 = vmatpush.msra.mxu0 %v828
    %843 = vmatpush.msra.mxu0 %v827
    %844 = vmatpush.msra.mxu0 %v826
    %845 = vmatpush.msra.mxu0 %v825
    %846 = vmatpush.msra.mxu0 %v824
    %847 = vmatpush.msra.mxu0 %v823
    %848 = vmatpush.msra.mxu0 %v822
    %849 = vmatmul.f32.gmra.mxu0 %v831
    %v850 = vpop.f32.mrf.mxu0
    %v851 = vadd.f32 %v541, %v850
    %852 = vdwg.mxu0
    %v853 = vxor.u32 %v851, 2147483648
    %v854 = vmul.f32 %v853, 1.442695
    %v855 = vpow.pop %v854
    %v856 = vadd.f32 %v855, 1.0
    %v857 = vrcp.pop %v856
    %v858 = vmul.f32 %v856, %v857
    %v859 = vsub.f32 1.0, %v858
    %v860 = vmul.f32 %v857, %v859
    %v861 = vadd.f32 %v857, %v860
    %vm862 = vweird.f32 %v856
    %vm863 = vweird.f32 %v857
    %vm864 = vmor %vm862, %vm863
    %v865 = vsel %vm864, %v857, %v861
    %v866 = vand.u32 2147483647, %v856
    %vm867 = vcmp.eq.f32.partialorder %v866, 8.507059e+37
    %v868 = vand.u32 %v856, 2147483648
    %v869 = vor.u32 1.1754944e-38, %v868
    %v870 = vsel %vm867, %v869, %v865
    %v871 = vmul.f32 1.0, %v870
    %v872 = vtanh.pop %v851
    %v873 = vmul.f32 %v871, %v596
    %875 = vrot.lane.b32.xlu0 %v872, 32
    %v876 = vpop.permute.xlu0 %875
    %v878 = vmul.f32 %v871, %v876
    %880 = vrot.lane.b32.xlu0 %v878, 32
    %v881 = vpop.permute.xlu0 %880
    %v883 = vadd.f32 %v873, %v881
    %v884 = vtanh.pop %v883
    %886 = vrot.lane.b32.xlu0 %v884, 32
    %v887 = vpop.permute.xlu0 %886
    %v889 = vmul.f32 %v871, %v887
    %891 = vrot.lane.b32.xlu0 %v730, 64
    %v892 = vpop.permute.xlu0 %891
    %894 = vrot.lane.b32.xlu0 %v670, 96
    %v895 = vpop.permute.xlu0 %894
    %v897 = vsel %vm327, %v892, %v895
    %v898 = vld [vmem:[#allocation7] sm:$0xff]
    %v899 = vld [vmem:[#allocation7 + $0x8] sm:$0xff]
    %v900 = vld [vmem:[#allocation7 + $0x10] sm:$0xff]
    %v901 = vld [vmem:[#allocation7 + $0x18] sm:$0xff]
    %v902 = vld [vmem:[#allocation7 + $0x20] sm:$0xff]
    %v903 = vld [vmem:[#allocation7 + $0x28] sm:$0xff]
    %v904 = vld [vmem:[#allocation7 + $0x30] sm:$0xff]
    %v905 = vld [vmem:[#allocation7 + $0x38] sm:$0xff]
    %v907 = vsel %vm405, %v897, 0
    %909 = vmatpush.msra.mxu0 0.0
    %910 = vmatpush.msra.mxu0 0.0
    %911 = vmatpush.msra.mxu0 0.0
    %912 = vmatpush.msra.mxu0 0.0
    %913 = vmatpush.msra.mxu0 0.0
    %914 = vmatpush.msra.mxu0 0.0
    %915 = vmatpush.msra.mxu0 0.0
    %916 = vmatpush.msra.mxu0 0.0
    %917 = vmatpush.msra.mxu0 %v905
    %918 = vmatpush.msra.mxu0 %v904
    %919 = vmatpush.msra.mxu0 %v903
    %920 = vmatpush.msra.mxu0 %v902
    %921 = vmatpush.msra.mxu0 %v901
    %922 = vmatpush.msra.mxu0 %v900
    %923 = vmatpush.msra.mxu0 %v899
    %924 = vmatpush.msra.mxu0 %v898
    %925 = vmatmul.f32.gmra.mxu0 %v907
    %v926 = vpop.f32.mrf.mxu0
    %v927 = vadd.f32 %v403, %v926
    %928 = vdwg.mxu0
    %v929 = vxor.u32 %v927, 2147483648
    %v930 = vmul.f32 %v929, 1.442695
    %v931 = vpow.pop %v930
    %v932 = vadd.f32 %v931, 1.0
    %v933 = vrcp.pop %v932
    %v934 = vmul.f32 %v932, %v933
    %v935 = vsub.f32 1.0, %v934
    %v936 = vmul.f32 %v933, %v935
    %v937 = vadd.f32 %v933, %v936
    %vm938 = vweird.f32 %v932
    %vm939 = vweird.f32 %v933
    %vm940 = vmor %vm938, %vm939
    %v941 = vsel %vm940, %v933, %v937
    %v942 = vand.u32 2147483647, %v932
    %vm943 = vcmp.eq.f32.partialorder %v942, 8.507059e+37
    %v944 = vand.u32 %v932, 2147483648
    %v945 = vor.u32 1.1754944e-38, %v944
    %v946 = vsel %vm943, %v945, %v941
    %v947 = vmul.f32 1.0, %v946
    %v948 = vtanh.pop %v927
    %v949 = vmul.f32 %v947, %v664
    %951 = vrot.lane.b32.xlu0 %v948, 32
    %v952 = vpop.permute.xlu0 %951
    %v954 = vmul.f32 %v947, %v952
    %956 = vrot.lane.b32.xlu0 %v954, 32
    %v957 = vpop.permute.xlu0 %956
    %v959 = vadd.f32 %v949, %v957
    %v960 = vtanh.pop %v959
    %962 = vrot.lane.b32.xlu0 %v960, 32
    %v963 = vpop.permute.xlu0 %962
    %v965 = vmul.f32 %v947, %v963
    %v966 = vsel %vm327, %v892, 0
    %968 = vmatpush.msra.mxu0 0.0
    %969 = vmatpush.msra.mxu0 0.0
    %970 = vmatpush.msra.mxu0 0.0
    %971 = vmatpush.msra.mxu0 0.0
    %972 = vmatpush.msra.mxu0 0.0
    %973 = vmatpush.msra.mxu0 0.0
    %974 = vmatpush.msra.mxu0 0.0
    %975 = vmatpush.msra.mxu0 0.0
    %976 = vmatpush.msra.mxu0 0.0
    %977 = vmatpush.msra.mxu0 0.0
    %978 = vmatpush.msra.mxu0 0.0
    %979 = vmatpush.msra.mxu0 0.0
    %980 = vmatpush.msra.mxu0 %v321
    %981 = vmatpush.msra.mxu0 %v320
    %982 = vmatpush.msra.mxu0 %v319
    %983 = vmatpush.msra.mxu0 %v318
    %984 = vmatmul.f32.gmra.mxu0 %v966
    %v985 = vpop.f32.mrf.mxu0
    %v986 = vadd.f32 0.0, %v985
    %987 = vdwg.mxu0
    %v988 = vadd.f32 %v200, %v986
    %v989 = vxor.u32 %v988, 2147483648
    %v990 = vmul.f32 %v989, 1.442695
    %v991 = vpow.pop %v990
    %v992 = vadd.f32 %v991, 1.0
    %v993 = vrcp.pop %v992
    %v994 = vmul.f32 %v992, %v993
    %v995 = vsub.f32 1.0, %v994
    %v996 = vmul.f32 %v993, %v995
    %v997 = vadd.f32 %v993, %v996
    %vm998 = vweird.f32 %v992
    %vm999 = vweird.f32 %v993
    %vm1000 = vmor %vm998, %vm999
    %v1001 = vsel %vm1000, %v993, %v997
    %v1002 = vand.u32 2147483647, %v992
    %vm1003 = vcmp.eq.f32.partialorder %v1002, 8.507059e+37
    %v1004 = vand.u32 %v992, 2147483648
    %v1005 = vor.u32 1.1754944e-38, %v1004
    %v1006 = vsel %vm1003, %v1005, %v1001
    %v1007 = vmul.f32 1.0, %v1006
    %v1008 = vtanh.pop %v988
    %v1009 = vmul.f32 %v1007, %v724
    %1011 = vrot.lane.b32.xlu0 %v1008, 32
    %v1012 = vpop.permute.xlu0 %1011
    %v1014 = vmul.f32 %v1007, %v1012
    %1016 = vrot.lane.b32.xlu0 %v1014, 32
    %v1017 = vpop.permute.xlu0 %1016
    %v1019 = vadd.f32 %v1009, %v1017
    %v1020 = vtanh.pop %v1019
    %1022 = vrot.lane.b32.xlu0 %v1020, 32
    %v1023 = vpop.permute.xlu0 %1022
    %v1025 = vmul.f32 %v1007, %v1023
    %1027 = vrot.lane.b32.xlu0 %v889, 64
    %v1028 = vpop.permute.xlu0 %1027
    %1030 = vrot.lane.b32.xlu0 %v807, 96
    %v1031 = vpop.permute.xlu0 %1030
    %v1033 = vsel %vm327, %v1028, %v1031
    %v1034 = vld [vmem:[%s736] sm:$0xff]
    %v1035 = vld [vmem:[%s736 + $0x8] sm:$0xff]
    %v1036 = vld [vmem:[%s736 + $0x10] sm:$0xff]
    %v1037 = vld [vmem:[%s736 + $0x18] sm:$0xff]
    %v1038 = vld [vmem:[%s736 + $0x20] sm:$0xff]
    %v1039 = vld [vmem:[%s736 + $0x28] sm:$0xff]
    %v1040 = vld [vmem:[%s736 + $0x30] sm:$0xff]
    %v1041 = vld [vmem:[%s736 + $0x38] sm:$0xff]
    %v1043 = vsel %vm405, %v1033, 0
    %1045 = vmatpush.msra.mxu0 0.0
    %1046 = vmatpush.msra.mxu0 0.0
    %1047 = vmatpush.msra.mxu0 0.0
    %1048 = vmatpush.msra.mxu0 0.0
    %1049 = vmatpush.msra.mxu0 0.0
    %1050 = vmatpush.msra.mxu0 0.0
    %1051 = vmatpush.msra.mxu0 0.0
    %1052 = vmatpush.msra.mxu0 0.0
    %1053 = vmatpush.msra.mxu0 %v1041
    %1054 = vmatpush.msra.mxu0 %v1040
    %1055 = vmatpush.msra.mxu0 %v1039
    %1056 = vmatpush.msra.mxu0 %v1038
    %1057 = vmatpush.msra.mxu0 %v1037
    %1058 = vmatpush.msra.mxu0 %v1036
    %1059 = vmatpush.msra.mxu0 %v1035
    %1060 = vmatpush.msra.mxu0 %v1034
    %1061 = vmatmul.f32.gmra.mxu0 %v1043
    %v1062 = vpop.f32.mrf.mxu0
    %v1063 = vadd.f32 %v746, %v1062
    %1064 = vdwg.mxu0
    %v1065 = vxor.u32 %v1063, 2147483648
    %v1066 = vmul.f32 %v1065, 1.442695
    %v1067 = vpow.pop %v1066
    %v1068 = vadd.f32 %v1067, 1.0
    %v1069 = vrcp.pop %v1068
    %v1070 = vmul.f32 %v1068, %v1069
    %v1071 = vsub.f32 1.0, %v1070
    %v1072 = vmul.f32 %v1069, %v1071
    %v1073 = vadd.f32 %v1069, %v1072
    %vm1074 = vweird.f32 %v1068
    %vm1075 = vweird.f32 %v1069
    %vm1076 = vmor %vm1074, %vm1075
    %v1077 = vsel %vm1076, %v1069, %v1073
    %v1078 = vand.u32 2147483647, %v1068
    %vm1079 = vcmp.eq.f32.partialorder %v1078, 8.507059e+37
    %v1080 = vand.u32 %v1068, 2147483648
    %v1081 = vor.u32 1.1754944e-38, %v1080
    %v1082 = vsel %vm1079, %v1081, %v1077
    %v1083 = vmul.f32 1.0, %v1082
    %v1084 = vtanh.pop %v1063
    %v1085 = vmul.f32 %v1083, %v801
    %1087 = vrot.lane.b32.xlu0 %v1084, 32
    %v1088 = vpop.permute.xlu0 %1087
    %v1090 = vmul.f32 %v1083, %v1088
    %1092 = vrot.lane.b32.xlu0 %v1090, 32
    %v1093 = vpop.permute.xlu0 %1092
    %v1095 = vadd.f32 %v1085, %v1093
    %v1096 = vtanh.pop %v1095
    %1098 = vrot.lane.b32.xlu0 %v1096, 32
    %v1099 = vpop.permute.xlu0 %1098
    %v1101 = vmul.f32 %v1083, %v1099
    %1103 = vrot.lane.b32.xlu0 %v1101, 96
    %v1104 = vpop.permute.xlu0 %1103
    %vm1106 = vcmask 517376
    %1107 = vst.msk [vmem:[%s6] sm:$0x3] %vm1106, %v1104
    %1109 = vrot.lane.b32.xlu0 %v965, 64
    %v1110 = vpop.permute.xlu0 %1109
    %1112 = vrot.lane.b32.xlu0 %v889, 96
    %v1113 = vpop.permute.xlu0 %1112
    %v1115 = vsel %vm327, %v1110, %v1113
    %v1116 = vld [vmem:[%s531] sm:$0xff]
    %v1117 = vld [vmem:[%s531 + $0x8] sm:$0xff]
    %v1118 = vld [vmem:[%s531 + $0x10] sm:$0xff]
    %v1119 = vld [vmem:[%s531 + $0x18] sm:$0xff]
    %v1120 = vld [vmem:[%s531 + $0x20] sm:$0xff]
    %v1121 = vld [vmem:[%s531 + $0x28] sm:$0xff]
    %v1122 = vld [vmem:[%s531 + $0x30] sm:$0xff]
    %v1123 = vld [vmem:[%s531 + $0x38] sm:$0xff]
    %v1125 = vsel %vm405, %v1115, 0
    %1127 = vmatpush.msra.mxu0 0.0
    %1128 = vmatpush.msra.mxu0 0.0
    %1129 = vmatpush.msra.mxu0 0.0
    %1130 = vmatpush.msra.mxu0 0.0
    %1131 = vmatpush.msra.mxu0 0.0
    %1132 = vmatpush.msra.mxu0 0.0
    %1133 = vmatpush.msra.mxu0 0.0
    %1134 = vmatpush.msra.mxu0 0.0
    %1135 = vmatpush.msra.mxu0 %v1123
    %1136 = vmatpush.msra.mxu0 %v1122
    %1137 = vmatpush.msra.mxu0 %v1121
    %1138 = vmatpush.msra.mxu0 %v1120
    %1139 = vmatpush.msra.mxu0 %v1119
    %1140 = vmatpush.msra.mxu0 %v1118
    %1141 = vmatpush.msra.mxu0 %v1117
    %1142 = vmatpush.msra.mxu0 %v1116
    %1143 = vmatmul.f32.gmra.mxu0 %v1125
    %v1144 = vpop.f32.mrf.mxu0
    %v1145 = vadd.f32 %v541, %v1144
    %1146 = vdwg.mxu0
    %v1147 = vxor.u32 %v1145, 2147483648
    %v1148 = vmul.f32 %v1147, 1.442695
    %v1149 = vpow.pop %v1148
    %v1150 = vadd.f32 %v1149, 1.0
    %v1151 = vrcp.pop %v1150
    %v1152 = vmul.f32 %v1150, %v1151
    %v1153 = vsub.f32 1.0, %v1152
    %v1154 = vmul.f32 %v1151, %v1153
    %v1155 = vadd.f32 %v1151, %v1154
    %vm1156 = vweird.f32 %v1150
    %vm1157 = vweird.f32 %v1151
    %vm1158 = vmor %vm1156, %vm1157
    %v1159 = vsel %vm1158, %v1151, %v1155
    %v1160 = vand.u32 2147483647, %v1150
    %vm1161 = vcmp.eq.f32.partialorder %v1160, 8.507059e+37
    %v1162 = vand.u32 %v1150, 2147483648
    %v1163 = vor.u32 1.1754944e-38, %v1162
    %v1164 = vsel %vm1161, %v1163, %v1159
    %v1165 = vmul.f32 1.0, %v1164
    %v1166 = vtanh.pop %v1145
    %v1167 = vmul.f32 %v1165, %v883
    %1169 = vrot.lane.b32.xlu0 %v1166, 32
    %v1170 = vpop.permute.xlu0 %1169
    %v1172 = vmul.f32 %v1165, %v1170
    %1174 = vrot.lane.b32.xlu0 %v1172, 32
    %v1175 = vpop.permute.xlu0 %1174
    %v1177 = vadd.f32 %v1167, %v1175
    %v1178 = vtanh.pop %v1177
    %1180 = vrot.lane.b32.xlu0 %v1178, 32
    %v1181 = vpop.permute.xlu0 %1180
    %v1183 = vmul.f32 %v1165, %v1181
    %1185 = vrot.lane.b32.xlu0 %v1025, 64
    %v1186 = vpop.permute.xlu0 %1185
    %1188 = vrot.lane.b32.xlu0 %v965, 96
    %v1189 = vpop.permute.xlu0 %1188
    %v1191 = vsel %vm327, %v1186, %v1189
    %v1192 = vld [vmem:[#allocation7] sm:$0xff]
    %v1193 = vld [vmem:[#allocation7 + $0x8] sm:$0xff]
    %v1194 = vld [vmem:[#allocation7 + $0x10] sm:$0xff]
    %v1195 = vld [vmem:[#allocation7 + $0x18] sm:$0xff]
    %v1196 = vld [vmem:[#allocation7 + $0x20] sm:$0xff]
    %v1197 = vld [vmem:[#allocation7 + $0x28] sm:$0xff]
    %v1198 = vld [vmem:[#allocation7 + $0x30] sm:$0xff]
    %v1199 = vld [vmem:[#allocation7 + $0x38] sm:$0xff]
    %v1201 = vsel %vm405, %v1191, 0
    %1203 = vmatpush.msra.mxu0 0.0
    %1204 = vmatpush.msra.mxu0 0.0
    %1205 = vmatpush.msra.mxu0 0.0
    %1206 = vmatpush.msra.mxu0 0.0
    %1207 = vmatpush.msra.mxu0 0.0
    %1208 = vmatpush.msra.mxu0 0.0
    %1209 = vmatpush.msra.mxu0 0.0
    %1210 = vmatpush.msra.mxu0 0.0
    %1211 = vmatpush.msra.mxu0 %v1199
    %1212 = vmatpush.msra.mxu0 %v1198
    %1213 = vmatpush.msra.mxu0 %v1197
    %1214 = vmatpush.msra.mxu0 %v1196
    %1215 = vmatpush.msra.mxu0 %v1195
    %1216 = vmatpush.msra.mxu0 %v1194
    %1217 = vmatpush.msra.mxu0 %v1193
    %1218 = vmatpush.msra.mxu0 %v1192
    %1219 = vmatmul.f32.gmra.mxu0 %v1201
    %v1220 = vpop.f32.mrf.mxu0
    %v1221 = vadd.f32 %v403, %v1220
    %1222 = vdwg.mxu0
    %v1223 = vxor.u32 %v1221, 2147483648
    %v1224 = vmul.f32 %v1223, 1.442695
    %v1225 = vpow.pop %v1224
    %v1226 = vadd.f32 %v1225, 1.0
    %v1227 = vrcp.pop %v1226
    %v1228 = vmul.f32 %v1226, %v1227
    %v1229 = vsub.f32 1.0, %v1228
    %v1230 = vmul.f32 %v1227, %v1229
    %v1231 = vadd.f32 %v1227, %v1230
    %vm1232 = vweird.f32 %v1226
    %vm1233 = vweird.f32 %v1227
    %vm1234 = vmor %vm1232, %vm1233
    %v1235 = vsel %vm1234, %v1227, %v1231
    %v1236 = vand.u32 2147483647, %v1226
    %vm1237 = vcmp.eq.f32.partialorder %v1236, 8.507059e+37
    %v1238 = vand.u32 %v1226, 2147483648
    %v1239 = vor.u32 1.1754944e-38, %v1238
    %v1240 = vsel %vm1237, %v1239, %v1235
    %v1241 = vmul.f32 1.0, %v1240
    %v1242 = vtanh.pop %v1221
    %v1243 = vmul.f32 %v1241, %v959
    %1245 = vrot.lane.b32.xlu0 %v1242, 32
    %v1246 = vpop.permute.xlu0 %1245
    %v1248 = vmul.f32 %v1241, %v1246
    %1250 = vrot.lane.b32.xlu0 %v1248, 32
    %v1251 = vpop.permute.xlu0 %1250
    %v1253 = vadd.f32 %v1243, %v1251
    %v1254 = vtanh.pop %v1253
    %1256 = vrot.lane.b32.xlu0 %v1254, 32
    %v1257 = vpop.permute.xlu0 %1256
    %v1259 = vmul.f32 %v1241, %v1257
    %v1260 = vsel %vm327, %v1186, 0
    %1262 = vmatpush.msra.mxu0 0.0
    %1263 = vmatpush.msra.mxu0 0.0
    %1264 = vmatpush.msra.mxu0 0.0
    %1265 = vmatpush.msra.mxu0 0.0
    %1266 = vmatpush.msra.mxu0 0.0
    %1267 = vmatpush.msra.mxu0 0.0
    %1268 = vmatpush.msra.mxu0 0.0
    %1269 = vmatpush.msra.mxu0 0.0
    %1270 = vmatpush.msra.mxu0 0.0
    %1271 = vmatpush.msra.mxu0 0.0
    %1272 = vmatpush.msra.mxu0 0.0
    %1273 = vmatpush.msra.mxu0 0.0
    %1274 = vmatpush.msra.mxu0 %v321
    %1275 = vmatpush.msra.mxu0 %v320
    %1276 = vmatpush.msra.mxu0 %v319
    %1277 = vmatpush.msra.mxu0 %v318
    %1278 = vmatmul.f32.gmra.mxu0 %v1260
    %v1279 = vpop.f32.mrf.mxu0
    %v1280 = vadd.f32 0.0, %v1279
    %1281 = vdwg.mxu0
    %v1282 = vadd.f32 %v229, %v1280
    %v1283 = vxor.u32 %v1282, 2147483648
    %v1284 = vmul.f32 %v1283, 1.442695
    %v1285 = vpow.pop %v1284
    %v1286 = vadd.f32 %v1285, 1.0
    %v1287 = vrcp.pop %v1286
    %v1288 = vmul.f32 %v1286, %v1287
    %v1289 = vsub.f32 1.0, %v1288
    %v1290 = vmul.f32 %v1287, %v1289
    %v1291 = vadd.f32 %v1287, %v1290
    %vm1292 = vweird.f32 %v1286
    %vm1293 = vweird.f32 %v1287
    %vm1294 = vmor %vm1292, %vm1293
    %v1295 = vsel %vm1294, %v1287, %v1291
    %v1296 = vand.u32 2147483647, %v1286
    %vm1297 = vcmp.eq.f32.partialorder %v1296, 8.507059e+37
    %v1298 = vand.u32 %v1286, 2147483648
    %v1299 = vor.u32 1.1754944e-38, %v1298
    %v1300 = vsel %vm1297, %v1299, %v1295
    %v1301 = vmul.f32 1.0, %v1300
    %v1302 = vtanh.pop %v1282
    %v1303 = vmul.f32 %v1301, %v1019
    %1305 = vrot.lane.b32.xlu0 %v1302, 32
    %v1306 = vpop.permute.xlu0 %1305
    %v1308 = vmul.f32 %v1301, %v1306
    %1310 = vrot.lane.b32.xlu0 %v1308, 32
    %v1311 = vpop.permute.xlu0 %1310
    %v1313 = vadd.f32 %v1303, %v1311
    %v1314 = vtanh.pop %v1313
    %1316 = vrot.lane.b32.xlu0 %v1314, 32
    %v1317 = vpop.permute.xlu0 %1316
    %v1319 = vmul.f32 %v1301, %v1317
    %1321 = vrot.lane.b32.xlu0 %v1183, 64
    %v1322 = vpop.permute.xlu0 %1321
    %v1324 = vsel %vm327, %v1322, %v1104
    %v1325 = vld [vmem:[%s736] sm:$0xff]
    %v1326 = vld [vmem:[%s736 + $0x8] sm:$0xff]
    %v1327 = vld [vmem:[%s736 + $0x10] sm:$0xff]
    %v1328 = vld [vmem:[%s736 + $0x18] sm:$0xff]
    %v1329 = vld [vmem:[%s736 + $0x20] sm:$0xff]
    %v1330 = vld [vmem:[%s736 + $0x28] sm:$0xff]
    %v1331 = vld [vmem:[%s736 + $0x30] sm:$0xff]
    %v1332 = vld [vmem:[%s736 + $0x38] sm:$0xff]
    %v1334 = vsel %vm405, %v1324, 0
    %1336 = vmatpush.msra.mxu0 0.0
    %1337 = vmatpush.msra.mxu0 0.0
    %1338 = vmatpush.msra.mxu0 0.0
    %1339 = vmatpush.msra.mxu0 0.0
    %1340 = vmatpush.msra.mxu0 0.0
    %1341 = vmatpush.msra.mxu0 0.0
    %1342 = vmatpush.msra.mxu0 0.0
    %1343 = vmatpush.msra.mxu0 0.0
    %1344 = vmatpush.msra.mxu0 %v1332
    %1345 = vmatpush.msra.mxu0 %v1331
    %1346 = vmatpush.msra.mxu0 %v1330
    %1347 = vmatpush.msra.mxu0 %v1329
    %1348 = vmatpush.msra.mxu0 %v1328
    %1349 = vmatpush.msra.mxu0 %v1327
    %1350 = vmatpush.msra.mxu0 %v1326
    %1351 = vmatpush.msra.mxu0 %v1325
    %1352 = vmatmul.f32.gmra.mxu0 %v1334
    %v1353 = vpop.f32.mrf.mxu0
    %v1354 = vadd.f32 %v746, %v1353
    %1355 = vdwg.mxu0
    %v1356 = vxor.u32 %v1354, 2147483648
    %v1357 = vmul.f32 %v1356, 1.442695
    %v1358 = vpow.pop %v1357
    %v1359 = vadd.f32 %v1358, 1.0
    %v1360 = vrcp.pop %v1359
    %v1361 = vmul.f32 %v1359, %v1360
    %v1362 = vsub.f32 1.0, %v1361
    %v1363 = vmul.f32 %v1360, %v1362
    %v1364 = vadd.f32 %v1360, %v1363
    %vm1365 = vweird.f32 %v1359
    %vm1366 = vweird.f32 %v1360
    %vm1367 = vmor %vm1365, %vm1366
    %v1368 = vsel %vm1367, %v1360, %v1364
    %v1369 = vand.u32 2147483647, %v1359
    %vm1370 = vcmp.eq.f32.partialorder %v1369, 8.507059e+37
    %v1371 = vand.u32 %v1359, 2147483648
    %v1372 = vor.u32 1.1754944e-38, %v1371
    %v1373 = vsel %vm1370, %v1372, %v1368
    %v1374 = vmul.f32 1.0, %v1373
    %v1375 = vtanh.pop %v1354
    %v1376 = vmul.f32 %v1374, %v1095
    %1378 = vrot.lane.b32.xlu0 %v1375, 32
    %v1379 = vpop.permute.xlu0 %1378
    %v1381 = vmul.f32 %v1374, %v1379
    %1383 = vrot.lane.b32.xlu0 %v1381, 32
    %v1384 = vpop.permute.xlu0 %1383
    %v1386 = vadd.f32 %v1376, %v1384
    %v1387 = vtanh.pop %v1386
    %1389 = vrot.lane.b32.xlu0 %v1387, 32
    %v1390 = vpop.permute.xlu0 %1389
    %v1392 = vmul.f32 %v1374, %v1390
    %vm1393 = vcmask 779776
    %1394 = vst.msk [vmem:[%s6] sm:$0x3] %vm1393, %v1392
    %1396 = vrot.lane.b32.xlu0 %v1259, 64
    %v1397 = vpop.permute.xlu0 %1396
    %1399 = vrot.lane.b32.xlu0 %v1183, 96
    %v1400 = vpop.permute.xlu0 %1399
    %v1402 = vsel %vm327, %v1397, %v1400
    %v1403 = vld [vmem:[%s531] sm:$0xff]
    %v1404 = vld [vmem:[%s531 + $0x8] sm:$0xff]
    %v1405 = vld [vmem:[%s531 + $0x10] sm:$0xff]
    %v1406 = vld [vmem:[%s531 + $0x18] sm:$0xff]
    %v1407 = vld [vmem:[%s531 + $0x20] sm:$0xff]
    %v1408 = vld [vmem:[%s531 + $0x28] sm:$0xff]
    %v1409 = vld [vmem:[%s531 + $0x30] sm:$0xff]
    %v1410 = vld [vmem:[%s531 + $0x38] sm:$0xff]
    %v1412 = vsel %vm405, %v1402, 0
    %1414 = vmatpush.msra.mxu0 0.0
    %1415 = vmatpush.msra.mxu0 0.0
    %1416 = vmatpush.msra.mxu0 0.0
    %1417 = vmatpush.msra.mxu0 0.0
    %1418 = vmatpush.msra.mxu0 0.0
    %1419 = vmatpush.msra.mxu0 0.0
    %1420 = vmatpush.msra.mxu0 0.0
    %1421 = vmatpush.msra.mxu0 0.0
    %1422 = vmatpush.msra.mxu0 %v1410
    %1423 = vmatpush.msra.mxu0 %v1409
    %1424 = vmatpush.msra.mxu0 %v1408
    %1425 = vmatpush.msra.mxu0 %v1407
    %1426 = vmatpush.msra.mxu0 %v1406
    %1427 = vmatpush.msra.mxu0 %v1405
    %1428 = vmatpush.msra.mxu0 %v1404
    %1429 = vmatpush.msra.mxu0 %v1403
    %1430 = vmatmul.f32.gmra.mxu0 %v1412
    %v1431 = vpop.f32.mrf.mxu0
    %v1432 = vadd.f32 %v541, %v1431
    %1433 = vdwg.mxu0
    %v1434 = vxor.u32 %v1432, 2147483648
    %v1435 = vmul.f32 %v1434, 1.442695
    %v1436 = vpow.pop %v1435
    %v1437 = vadd.f32 %v1436, 1.0
    %v1438 = vrcp.pop %v1437
    %v1439 = vmul.f32 %v1437, %v1438
    %v1440 = vsub.f32 1.0, %v1439
    %v1441 = vmul.f32 %v1438, %v1440
    %v1442 = vadd.f32 %v1438, %v1441
    %vm1443 = vweird.f32 %v1437
    %vm1444 = vweird.f32 %v1438
    %vm1445 = vmor %vm1443, %vm1444
    %v1446 = vsel %vm1445, %v1438, %v1442
    %v1447 = vand.u32 2147483647, %v1437
    %vm1448 = vcmp.eq.f32.partialorder %v1447, 8.507059e+37
    %v1449 = vand.u32 %v1437, 2147483648
    %v1450 = vor.u32 1.1754944e-38, %v1449
    %v1451 = vsel %vm1448, %v1450, %v1446
    %v1452 = vmul.f32 1.0, %v1451
    %v1453 = vtanh.pop %v1432
    %v1454 = vmul.f32 %v1452, %v1177
    %1456 = vrot.lane.b32.xlu0 %v1453, 32
    %v1457 = vpop.permute.xlu0 %1456
    %v1459 = vmul.f32 %v1452, %v1457
    %1461 = vrot.lane.b32.xlu0 %v1459, 32
    %v1462 = vpop.permute.xlu0 %1461
    %v1464 = vadd.f32 %v1454, %v1462
    %v1465 = vtanh.pop %v1464
    %1467 = vrot.lane.b32.xlu0 %v1465, 32
    %v1468 = vpop.permute.xlu0 %1467
    %v1470 = vmul.f32 %v1452, %v1468
    %1472 = vrot.lane.b32.xlu0 %v1319, 64
    %v1473 = vpop.permute.xlu0 %1472
    %1475 = vrot.lane.b32.xlu0 %v1259, 96
    %v1476 = vpop.permute.xlu0 %1475
    %v1478 = vsel %vm327, %v1473, %v1476
    %v1479 = vld [vmem:[#allocation7] sm:$0xff]
    %v1480 = vld [vmem:[#allocation7 + $0x8] sm:$0xff]
    %v1481 = vld [vmem:[#allocation7 + $0x10] sm:$0xff]
    %v1482 = vld [vmem:[#allocation7 + $0x18] sm:$0xff]
    %v1483 = vld [vmem:[#allocation7 + $0x20] sm:$0xff]
    %v1484 = vld [vmem:[#allocation7 + $0x28] sm:$0xff]
    %v1485 = vld [vmem:[#allocation7 + $0x30] sm:$0xff]
    %v1486 = vld [vmem:[#allocation7 + $0x38] sm:$0xff]
    %v1488 = vsel %vm405, %v1478, 0
    %1490 = vmatpush.msra.mxu0 0.0
    %1491 = vmatpush.msra.mxu0 0.0
    %1492 = vmatpush.msra.mxu0 0.0
    %1493 = vmatpush.msra.mxu0 0.0
    %1494 = vmatpush.msra.mxu0 0.0
    %1495 = vmatpush.msra.mxu0 0.0
    %1496 = vmatpush.msra.mxu0 0.0
    %1497 = vmatpush.msra.mxu0 0.0
    %1498 = vmatpush.msra.mxu0 %v1486
    %1499 = vmatpush.msra.mxu0 %v1485
    %1500 = vmatpush.msra.mxu0 %v1484
    %1501 = vmatpush.msra.mxu0 %v1483
    %1502 = vmatpush.msra.mxu0 %v1482
    %1503 = vmatpush.msra.mxu0 %v1481
    %1504 = vmatpush.msra.mxu0 %v1480
    %1505 = vmatpush.msra.mxu0 %v1479
    %1506 = vmatmul.f32.gmra.mxu0 %v1488
    %v1507 = vpop.f32.mrf.mxu0
    %v1508 = vadd.f32 %v403, %v1507
    %1509 = vdwg.mxu0
    %v1510 = vxor.u32 %v1508, 2147483648
    %v1511 = vmul.f32 %v1510, 1.442695
    %v1512 = vpow.pop %v1511
    %v1513 = vadd.f32 %v1512, 1.0
    %v1514 = vrcp.pop %v1513
    %v1515 = vmul.f32 %v1513, %v1514
    %v1516 = vsub.f32 1.0, %v1515
    %v1517 = vmul.f32 %v1514, %v1516
    %v1518 = vadd.f32 %v1514, %v1517
    %vm1519 = vweird.f32 %v1513
    %vm1520 = vweird.f32 %v1514
    %vm1521 = vmor %vm1519, %vm1520
    %v1522 = vsel %vm1521, %v1514, %v1518
    %v1523 = vand.u32 2147483647, %v1513
    %vm1524 = vcmp.eq.f32.partialorder %v1523, 8.507059e+37
    %v1525 = vand.u32 %v1513, 2147483648
    %v1526 = vor.u32 1.1754944e-38, %v1525
    %v1527 = vsel %vm1524, %v1526, %v1522
    %v1528 = vmul.f32 1.0, %v1527
    %v1529 = vtanh.pop %v1508
    %v1530 = vmul.f32 %v1528, %v1253
    %1532 = vrot.lane.b32.xlu0 %v1529, 32
    %v1533 = vpop.permute.xlu0 %1532
    %v1535 = vmul.f32 %v1528, %v1533
    %1537 = vrot.lane.b32.xlu0 %v1535, 32
    %v1538 = vpop.permute.xlu0 %1537
    %v1540 = vadd.f32 %v1530, %v1538
    %v1541 = vtanh.pop %v1540
    %1543 = vrot.lane.b32.xlu0 %v1541, 32
    %v1544 = vpop.permute.xlu0 %1543
    %v1546 = vmul.f32 %v1528, %v1544
    %v1547 = vsel %vm327, %v1473, 0
    %1549 = vmatpush.msra.mxu0 0.0
    %1550 = vmatpush.msra.mxu0 0.0
    %1551 = vmatpush.msra.mxu0 0.0
    %1552 = vmatpush.msra.mxu0 0.0
    %1553 = vmatpush.msra.mxu0 0.0
    %1554 = vmatpush.msra.mxu0 0.0
    %1555 = vmatpush.msra.mxu0 0.0
    %1556 = vmatpush.msra.mxu0 0.0
    %1557 = vmatpush.msra.mxu0 0.0
    %1558 = vmatpush.msra.mxu0 0.0
    %1559 = vmatpush.msra.mxu0 0.0
    %1560 = vmatpush.msra.mxu0 0.0
    %1561 = vmatpush.msra.mxu0 %v321
    %1562 = vmatpush.msra.mxu0 %v320
    %1563 = vmatpush.msra.mxu0 %v319
    %1564 = vmatpush.msra.mxu0 %v318
    %1565 = vmatmul.f32.gmra.mxu0 %v1547
    %v1566 = vpop.f32.mrf.mxu0
    %v1567 = vadd.f32 0.0, %v1566
    %1568 = vdwg.mxu0
    %v1569 = vadd.f32 %v258, %v1567
    %v1570 = vxor.u32 %v1569, 2147483648
    %v1571 = vmul.f32 %v1570, 1.442695
    %v1572 = vpow.pop %v1571
    %v1573 = vadd.f32 %v1572, 1.0
    %v1574 = vrcp.pop %v1573
    %v1575 = vmul.f32 %v1573, %v1574
    %v1576 = vsub.f32 1.0, %v1575
    %v1577 = vmul.f32 %v1574, %v1576
    %v1578 = vadd.f32 %v1574, %v1577
    %vm1579 = vweird.f32 %v1573
    %vm1580 = vweird.f32 %v1574
    %vm1581 = vmor %vm1579, %vm1580
    %v1582 = vsel %vm1581, %v1574, %v1578
    %v1583 = vand.u32 2147483647, %v1573
    %vm1584 = vcmp.eq.f32.partialorder %v1583, 8.507059e+37
    %v1585 = vand.u32 %v1573, 2147483648
    %v1586 = vor.u32 1.1754944e-38, %v1585
    %v1587 = vsel %vm1584, %v1586, %v1582
    %v1588 = vmul.f32 1.0, %v1587
    %v1589 = vtanh.pop %v1569
    %v1590 = vmul.f32 %v1588, %v1313
    %1592 = vrot.lane.b32.xlu0 %v1589, 32
    %v1593 = vpop.permute.xlu0 %1592
    %v1595 = vmul.f32 %v1588, %v1593
    %1597 = vrot.lane.b32.xlu0 %v1595, 32
    %v1598 = vpop.permute.xlu0 %1597
    %v1600 = vadd.f32 %v1590, %v1598
    %v1601 = vtanh.pop %v1600
    %1603 = vrot.lane.b32.xlu0 %v1601, 32
    %v1604 = vpop.permute.xlu0 %1603
    %v1606 = vmul.f32 %v1588, %v1604
    %1608 = vrot.lane.b32.xlu0 %v1470, 64
    %v1609 = vpop.permute.xlu0 %1608
    %1612 = vrot.lane.b32.xlu0 %v1392, 96
    %v1613 = vpop.permute.xlu0 %1612
    %v1615 = vsel %vm327, %v1609, %v1613
    %v1616 = vld [vmem:[%s736] sm:$0xff]
    %v1617 = vld [vmem:[%s736 + $0x8] sm:$0xff]
    %v1618 = vld [vmem:[%s736 + $0x10] sm:$0xff]
    %v1619 = vld [vmem:[%s736 + $0x18] sm:$0xff]
    %v1620 = vld [vmem:[%s736 + $0x20] sm:$0xff]
    %v1621 = vld [vmem:[%s736 + $0x28] sm:$0xff]
    %v1622 = vld [vmem:[%s736 + $0x30] sm:$0xff]
    %v1623 = vld [vmem:[%s736 + $0x38] sm:$0xff]
    %v1625 = vsel %vm405, %v1615, 0
    %1627 = vmatpush.msra.mxu0 0.0
    %1628 = vmatpush.msra.mxu0 0.0
    %1629 = vmatpush.msra.mxu0 0.0
    %1630 = vmatpush.msra.mxu0 0.0
    %1631 = vmatpush.msra.mxu0 0.0
    %1632 = vmatpush.msra.mxu0 0.0
    %1633 = vmatpush.msra.mxu0 0.0
    %1634 = vmatpush.msra.mxu0 0.0
    %1635 = vmatpush.msra.mxu0 %v1623
    %1636 = vmatpush.msra.mxu0 %v1622
    %1637 = vmatpush.msra.mxu0 %v1621
    %1638 = vmatpush.msra.mxu0 %v1620
    %1639 = vmatpush.msra.mxu0 %v1619
    %1640 = vmatpush.msra.mxu0 %v1618
    %1641 = vmatpush.msra.mxu0 %v1617
    %1642 = vmatpush.msra.mxu0 %v1616
    %1643 = vmatmul.f32.gmra.mxu0 %v1625
    %v1644 = vpop.f32.mrf.mxu0
    %v1645 = vadd.f32 %v746, %v1644
    %1646 = vdwg.mxu0
    %v1647 = vxor.u32 %v1645, 2147483648
    %v1648 = vmul.f32 %v1647, 1.442695
    %v1649 = vpow.pop %v1648
    %v1650 = vadd.f32 %v1649, 1.0
    %v1651 = vrcp.pop %v1650
    %v1652 = vmul.f32 %v1650, %v1651
    %v1653 = vsub.f32 1.0, %v1652
    %v1654 = vmul.f32 %v1651, %v1653
    %v1655 = vadd.f32 %v1651, %v1654
    %vm1656 = vweird.f32 %v1650
    %vm1657 = vweird.f32 %v1651
    %vm1658 = vmor %vm1656, %vm1657
    %v1659 = vsel %vm1658, %v1651, %v1655
    %v1660 = vand.u32 2147483647, %v1650
    %vm1661 = vcmp.eq.f32.partialorder %v1660, 8.507059e+37
    %v1662 = vand.u32 %v1650, 2147483648
    %v1663 = vor.u32 1.1754944e-38, %v1662
    %v1664 = vsel %vm1661, %v1663, %v1659
    %v1665 = vmul.f32 1.0, %v1664
    %v1666 = vtanh.pop %v1645
    %v1667 = vmul.f32 %v1665, %v1386
    %1669 = vrot.lane.b32.xlu0 %v1666, 32
    %v1670 = vpop.permute.xlu0 %1669
    %v1672 = vmul.f32 %v1665, %v1670
    %1674 = vrot.lane.b32.xlu0 %v1672, 32
    %v1675 = vpop.permute.xlu0 %1674
    %v1677 = vadd.f32 %v1667, %v1675
    %v1678 = vtanh.pop %v1677
    %1680 = vrot.lane.b32.xlu0 %v1678, 32
    %v1681 = vpop.permute.xlu0 %1680
    %v1683 = vmul.f32 %v1665, %v1681
    %1685 = vrot.lane.b32.xlu0 %v1683, 32
    %v1686 = vpop.permute.xlu0 %1685
    %vm1688 = vcmask 1042176
    %1689 = vst.msk [vmem:[%s6] sm:$0x3] %vm1688, %v1686
    %1691 = vrot.lane.b32.xlu0 %v1546, 64
    %v1692 = vpop.permute.xlu0 %1691
    %1694 = vrot.lane.b32.xlu0 %v1470, 96
    %v1695 = vpop.permute.xlu0 %1694
    %v1697 = vsel %vm327, %v1692, %v1695
    %v1698 = vld [vmem:[%s531] sm:$0xff]
    %v1699 = vld [vmem:[%s531 + $0x8] sm:$0xff]
    %v1700 = vld [vmem:[%s531 + $0x10] sm:$0xff]
    %v1701 = vld [vmem:[%s531 + $0x18] sm:$0xff]
    %v1702 = vld [vmem:[%s531 + $0x20] sm:$0xff]
    %v1703 = vld [vmem:[%s531 + $0x28] sm:$0xff]
    %v1704 = vld [vmem:[%s531 + $0x30] sm:$0xff]
    %v1705 = vld [vmem:[%s531 + $0x38] sm:$0xff]
    %v1707 = vsel %vm405, %v1697, 0
    %1709 = vmatpush.msra.mxu0 0.0
    %1710 = vmatpush.msra.mxu0 0.0
    %1711 = vmatpush.msra.mxu0 0.0
    %1712 = vmatpush.msra.mxu0 0.0
    %1713 = vmatpush.msra.mxu0 0.0
    %1714 = vmatpush.msra.mxu0 0.0
    %1715 = vmatpush.msra.mxu0 0.0
    %1716 = vmatpush.msra.mxu0 0.0
    %1717 = vmatpush.msra.mxu0 %v1705
    %1718 = vmatpush.msra.mxu0 %v1704
    %1719 = vmatpush.msra.mxu0 %v1703
    %1720 = vmatpush.msra.mxu0 %v1702
    %1721 = vmatpush.msra.mxu0 %v1701
    %1722 = vmatpush.msra.mxu0 %v1700
    %1723 = vmatpush.msra.mxu0 %v1699
    %1724 = vmatpush.msra.mxu0 %v1698
    %1725 = vmatmul.f32.gmra.mxu0 %v1707
    %v1726 = vpop.f32.mrf.mxu0
    %v1727 = vadd.f32 %v541, %v1726
    %1728 = vdwg.mxu0
    %v1729 = vxor.u32 %v1727, 2147483648
    %v1730 = vmul.f32 %v1729, 1.442695
    %v1731 = vpow.pop %v1730
    %v1732 = vadd.f32 %v1731, 1.0
    %v1733 = vrcp.pop %v1732
    %v1734 = vmul.f32 %v1732, %v1733
    %v1735 = vsub.f32 1.0, %v1734
    %v1736 = vmul.f32 %v1733, %v1735
    %v1737 = vadd.f32 %v1733, %v1736
    %vm1738 = vweird.f32 %v1732
    %vm1739 = vweird.f32 %v1733
    %vm1740 = vmor %vm1738, %vm1739
    %v1741 = vsel %vm1740, %v1733, %v1737
    %v1742 = vand.u32 2147483647, %v1732
    %vm1743 = vcmp.eq.f32.partialorder %v1742, 8.507059e+37
    %v1744 = vand.u32 %v1732, 2147483648
    %v1745 = vor.u32 1.1754944e-38, %v1744
    %v1746 = vsel %vm1743, %v1745, %v1741
    %v1747 = vmul.f32 1.0, %v1746
    %v1748 = vtanh.pop %v1727
    %v1749 = vmul.f32 %v1747, %v1464
    %1751 = vrot.lane.b32.xlu0 %v1748, 32
    %v1752 = vpop.permute.xlu0 %1751
    %v1754 = vmul.f32 %v1747, %v1752
    %1756 = vrot.lane.b32.xlu0 %v1754, 32
    %v1757 = vpop.permute.xlu0 %1756
    %v1759 = vadd.f32 %v1749, %v1757
    %v1760 = vtanh.pop %v1759
    %1762 = vrot.lane.b32.xlu0 %v1760, 32
    %v1763 = vpop.permute.xlu0 %1762
    %v1765 = vmul.f32 %v1747, %v1763
    %1767 = vrot.lane.b32.xlu0 %v1606, 64
    %v1768 = vpop.permute.xlu0 %1767
    %1770 = vrot.lane.b32.xlu0 %v1546, 96
    %v1771 = vpop.permute.xlu0 %1770
    %v1773 = vsel %vm327, %v1768, %v1771
    %v1774 = vld [vmem:[#allocation7] sm:$0xff]
    %v1775 = vld [vmem:[#allocation7 + $0x8] sm:$0xff]
    %v1776 = vld [vmem:[#allocation7 + $0x10] sm:$0xff]
    %v1777 = vld [vmem:[#allocation7 + $0x18] sm:$0xff]
    %v1778 = vld [vmem:[#allocation7 + $0x20] sm:$0xff]
    %v1779 = vld [vmem:[#allocation7 + $0x28] sm:$0xff]
    %v1780 = vld [vmem:[#allocation7 + $0x30] sm:$0xff]
    %v1781 = vld [vmem:[#allocation7 + $0x38] sm:$0xff]
    %v1783 = vsel %vm405, %v1773, 0
    %1785 = vmatpush.msra.mxu0 0.0
    %1786 = vmatpush.msra.mxu0 0.0
    %1787 = vmatpush.msra.mxu0 0.0
    %1788 = vmatpush.msra.mxu0 0.0
    %1789 = vmatpush.msra.mxu0 0.0
    %1790 = vmatpush.msra.mxu0 0.0
    %1791 = vmatpush.msra.mxu0 0.0
    %1792 = vmatpush.msra.mxu0 0.0
    %1793 = vmatpush.msra.mxu0 %v1781
    %1794 = vmatpush.msra.mxu0 %v1780
    %1795 = vmatpush.msra.mxu0 %v1779
    %1796 = vmatpush.msra.mxu0 %v1778
    %1797 = vmatpush.msra.mxu0 %v1777
    %1798 = vmatpush.msra.mxu0 %v1776
    %1799 = vmatpush.msra.mxu0 %v1775
    %1800 = vmatpush.msra.mxu0 %v1774
    %1801 = vmatmul.f32.gmra.mxu0 %v1783
    %v1802 = vpop.f32.mrf.mxu0
    %v1803 = vadd.f32 %v403, %v1802
    %1804 = vdwg.mxu0
    %v1805 = vxor.u32 %v1803, 2147483648
    %v1806 = vmul.f32 %v1805, 1.442695
    %v1807 = vpow.pop %v1806
    %v1808 = vadd.f32 %v1807, 1.0
    %v1809 = vrcp.pop %v1808
    %v1810 = vmul.f32 %v1808, %v1809
    %v1811 = vsub.f32 1.0, %v1810
    %v1812 = vmul.f32 %v1809, %v1811
    %v1813 = vadd.f32 %v1809, %v1812
    %vm1814 = vweird.f32 %v1808
    %vm1815 = vweird.f32 %v1809
    %vm1816 = vmor %vm1814, %vm1815
    %v1817 = vsel %vm1816, %v1809, %v1813
    %v1818 = vand.u32 2147483647, %v1808
    %vm1819 = vcmp.eq.f32.partialorder %v1818, 8.507059e+37
    %v1820 = vand.u32 %v1808, 2147483648
    %v1821 = vor.u32 1.1754944e-38, %v1820
    %v1822 = vsel %vm1819, %v1821, %v1817
    %v1823 = vmul.f32 1.0, %v1822
    %v1824 = vtanh.pop %v1803
    %v1825 = vmul.f32 %v1823, %v1540
    %1827 = vrot.lane.b32.xlu0 %v1824, 32
    %v1828 = vpop.permute.xlu0 %1827
    %v1830 = vmul.f32 %v1823, %v1828
    %1832 = vrot.lane.b32.xlu0 %v1830, 32
    %v1833 = vpop.permute.xlu0 %1832
    %v1835 = vadd.f32 %v1825, %v1833
    %v1836 = vtanh.pop %v1835
    %1838 = vrot.lane.b32.xlu0 %v1836, 32
    %v1839 = vpop.permute.xlu0 %1838
    %v1841 = vmul.f32 %v1823, %v1839
    %v1842 = vsel %vm327, %v1768, 0
    %1844 = vmatpush.msra.mxu0 0.0
    %1845 = vmatpush.msra.mxu0 0.0
    %1846 = vmatpush.msra.mxu0 0.0
    %1847 = vmatpush.msra.mxu0 0.0
    %1848 = vmatpush.msra.mxu0 0.0
    %1849 = vmatpush.msra.mxu0 0.0
    %1850 = vmatpush.msra.mxu0 0.0
    %1851 = vmatpush.msra.mxu0 0.0
    %1852 = vmatpush.msra.mxu0 0.0
    %1853 = vmatpush.msra.mxu0 0.0
    %1854 = vmatpush.msra.mxu0 0.0
    %1855 = vmatpush.msra.mxu0 0.0
    %1856 = vmatpush.msra.mxu0 %v321
    %1857 = vmatpush.msra.mxu0 %v320
    %1858 = vmatpush.msra.mxu0 %v319
    %1859 = vmatpush.msra.mxu0 %v318
    %1860 = vmatmul.f32.gmra.mxu0 %v1842
    %v1861 = vpop.f32.mrf.mxu0
    %v1862 = vadd.f32 0.0, %v1861
    %1863 = vdwg.mxu0
    %v1864 = vadd.f32 %v287, %v1862
    %v1865 = vxor.u32 %v1864, 2147483648
    %v1866 = vmul.f32 %v1865, 1.442695
    %v1867 = vpow.pop %v1866
    %v1868 = vadd.f32 %v1867, 1.0
    %v1869 = vrcp.pop %v1868
    %v1870 = vmul.f32 %v1868, %v1869
    %v1871 = vsub.f32 1.0, %v1870
    %v1872 = vmul.f32 %v1869, %v1871
    %v1873 = vadd.f32 %v1869, %v1872
    %vm1874 = vweird.f32 %v1868
    %vm1875 = vweird.f32 %v1869
    %vm1876 = vmor %vm1874, %vm1875
    %v1877 = vsel %vm1876, %v1869, %v1873
    %v1878 = vand.u32 2147483647, %v1868
    %vm1879 = vcmp.eq.f32.partialorder %v1878, 8.507059e+37
    %v1880 = vand.u32 %v1868, 2147483648
    %v1881 = vor.u32 1.1754944e-38, %v1880
    %v1882 = vsel %vm1879, %v1881, %v1877
    %v1883 = vmul.f32 1.0, %v1882
    %v1884 = vtanh.pop %v1864
    %v1885 = vmul.f32 %v1883, %v1600
    %1887 = vrot.lane.b32.xlu0 %v1884, 32
    %v1888 = vpop.permute.xlu0 %1887
    %v1890 = vmul.f32 %v1883, %v1888
    %1892 = vrot.lane.b32.xlu0 %v1890, 32
    %v1893 = vpop.permute.xlu0 %1892
    %v1895 = vadd.f32 %v1885, %v1893
    %v1896 = vtanh.pop %v1895
    %1898 = vrot.lane.b32.xlu0 %v1896, 32
    %v1899 = vpop.permute.xlu0 %1898
    %v1901 = vmul.f32 %v1883, %v1899
    %1903 = vrot.lane.b32.xlu0 %v1765, 64
    %v1904 = vpop.permute.xlu0 %1903
    %1906 = vrot.lane.b32.xlu0 %v1683, 96
    %v1907 = vpop.permute.xlu0 %1906
    %v1909 = vsel %vm327, %v1904, %v1907
    %v1910 = vld [vmem:[%s736] sm:$0xff]
    %v1911 = vld [vmem:[%s736 + $0x8] sm:$0xff]
    %v1912 = vld [vmem:[%s736 + $0x10] sm:$0xff]
    %v1913 = vld [vmem:[%s736 + $0x18] sm:$0xff]
    %v1914 = vld [vmem:[%s736 + $0x20] sm:$0xff]
    %v1915 = vld [vmem:[%s736 + $0x28] sm:$0xff]
    %v1916 = vld [vmem:[%s736 + $0x30] sm:$0xff]
    %v1917 = vld [vmem:[%s736 + $0x38] sm:$0xff]
    %v1919 = vsel %vm405, %v1909, 0
    %1921 = vmatpush.msra.mxu0 0.0
    %1922 = vmatpush.msra.mxu0 0.0
    %1923 = vmatpush.msra.mxu0 0.0
    %1924 = vmatpush.msra.mxu0 0.0
    %1925 = vmatpush.msra.mxu0 0.0
    %1926 = vmatpush.msra.mxu0 0.0
    %1927 = vmatpush.msra.mxu0 0.0
    %1928 = vmatpush.msra.mxu0 0.0
    %1929 = vmatpush.msra.mxu0 %v1917
    %1930 = vmatpush.msra.mxu0 %v1916
    %1931 = vmatpush.msra.mxu0 %v1915
    %1932 = vmatpush.msra.mxu0 %v1914
    %1933 = vmatpush.msra.mxu0 %v1913
    %1934 = vmatpush.msra.mxu0 %v1912
    %1935 = vmatpush.msra.mxu0 %v1911
    %1936 = vmatpush.msra.mxu0 %v1910
    %1937 = vmatmul.f32.gmra.mxu0 %v1919
    %v1938 = vpop.f32.mrf.mxu0
    %v1939 = vadd.f32 %v746, %v1938
    %1940 = vdwg.mxu0
    %v1941 = vxor.u32 %v1939, 2147483648
    %v1942 = vmul.f32 %v1941, 1.442695
    %v1943 = vpow.pop %v1942
    %v1944 = vadd.f32 %v1943, 1.0
    %v1945 = vrcp.pop %v1944
    %v1946 = vmul.f32 %v1944, %v1945
    %v1947 = vsub.f32 1.0, %v1946
    %v1948 = vmul.f32 %v1945, %v1947
    %v1949 = vadd.f32 %v1945, %v1948
    %vm1950 = vweird.f32 %v1944
    %vm1951 = vweird.f32 %v1945
    %vm1952 = vmor %vm1950, %vm1951
    %v1953 = vsel %vm1952, %v1945, %v1949
    %v1954 = vand.u32 2147483647, %v1944
    %vm1955 = vcmp.eq.f32.partialorder %v1954, 8.507059e+37
    %v1956 = vand.u32 %v1944, 2147483648
    %v1957 = vor.u32 1.1754944e-38, %v1956
    %v1958 = vsel %vm1955, %v1957, %v1953
    %v1959 = vmul.f32 1.0, %v1958
    %v1960 = vtanh.pop %v1939
    %v1961 = vmul.f32 %v1959, %v1677
    %1963 = vrot.lane.b32.xlu0 %v1960, 32
    %v1964 = vpop.permute.xlu0 %1963
    %v1966 = vmul.f32 %v1959, %v1964
    %1968 = vrot.lane.b32.xlu0 %v1966, 32
    %v1969 = vpop.permute.xlu0 %1968
    %v1971 = vadd.f32 %v1961, %v1969
    %v1972 = vtanh.pop %v1971
    %1974 = vrot.lane.b32.xlu0 %v1972, 32
    %v1975 = vpop.permute.xlu0 %1974
    %v1977 = vmul.f32 %v1959, %v1975
    %1979 = vrot.lane.b32.xlu0 %v1977, 64
    %v1980 = vpop.permute.xlu0 %1979
    %1982 = vst.msk [vmem:[%s6 + $0x2] sm:$0x3] %vm812, %v1980
    %1984 = vrot.lane.b32.xlu0 %v1841, 64
    %v1985 = vpop.permute.xlu0 %1984
    %1987 = vrot.lane.b32.xlu0 %v1765, 96
    %v1988 = vpop.permute.xlu0 %1987
    %v1990 = vsel %vm327, %v1985, %v1988
    %v1991 = vld [vmem:[%s531] sm:$0xff]
    %v1992 = vld [vmem:[%s531 + $0x8] sm:$0xff]
    %v1993 = vld [vmem:[%s531 + $0x10] sm:$0xff]
    %v1994 = vld [vmem:[%s531 + $0x18] sm:$0xff]
    %v1995 = vld [vmem:[%s531 + $0x20] sm:$0xff]
    %v1996 = vld [vmem:[%s531 + $0x28] sm:$0xff]
    %v1997 = vld [vmem:[%s531 + $0x30] sm:$0xff]
    %v1998 = vld [vmem:[%s531 + $0x38] sm:$0xff]
    %v2000 = vsel %vm405, %v1990, 0
    %2002 = vmatpush.msra.mxu0 0.0
    %2003 = vmatpush.msra.mxu0 0.0
    %2004 = vmatpush.msra.mxu0 0.0
    %2005 = vmatpush.msra.mxu0 0.0
    %2006 = vmatpush.msra.mxu0 0.0
    %2007 = vmatpush.msra.mxu0 0.0
    %2008 = vmatpush.msra.mxu0 0.0
    %2009 = vmatpush.msra.mxu0 0.0
    %2010 = vmatpush.msra.mxu0 %v1998
    %2011 = vmatpush.msra.mxu0 %v1997
    %2012 = vmatpush.msra.mxu0 %v1996
    %2013 = vmatpush.msra.mxu0 %v1995
    %2014 = vmatpush.msra.mxu0 %v1994
    %2015 = vmatpush.msra.mxu0 %v1993
    %2016 = vmatpush.msra.mxu0 %v1992
    %2017 = vmatpush.msra.mxu0 %v1991
    %2018 = vmatmul.f32.gmra.mxu0 %v2000
    %v2019 = vpop.f32.mrf.mxu0
    %v2020 = vadd.f32 %v541, %v2019
    %2021 = vdwg.mxu0
    %v2022 = vxor.u32 %v2020, 2147483648
    %v2023 = vmul.f32 %v2022, 1.442695
    %v2024 = vpow.pop %v2023
    %v2025 = vadd.f32 %v2024, 1.0
    %v2026 = vrcp.pop %v2025
    %v2027 = vmul.f32 %v2025, %v2026
    %v2028 = vsub.f32 1.0, %v2027
    %v2029 = vmul.f32 %v2026, %v2028
    %v2030 = vadd.f32 %v2026, %v2029
    %vm2031 = vweird.f32 %v2025
    %vm2032 = vweird.f32 %v2026
    %vm2033 = vmor %vm2031, %vm2032
    %v2034 = vsel %vm2033, %v2026, %v2030
    %v2035 = vand.u32 2147483647, %v2025
    %vm2036 = vcmp.eq.f32.partialorder %v2035, 8.507059e+37
    %v2037 = vand.u32 %v2025, 2147483648
    %v2038 = vor.u32 1.1754944e-38, %v2037
    %v2039 = vsel %vm2036, %v2038, %v2034
    %v2040 = vmul.f32 1.0, %v2039
    %v2041 = vtanh.pop %v2020
    %v2042 = vmul.f32 %v2040, %v1759
    %2044 = vrot.lane.b32.xlu0 %v2041, 32
    %v2045 = vpop.permute.xlu0 %2044
    %v2047 = vmul.f32 %v2040, %v2045
    %2049 = vrot.lane.b32.xlu0 %v2047, 32
    %v2050 = vpop.permute.xlu0 %2049
    %v2052 = vadd.f32 %v2042, %v2050
    %v2053 = vtanh.pop %v2052
    %2055 = vrot.lane.b32.xlu0 %v2053, 32
    %v2056 = vpop.permute.xlu0 %2055
    %v2058 = vmul.f32 %v2040, %v2056
    %2060 = vrot.lane.b32.xlu0 %v1901, 64
    %v2061 = vpop.permute.xlu0 %2060
    %2063 = vrot.lane.b32.xlu0 %v1841, 96
    %v2064 = vpop.permute.xlu0 %2063
    %v2066 = vsel %vm327, %v2061, %v2064
    %v2067 = vld [vmem:[#allocation7] sm:$0xff]
    %v2068 = vld [vmem:[#allocation7 + $0x8] sm:$0xff]
    %v2069 = vld [vmem:[#allocation7 + $0x10] sm:$0xff]
    %v2070 = vld [vmem:[#allocation7 + $0x18] sm:$0xff]
    %v2071 = vld [vmem:[#allocation7 + $0x20] sm:$0xff]
    %v2072 = vld [vmem:[#allocation7 + $0x28] sm:$0xff]
    %v2073 = vld [vmem:[#allocation7 + $0x30] sm:$0xff]
    %v2074 = vld [vmem:[#allocation7 + $0x38] sm:$0xff]
    %v2076 = vsel %vm405, %v2066, 0
    %2078 = vmatpush.msra.mxu0 0.0
    %2079 = vmatpush.msra.mxu0 0.0
    %2080 = vmatpush.msra.mxu0 0.0
    %2081 = vmatpush.msra.mxu0 0.0
    %2082 = vmatpush.msra.mxu0 0.0
    %2083 = vmatpush.msra.mxu0 0.0
    %2084 = vmatpush.msra.mxu0 0.0
    %2085 = vmatpush.msra.mxu0 0.0
    %2086 = vmatpush.msra.mxu0 %v2074
    %2087 = vmatpush.msra.mxu0 %v2073
    %2088 = vmatpush.msra.mxu0 %v2072
    %2089 = vmatpush.msra.mxu0 %v2071
    %2090 = vmatpush.msra.mxu0 %v2070
    %2091 = vmatpush.msra.mxu0 %v2069
    %2092 = vmatpush.msra.mxu0 %v2068
    %2093 = vmatpush.msra.mxu0 %v2067
    %2094 = vmatmul.f32.gmra.mxu0 %v2076
    %v2095 = vpop.f32.mrf.mxu0
    %v2096 = vadd.f32 %v403, %v2095
    %2097 = vdwg.mxu0
    %v2098 = vxor.u32 %v2096, 2147483648
    %v2099 = vmul.f32 %v2098, 1.442695
    %v2100 = vpow.pop %v2099
    %v2101 = vadd.f32 %v2100, 1.0
    %v2102 = vrcp.pop %v2101
    %v2103 = vmul.f32 %v2101, %v2102
    %v2104 = vsub.f32 1.0, %v2103
    %v2105 = vmul.f32 %v2102, %v2104
    %v2106 = vadd.f32 %v2102, %v2105
    %vm2107 = vweird.f32 %v2101
    %vm2108 = vweird.f32 %v2102
    %vm2109 = vmor %vm2107, %vm2108
    %v2110 = vsel %vm2109, %v2102, %v2106
    %v2111 = vand.u32 2147483647, %v2101
    %vm2112 = vcmp.eq.f32.partialorder %v2111, 8.507059e+37
    %v2113 = vand.u32 %v2101, 2147483648
    %v2114 = vor.u32 1.1754944e-38, %v2113
    %v2115 = vsel %vm2112, %v2114, %v2110
    %v2116 = vmul.f32 1.0, %v2115
    %v2117 = vtanh.pop %v2096
    %v2118 = vmul.f32 %v2116, %v1835
    %2120 = vrot.lane.b32.xlu0 %v2117, 32
    %v2121 = vpop.permute.xlu0 %2120
    %v2123 = vmul.f32 %v2116, %v2121
    %2125 = vrot.lane.b32.xlu0 %v2123, 32
    %v2126 = vpop.permute.xlu0 %2125
    %v2128 = vadd.f32 %v2118, %v2126
    %v2129 = vtanh.pop %v2128
    %2131 = vrot.lane.b32.xlu0 %v2129, 32
    %v2132 = vpop.permute.xlu0 %2131
    %v2134 = vmul.f32 %v2116, %v2132
    %v2135 = vsel %vm327, %v2061, 0
    %2137 = vmatpush.msra.mxu0 0.0
    %2138 = vmatpush.msra.mxu0 0.0
    %2139 = vmatpush.msra.mxu0 0.0
    %2140 = vmatpush.msra.mxu0 0.0
    %2141 = vmatpush.msra.mxu0 0.0
    %2142 = vmatpush.msra.mxu0 0.0
    %2143 = vmatpush.msra.mxu0 0.0
    %2144 = vmatpush.msra.mxu0 0.0
    %2145 = vmatpush.msra.mxu0 0.0
    %2146 = vmatpush.msra.mxu0 0.0
    %2147 = vmatpush.msra.mxu0 0.0
    %2148 = vmatpush.msra.mxu0 0.0
    %2149 = vmatpush.msra.mxu0 %v321
    %2150 = vmatpush.msra.mxu0 %v320
    %2151 = vmatpush.msra.mxu0 %v319
    %2152 = vmatpush.msra.mxu0 %v318
    %2153 = vmatmul.f32.gmra.mxu0 %v2135
    %v2154 = vpop.f32.mrf.mxu0
    %v2155 = vadd.f32 0.0, %v2154
    %2156 = vdwg.mxu0
    %v2157 = vadd.f32 %v316, %v2155
    %v2158 = vxor.u32 %v2157, 2147483648
    %v2159 = vmul.f32 %v2158, 1.442695
    %v2160 = vpow.pop %v2159
    %v2161 = vadd.f32 %v2160, 1.0
    %v2162 = vrcp.pop %v2161
    %v2163 = vmul.f32 %v2161, %v2162
    %v2164 = vsub.f32 1.0, %v2163
    %v2165 = vmul.f32 %v2162, %v2164
    %v2166 = vadd.f32 %v2162, %v2165
    %vm2167 = vweird.f32 %v2161
    %vm2168 = vweird.f32 %v2162
    %vm2169 = vmor %vm2167, %vm2168
    %v2170 = vsel %vm2169, %v2162, %v2166
    %v2171 = vand.u32 2147483647, %v2161
    %vm2172 = vcmp.eq.f32.partialorder %v2171, 8.507059e+37
    %v2173 = vand.u32 %v2161, 2147483648
    %v2174 = vor.u32 1.1754944e-38, %v2173
    %v2175 = vsel %vm2172, %v2174, %v2170
    %v2176 = vmul.f32 1.0, %v2175
    %v2177 = vtanh.pop %v2157
    %v2178 = vmul.f32 %v2176, %v1895
    %2180 = vrot.lane.b32.xlu0 %v2177, 32
    %v2181 = vpop.permute.xlu0 %2180
    %v2183 = vmul.f32 %v2176, %v2181
    %2185 = vrot.lane.b32.xlu0 %v2183, 32
    %v2186 = vpop.permute.xlu0 %2185
    %v2188 = vadd.f32 %v2178, %v2186
    %v2189 = vtanh.pop %v2188
    %2191 = vrot.lane.b32.xlu0 %v2189, 32
    %v2192 = vpop.permute.xlu0 %2191
    %v2194 = vmul.f32 %v2176, %v2192
    %v2195 = vmax.f32 %v2194, -50.0
    %v2196 = vmin.f32 %v2195, 50.0
    %2198 = vrot.lane.b32.xlu0 %v2196, 64
    %v2199 = vpop.permute.xlu0 %2198
    %2201 = vst.msk [vmem:[#allocation8] sm:$0x3] %vm812, %v2199
    %v2202 = vmax.f32 %v2188, -50.0
    %v2203 = vmin.f32 %v2202, 50.0
    %2205 = vrot.lane.b32.xlu0 %v2203, 96
    %v2206 = vpop.permute.xlu0 %2205
    %2208 = vst.msk [vmem:[#allocation9] sm:$0x3] %vm812, %v2206
    %2210 = vrot.lane.b32.xlu0 %v2058, 64
    %v2211 = vpop.permute.xlu0 %2210
    %2213 = vrot.lane.b32.xlu0 %v1977, 96
    %v2214 = vpop.permute.xlu0 %2213
    %v2216 = vsel %vm327, %v2211, %v2214
    %v2217 = vld [vmem:[%s736] sm:$0xff]
    %v2218 = vld [vmem:[%s736 + $0x8] sm:$0xff]
    %v2219 = vld [vmem:[%s736 + $0x10] sm:$0xff]
    %v2220 = vld [vmem:[%s736 + $0x18] sm:$0xff]
    %v2221 = vld [vmem:[%s736 + $0x20] sm:$0xff]
    %v2222 = vld [vmem:[%s736 + $0x28] sm:$0xff]
    %v2223 = vld [vmem:[%s736 + $0x30] sm:$0xff]
    %v2224 = vld [vmem:[%s736 + $0x38] sm:$0xff]
    %v2226 = vsel %vm405, %v2216, 0
    %2228 = vmatpush.msra.mxu0 0.0
    %2229 = vmatpush.msra.mxu0 0.0
    %2230 = vmatpush.msra.mxu0 0.0
    %2231 = vmatpush.msra.mxu0 0.0
    %2232 = vmatpush.msra.mxu0 0.0
    %2233 = vmatpush.msra.mxu0 0.0
    %2234 = vmatpush.msra.mxu0 0.0
    %2235 = vmatpush.msra.mxu0 0.0
    %2236 = vmatpush.msra.mxu0 %v2224
    %2237 = vmatpush.msra.mxu0 %v2223
    %2238 = vmatpush.msra.mxu0 %v2222
    %2239 = vmatpush.msra.mxu0 %v2221
    %2240 = vmatpush.msra.mxu0 %v2220
    %2241 = vmatpush.msra.mxu0 %v2219
    %2242 = vmatpush.msra.mxu0 %v2218
    %2243 = vmatpush.msra.mxu0 %v2217
    %2244 = vmatmul.f32.gmra.mxu0 %v2226
    %v2245 = vpop.f32.mrf.mxu0
    %v2246 = vadd.f32 %v746, %v2245
    %2247 = vdwg.mxu0
    %v2248 = vxor.u32 %v2246, 2147483648
    %v2249 = vmul.f32 %v2248, 1.442695
    %v2250 = vpow.pop %v2249
    %v2251 = vadd.f32 %v2250, 1.0
    %v2252 = vrcp.pop %v2251
    %v2253 = vmul.f32 %v2251, %v2252
    %v2254 = vsub.f32 1.0, %v2253
    %v2255 = vmul.f32 %v2252, %v2254
    %v2256 = vadd.f32 %v2252, %v2255
    %vm2257 = vweird.f32 %v2251
    %vm2258 = vweird.f32 %v2252
    %vm2259 = vmor %vm2257, %vm2258
    %v2260 = vsel %vm2259, %v2252, %v2256
    %v2261 = vand.u32 2147483647, %v2251
    %vm2262 = vcmp.eq.f32.partialorder %v2261, 8.507059e+37
    %v2263 = vand.u32 %v2251, 2147483648
    %v2264 = vor.u32 1.1754944e-38, %v2263
    %v2265 = vsel %vm2262, %v2264, %v2260
    %v2266 = vmul.f32 1.0, %v2265
    %v2267 = vtanh.pop %v2246
    %v2268 = vmul.f32 %v2266, %v1971
    %2270 = vrot.lane.b32.xlu0 %v2267, 32
    %v2271 = vpop.permute.xlu0 %2270
    %v2273 = vmul.f32 %v2266, %v2271
    %2275 = vrot.lane.b32.xlu0 %v2273, 32
    %v2276 = vpop.permute.xlu0 %2275
    %v2278 = vadd.f32 %v2268, %v2276
    %v2279 = vtanh.pop %v2278
    %2281 = vrot.lane.b32.xlu0 %v2279, 32
    %v2282 = vpop.permute.xlu0 %2281
    %v2284 = vmul.f32 %v2266, %v2282
    %2286 = vrot.lane.b32.xlu0 %v2284, 96
    %v2287 = vpop.permute.xlu0 %2286
    %2289 = vst.msk [vmem:[%s6 + $0x2] sm:$0x3] %vm1106, %v2287
    %2291 = vrot.lane.b32.xlu0 %v2134, 64
    %v2292 = vpop.permute.xlu0 %2291
    %2294 = vrot.lane.b32.xlu0 %v2058, 96
    %v2295 = vpop.permute.xlu0 %2294
    %v2297 = vsel %vm327, %v2292, %v2295
    %v2298 = vld [vmem:[%s531] sm:$0xff]
    %v2299 = vld [vmem:[%s531 + $0x8] sm:$0xff]
    %v2300 = vld [vmem:[%s531 + $0x10] sm:$0xff]
    %v2301 = vld [vmem:[%s531 + $0x18] sm:$0xff]
    %v2302 = vld [vmem:[%s531 + $0x20] sm:$0xff]
    %v2303 = vld [vmem:[%s531 + $0x28] sm:$0xff]
    %v2304 = vld [vmem:[%s531 + $0x30] sm:$0xff]
    %v2305 = vld [vmem:[%s531 + $0x38] sm:$0xff]
    %v2307 = vsel %vm405, %v2297, 0
    %2309 = vmatpush.msra.mxu0 0.0
    %2310 = vmatpush.msra.mxu0 0.0
    %2311 = vmatpush.msra.mxu0 0.0
    %2312 = vmatpush.msra.mxu0 0.0
    %2313 = vmatpush.msra.mxu0 0.0
    %2314 = vmatpush.msra.mxu0 0.0
    %2315 = vmatpush.msra.mxu0 0.0
    %2316 = vmatpush.msra.mxu0 0.0
    %2317 = vmatpush.msra.mxu0 %v2305
    %2318 = vmatpush.msra.mxu0 %v2304
    %2319 = vmatpush.msra.mxu0 %v2303
    %2320 = vmatpush.msra.mxu0 %v2302
    %2321 = vmatpush.msra.mxu0 %v2301
    %2322 = vmatpush.msra.mxu0 %v2300
    %2323 = vmatpush.msra.mxu0 %v2299
    %2324 = vmatpush.msra.mxu0 %v2298
    %2325 = vmatmul.f32.gmra.mxu0 %v2307
    %v2326 = vpop.f32.mrf.mxu0
    %v2327 = vadd.f32 %v541, %v2326
    %2328 = vdwg.mxu0
    %v2329 = vxor.u32 %v2327, 2147483648
    %v2330 = vmul.f32 %v2329, 1.442695
    %v2331 = vpow.pop %v2330
    %v2332 = vadd.f32 %v2331, 1.0
    %v2333 = vrcp.pop %v2332
    %v2334 = vmul.f32 %v2332, %v2333
    %v2335 = vsub.f32 1.0, %v2334
    %v2336 = vmul.f32 %v2333, %v2335
    %v2337 = vadd.f32 %v2333, %v2336
    %vm2338 = vweird.f32 %v2332
    %vm2339 = vweird.f32 %v2333
    %vm2340 = vmor %vm2338, %vm2339
    %v2341 = vsel %vm2340, %v2333, %v2337
    %v2342 = vand.u32 2147483647, %v2332
    %vm2343 = vcmp.eq.f32.partialorder %v2342, 8.507059e+37
    %v2344 = vand.u32 %v2332, 2147483648
    %v2345 = vor.u32 1.1754944e-38, %v2344
    %v2346 = vsel %vm2343, %v2345, %v2341
    %v2347 = vmul.f32 1.0, %v2346
    %v2348 = vtanh.pop %v2327
    %v2349 = vmul.f32 %v2347, %v2052
    %2351 = vrot.lane.b32.xlu0 %v2348, 32
    %v2352 = vpop.permute.xlu0 %2351
    %v2354 = vmul.f32 %v2347, %v2352
    %2356 = vrot.lane.b32.xlu0 %v2354, 32
    %v2357 = vpop.permute.xlu0 %2356
    %v2359 = vadd.f32 %v2349, %v2357
    %v2360 = vtanh.pop %v2359
    %2362 = vrot.lane.b32.xlu0 %v2360, 32
    %v2363 = vpop.permute.xlu0 %2362
    %v2365 = vmul.f32 %v2347, %v2363
    %2367 = vrot.lane.b32.xlu0 %v2194, 64
    %v2368 = vpop.permute.xlu0 %2367
    %2370 = vrot.lane.b32.xlu0 %v2134, 96
    %v2371 = vpop.permute.xlu0 %2370
    %v2373 = vsel %vm327, %v2368, %v2371
    %v2374 = vld [vmem:[#allocation7] sm:$0xff]
    %v2375 = vld [vmem:[#allocation7 + $0x8] sm:$0xff]
    %v2376 = vld [vmem:[#allocation7 + $0x10] sm:$0xff]
    %v2377 = vld [vmem:[#allocation7 + $0x18] sm:$0xff]
    %v2378 = vld [vmem:[#allocation7 + $0x20] sm:$0xff]
    %v2379 = vld [vmem:[#allocation7 + $0x28] sm:$0xff]
    %v2380 = vld [vmem:[#allocation7 + $0x30] sm:$0xff]
    %v2381 = vld [vmem:[#allocation7 + $0x38] sm:$0xff]
    %v2383 = vsel %vm405, %v2373, 0
    %2385 = vmatpush.msra.mxu0 0.0
    %2386 = vmatpush.msra.mxu0 0.0
    %2387 = vmatpush.msra.mxu0 0.0
    %2388 = vmatpush.msra.mxu0 0.0
    %2389 = vmatpush.msra.mxu0 0.0
    %2390 = vmatpush.msra.mxu0 0.0
    %2391 = vmatpush.msra.mxu0 0.0
    %2392 = vmatpush.msra.mxu0 0.0
    %2393 = vmatpush.msra.mxu0 %v2381
    %2394 = vmatpush.msra.mxu0 %v2380
    %2395 = vmatpush.msra.mxu0 %v2379
    %2396 = vmatpush.msra.mxu0 %v2378
    %2397 = vmatpush.msra.mxu0 %v2377
    %2398 = vmatpush.msra.mxu0 %v2376
    %2399 = vmatpush.msra.mxu0 %v2375
    %2400 = vmatpush.msra.mxu0 %v2374
    %2401 = vmatmul.f32.gmra.mxu0 %v2383
    %v2402 = vpop.f32.mrf.mxu0
    %v2403 = vadd.f32 %v403, %v2402
    %2404 = vdwg.mxu0
    %v2405 = vxor.u32 %v2403, 2147483648
    %v2406 = vmul.f32 %v2405, 1.442695
    %v2407 = vpow.pop %v2406
    %v2408 = vadd.f32 %v2407, 1.0
    %v2409 = vrcp.pop %v2408
    %v2410 = vmul.f32 %v2408, %v2409
    %v2411 = vsub.f32 1.0, %v2410
    %v2412 = vmul.f32 %v2409, %v2411
    %v2413 = vadd.f32 %v2409, %v2412
    %vm2414 = vweird.f32 %v2408
    %vm2415 = vweird.f32 %v2409
    %vm2416 = vmor %vm2414, %vm2415
    %v2417 = vsel %vm2416, %v2409, %v2413
    %v2418 = vand.u32 2147483647, %v2408
    %vm2419 = vcmp.eq.f32.partialorder %v2418, 8.507059e+37
    %v2420 = vand.u32 %v2408, 2147483648
    %v2421 = vor.u32 1.1754944e-38, %v2420
    %v2422 = vsel %vm2419, %v2421, %v2417
    %v2423 = vmul.f32 1.0, %v2422
    %v2424 = vtanh.pop %v2403
    %v2425 = vmul.f32 %v2423, %v2128
    %2427 = vrot.lane.b32.xlu0 %v2424, 32
    %v2428 = vpop.permute.xlu0 %2427
    %v2430 = vmul.f32 %v2423, %v2428
    %2432 = vrot.lane.b32.xlu0 %v2430, 32
    %v2433 = vpop.permute.xlu0 %2432
    %v2435 = vadd.f32 %v2425, %v2433
    %v2436 = vtanh.pop %v2435
    %2438 = vrot.lane.b32.xlu0 %v2436, 32
    %v2439 = vpop.permute.xlu0 %2438
    %v2441 = vmul.f32 %v2423, %v2439
    %v2442 = vmax.f32 %v2441, -50.0
    %v2443 = vmin.f32 %v2442, 50.0
    %2445 = vrot.lane.b32.xlu0 %v2443, 64
    %v2446 = vpop.permute.xlu0 %2445
    %s2448 = scalar_lea.vmem [#allocation8], 2
    %2449 = vst.msk [vmem:[%s2448] sm:$0x3] %vm812, %v2446
    %v2450 = vmax.f32 %v2435, -50.0
    %v2451 = vmin.f32 %v2450, 50.0
    %2453 = vrot.lane.b32.xlu0 %v2451, 96
    %v2454 = vpop.permute.xlu0 %2453
    %s2456 = scalar_lea.vmem [#allocation9], 2
    %2457 = vst.msk [vmem:[%s2456] sm:$0x3] %vm812, %v2454
    %2459 = vrot.lane.b32.xlu0 %v2365, 64
    %v2460 = vpop.permute.xlu0 %2459
    %v2462 = vsel %vm327, %v2460, %v2287
    %v2463 = vld [vmem:[%s736] sm:$0xff]
    %v2464 = vld [vmem:[%s736 + $0x8] sm:$0xff]
    %v2465 = vld [vmem:[%s736 + $0x10] sm:$0xff]
    %v2466 = vld [vmem:[%s736 + $0x18] sm:$0xff]
    %v2467 = vld [vmem:[%s736 + $0x20] sm:$0xff]
    %v2468 = vld [vmem:[%s736 + $0x28] sm:$0xff]
    %v2469 = vld [vmem:[%s736 + $0x30] sm:$0xff]
    %v2470 = vld [vmem:[%s736 + $0x38] sm:$0xff]
    %v2472 = vsel %vm405, %v2462, 0
    %2474 = vmatpush.msra.mxu0 0.0
    %2475 = vmatpush.msra.mxu0 0.0
    %2476 = vmatpush.msra.mxu0 0.0
    %2477 = vmatpush.msra.mxu0 0.0
    %2478 = vmatpush.msra.mxu0 0.0
    %2479 = vmatpush.msra.mxu0 0.0
    %2480 = vmatpush.msra.mxu0 0.0
    %2481 = vmatpush.msra.mxu0 0.0
    %2482 = vmatpush.msra.mxu0 %v2470
    %2483 = vmatpush.msra.mxu0 %v2469
    %2484 = vmatpush.msra.mxu0 %v2468
    %2485 = vmatpush.msra.mxu0 %v2467
    %2486 = vmatpush.msra.mxu0 %v2466
    %2487 = vmatpush.msra.mxu0 %v2465
    %2488 = vmatpush.msra.mxu0 %v2464
    %2489 = vmatpush.msra.mxu0 %v2463
    %2490 = vmatmul.f32.gmra.mxu0 %v2472
    %v2491 = vpop.f32.mrf.mxu0
    %v2492 = vadd.f32 %v746, %v2491
    %2493 = vdwg.mxu0
    %v2494 = vxor.u32 %v2492, 2147483648
    %v2495 = vmul.f32 %v2494, 1.442695
    %v2496 = vpow.pop %v2495
    %v2497 = vadd.f32 %v2496, 1.0
    %v2498 = vrcp.pop %v2497
    %v2499 = vmul.f32 %v2497, %v2498
    %v2500 = vsub.f32 1.0, %v2499
    %v2501 = vmul.f32 %v2498, %v2500
    %v2502 = vadd.f32 %v2498, %v2501
    %vm2503 = vweird.f32 %v2497
    %vm2504 = vweird.f32 %v2498
    %vm2505 = vmor %vm2503, %vm2504
    %v2506 = vsel %vm2505, %v2498, %v2502
    %v2507 = vand.u32 2147483647, %v2497
    %vm2508 = vcmp.eq.f32.partialorder %v2507, 8.507059e+37
    %v2509 = vand.u32 %v2497, 2147483648
    %v2510 = vor.u32 1.1754944e-38, %v2509
    %v2511 = vsel %vm2508, %v2510, %v2506
    %v2512 = vmul.f32 1.0, %v2511
    %v2513 = vtanh.pop %v2492
    %v2514 = vmul.f32 %v2512, %v2278
    %2516 = vrot.lane.b32.xlu0 %v2513, 32
    %v2517 = vpop.permute.xlu0 %2516
    %v2519 = vmul.f32 %v2512, %v2517
    %2521 = vrot.lane.b32.xlu0 %v2519, 32
    %v2522 = vpop.permute.xlu0 %2521
    %v2524 = vadd.f32 %v2514, %v2522
    %v2525 = vtanh.pop %v2524
    %2527 = vrot.lane.b32.xlu0 %v2525, 32
    %v2528 = vpop.permute.xlu0 %2527
    %v2530 = vmul.f32 %v2512, %v2528
    %2531 = vst.msk [vmem:[%s6 + $0x2] sm:$0x3] %vm1393, %v2530
    %2533 = vrot.lane.b32.xlu0 %v2441, 64
    %v2534 = vpop.permute.xlu0 %2533
    %2536 = vrot.lane.b32.xlu0 %v2365, 96
    %v2537 = vpop.permute.xlu0 %2536
    %v2539 = vsel %vm327, %v2534, %v2537
    %v2540 = vld [vmem:[%s531] sm:$0xff]
    %v2541 = vld [vmem:[%s531 + $0x8] sm:$0xff]
    %v2542 = vld [vmem:[%s531 + $0x10] sm:$0xff]
    %v2543 = vld [vmem:[%s531 + $0x18] sm:$0xff]
    %v2544 = vld [vmem:[%s531 + $0x20] sm:$0xff]
    %v2545 = vld [vmem:[%s531 + $0x28] sm:$0xff]
    %v2546 = vld [vmem:[%s531 + $0x30] sm:$0xff]
    %v2547 = vld [vmem:[%s531 + $0x38] sm:$0xff]
    %v2549 = vsel %vm405, %v2539, 0
    %2551 = vmatpush.msra.mxu0 0.0
    %2552 = vmatpush.msra.mxu0 0.0
    %2553 = vmatpush.msra.mxu0 0.0
    %2554 = vmatpush.msra.mxu0 0.0
    %2555 = vmatpush.msra.mxu0 0.0
    %2556 = vmatpush.msra.mxu0 0.0
    %2557 = vmatpush.msra.mxu0 0.0
    %2558 = vmatpush.msra.mxu0 0.0
    %2559 = vmatpush.msra.mxu0 %v2547
    %2560 = vmatpush.msra.mxu0 %v2546
    %2561 = vmatpush.msra.mxu0 %v2545
    %2562 = vmatpush.msra.mxu0 %v2544
    %2563 = vmatpush.msra.mxu0 %v2543
    %2564 = vmatpush.msra.mxu0 %v2542
    %2565 = vmatpush.msra.mxu0 %v2541
    %2566 = vmatpush.msra.mxu0 %v2540
    %2567 = vmatmul.f32.gmra.mxu0 %v2549
    %v2568 = vpop.f32.mrf.mxu0
    %v2569 = vadd.f32 %v541, %v2568
    %2570 = vdwg.mxu0
    %v2571 = vxor.u32 %v2569, 2147483648
    %v2572 = vmul.f32 %v2571, 1.442695
    %v2573 = vpow.pop %v2572
    %v2574 = vadd.f32 %v2573, 1.0
    %v2575 = vrcp.pop %v2574
    %v2576 = vmul.f32 %v2574, %v2575
    %v2577 = vsub.f32 1.0, %v2576
    %v2578 = vmul.f32 %v2575, %v2577
    %v2579 = vadd.f32 %v2575, %v2578
    %vm2580 = vweird.f32 %v2574
    %vm2581 = vweird.f32 %v2575
    %vm2582 = vmor %vm2580, %vm2581
    %v2583 = vsel %vm2582, %v2575, %v2579
    %v2584 = vand.u32 2147483647, %v2574
    %vm2585 = vcmp.eq.f32.partialorder %v2584, 8.507059e+37
    %v2586 = vand.u32 %v2574, 2147483648
    %v2587 = vor.u32 1.1754944e-38, %v2586
    %v2588 = vsel %vm2585, %v2587, %v2583
    %v2589 = vmul.f32 1.0, %v2588
    %v2590 = vtanh.pop %v2569
    %v2591 = vmul.f32 %v2589, %v2359
    %2593 = vrot.lane.b32.xlu0 %v2590, 32
    %v2594 = vpop.permute.xlu0 %2593
    %v2596 = vmul.f32 %v2589, %v2594
    %2598 = vrot.lane.b32.xlu0 %v2596, 32
    %v2599 = vpop.permute.xlu0 %2598
    %v2601 = vadd.f32 %v2591, %v2599
    %v2602 = vtanh.pop %v2601
    %2604 = vrot.lane.b32.xlu0 %v2602, 32
    %v2605 = vpop.permute.xlu0 %2604
    %v2607 = vmul.f32 %v2589, %v2605
    %v2608 = vmax.f32 %v2607, -50.0
    %v2609 = vmin.f32 %v2608, 50.0
    %2611 = vrot.lane.b32.xlu0 %v2609, 64
    %v2612 = vpop.permute.xlu0 %2611
    %s2614 = scalar_lea.vmem [#allocation8], 4
    %2615 = vst.msk [vmem:[%s2614] sm:$0x3] %vm812, %v2612
    %v2616 = vmax.f32 %v2601, -50.0
    %v2617 = vmin.f32 %v2616, 50.0
    %2619 = vrot.lane.b32.xlu0 %v2617, 96
    %v2620 = vpop.permute.xlu0 %2619
    %s2622 = scalar_lea.vmem [#allocation9], 4
    %2623 = vst.msk [vmem:[%s2622] sm:$0x3] %vm812, %v2620
    %2625 = vrot.lane.b32.xlu0 %v2607, 64
    %v2626 = vpop.permute.xlu0 %2625
    %2629 = vrot.lane.b32.xlu0 %v2530, 96
    %v2630 = vpop.permute.xlu0 %2629
    %v2632 = vsel %vm327, %v2626, %v2630
    %v2633 = vld [vmem:[%s736] sm:$0xff]
    %v2634 = vld [vmem:[%s736 + $0x8] sm:$0xff]
    %v2635 = vld [vmem:[%s736 + $0x10] sm:$0xff]
    %v2636 = vld [vmem:[%s736 + $0x18] sm:$0xff]
    %v2637 = vld [vmem:[%s736 + $0x20] sm:$0xff]
    %v2638 = vld [vmem:[%s736 + $0x28] sm:$0xff]
    %v2639 = vld [vmem:[%s736 + $0x30] sm:$0xff]
    %v2640 = vld [vmem:[%s736 + $0x38] sm:$0xff]
    %v2642 = vsel %vm405, %v2632, 0
    %2644 = vmatpush.msra.mxu0 0.0
    %2645 = vmatpush.msra.mxu0 0.0
    %2646 = vmatpush.msra.mxu0 0.0
    %2647 = vmatpush.msra.mxu0 0.0
    %2648 = vmatpush.msra.mxu0 0.0
    %2649 = vmatpush.msra.mxu0 0.0
    %2650 = vmatpush.msra.mxu0 0.0
    %2651 = vmatpush.msra.mxu0 0.0
    %2652 = vmatpush.msra.mxu0 %v2640
    %2653 = vmatpush.msra.mxu0 %v2639
    %2654 = vmatpush.msra.mxu0 %v2638
    %2655 = vmatpush.msra.mxu0 %v2637
    %2656 = vmatpush.msra.mxu0 %v2636
    %2657 = vmatpush.msra.mxu0 %v2635
    %2658 = vmatpush.msra.mxu0 %v2634
    %2659 = vmatpush.msra.mxu0 %v2633
    %2660 = vmatmul.f32.gmra.mxu0 %v2642
    %v2661 = vpop.f32.mrf.mxu0
    %v2662 = vadd.f32 %v746, %v2661
    %2663 = vdwg.mxu0
    %v2664 = vxor.u32 %v2662, 2147483648
    %v2665 = vmul.f32 %v2664, 1.442695
    %v2666 = vpow.pop %v2665
    %v2667 = vadd.f32 %v2666, 1.0
    %v2668 = vrcp.pop %v2667
    %v2669 = vmul.f32 %v2667, %v2668
    %v2670 = vsub.f32 1.0, %v2669
    %v2671 = vmul.f32 %v2668, %v2670
    %v2672 = vadd.f32 %v2668, %v2671
    %vm2673 = vweird.f32 %v2667
    %vm2674 = vweird.f32 %v2668
    %vm2675 = vmor %vm2673, %vm2674
    %v2676 = vsel %vm2675, %v2668, %v2672
    %v2677 = vand.u32 2147483647, %v2667
    %vm2678 = vcmp.eq.f32.partialorder %v2677, 8.507059e+37
    %v2679 = vand.u32 %v2667, 2147483648
    %v2680 = vor.u32 1.1754944e-38, %v2679
    %v2681 = vsel %vm2678, %v2680, %v2676
    %v2682 = vmul.f32 1.0, %v2681
    %v2683 = vtanh.pop %v2662
    %v2684 = vmul.f32 %v2682, %v2524
    %2686 = vrot.lane.b32.xlu0 %v2683, 32
    %v2687 = vpop.permute.xlu0 %2686
    %v2689 = vmul.f32 %v2682, %v2687
    %2691 = vrot.lane.b32.xlu0 %v2689, 32
    %v2692 = vpop.permute.xlu0 %2691
    %v2694 = vadd.f32 %v2684, %v2692
    %v2695 = vtanh.pop %v2694
    %2697 = vrot.lane.b32.xlu0 %v2695, 32
    %v2698 = vpop.permute.xlu0 %2697
    %v2700 = vmul.f32 %v2682, %v2698
    %2702 = vrot.lane.b32.xlu0 %v2700, 32
    %v2703 = vpop.permute.xlu0 %2702
    %2705 = vst.msk [vmem:[%s6 + $0x2] sm:$0x3] %vm1688, %v2703
    %v2706 = vmax.f32 %v2700, -50.0
    %v2707 = vmin.f32 %v2706, 50.0
    %2709 = vrot.lane.b32.xlu0 %v2707, 64
    %v2710 = vpop.permute.xlu0 %2709
    %s2712 = scalar_lea.vmem [#allocation8], 6
    %2713 = vst.msk [vmem:[%s2712] sm:$0x3] %vm812, %v2710
    %v2714 = vmax.f32 %v2694, -50.0
    %v2715 = vmin.f32 %v2714, 50.0
    %2717 = vrot.lane.b32.xlu0 %v2715, 96
    %v2718 = vpop.permute.xlu0 %2717
    %s2720 = scalar_lea.vmem [#allocation9], 6
    %2721 = vst.msk [vmem:[%s2720] sm:$0x3] %vm812, %v2718
    // Predicated region
    $region38: #{encoder_forward.1} parent=1 // pred_check
      _
    $region39: #{encoder_forward.1} parent=1 // pred_check_branch
      %2723 = sbr.rel (0) target = $region41
    $region40: #{encoder_forward.1} parent=1 // pred_region
      _
    $region41: #{encoder_forward.1} parent=1 // pred_fallthru
      _
    // Predicated region
    $region42: #{encoder_forward.1} parent=1 // pred_check
      _
    $region43: #{encoder_forward.1} parent=1 // pred_check_branch
      %2725 = sbr.rel (0) target = $region45
    $region44: #{encoder_forward.1} parent=1 // pred_region
      %2727 = vsyncadd [#allocation4], 0
      %s2728 = sshll.u32 [#allocation8], 4
      %s2729 = int_to_ptr.vmem [resolvable:$true] %s2728
      %s2730 = sshll.u32 %s7, 4
      %s2731 = int_to_ptr.hbm [resolvable:$true] %s2730
      %2736 = dma.vmem_to_hbm [thread:$0]  %s2729, 128, %s2731, [#allocation4], 32, 32, 2
    $region45: #{encoder_forward.1} parent=1 // pred_fallthru
      _
    // Predicated region
    $region46: #{encoder_forward.1} parent=1 // pred_check
      _
    $region47: #{encoder_forward.1} parent=1 // pred_check_branch
      %2738 = sbr.rel (0) target = $region49
    $region48: #{encoder_forward.1} parent=1 // pred_region
      %2740 = vsyncadd [#allocation10], 0
      %s2741 = sshll.u32 [#allocation9], 4
      %s2742 = int_to_ptr.vmem [resolvable:$true] %s2741
      %s2743 = sshll.u32 %s8, 4
      %s2744 = int_to_ptr.hbm [resolvable:$true] %s2743
      %2749 = dma.vmem_to_hbm [thread:$0]  %s2742, 128, %s2744, [#allocation10], 32, 32, 2
    $region49: #{encoder_forward.1} parent=1 // pred_fallthru
      _
    // Predicated region
    $region50: #{encoder_forward.1} parent=1 // pred_check
      _
    $region51: #{encoder_forward.1} parent=1 // pred_check_branch
      %2751 = sbr.rel (0) target = $region53
    $region52: #{encoder_forward.1} parent=1 // pred_region
      _
    $region53: #{encoder_forward.1} parent=1 // pred_fallthru
      _
    // Predicated region
    $region54: #{encoder_forward.1} parent=1 // pred_check
      _
    $region55: #{encoder_forward.1} parent=1 // pred_check_branch
      %2753 = sbr.rel (0) target = $region57
    $region56: #{encoder_forward.1} parent=1 // pred_region
      %2755 = dma.done [#allocation4], 128
    $region57: #{encoder_forward.1} parent=1 // pred_fallthru
      _
    // Predicated region
    $region58: #{encoder_forward.1} parent=1 // pred_check
      _
    $region59: #{encoder_forward.1} parent=1 // pred_check_branch
      %2757 = sbr.rel (0) target = $region61
    $region60: #{encoder_forward.1} parent=1 // pred_region
      %2759 = dma.done [#allocation10], 128
    $region61: #{encoder_forward.1} parent=1 // pred_fallthru
      _
    %2760 = vsyncpa [#allocation3], 1
    %2761 = vsyncpa [#allocation6], 1
    %2762 = vsyncpa [#allocation4], 1
    %2763 = vsyncpa [#allocation10], 1

</llo_original>
